<compile_context>
chip_gen: v7x
topology: tpu7x:2x2x1
jax: 0.10.0
libtpu: 0.0.40
codegen_flags: <defaults>
</compile_context>

<pallas_src>
import functools

import jax
import jax.numpy as jnp
from jax import lax
from jax.experimental import pallas as pl
from jax.experimental.pallas import tpu as pltpu

NEG_INF = -1e20  # ParlAI neginf() for float32 (kept finite and in f32 only)


def _mxu_prefers_bf16():
    """bf16 MXU operands on v6e/v7x; f32 on v5e and older (no bf16 VPU/EUP)."""
    try:
        kind = jax.devices()[0].device_kind.lower()
    except Exception:
        return False
    if "tpu" not in kind:
        return False
    for old in ("v2", "v3", "v4", "v5"):
        if old in kind:
            return False
    return True


def _poly_encoder_kernel(codes_ref, q_ref, bias_ref, p_ref, out_ref, *, compute_dtype):
    block_b, Lq, D = q_ref.shape
    n_codes = codes_ref.shape[0]
    C = p_ref.shape[1]

    codes = codes_ref[...].astype(compute_dtype)       # (n_codes, D)
    q = q_ref[...]                                     # (block_b, Lq, D) f32
    p = p_ref[...]                                     # (block_b, C, D)  f32
    bias = bias_ref[...]                               # (block_b, Lq)    f32 additive mask

    q_c = q.astype(compute_dtype)
    p_c = p.astype(compute_dtype)

    # --- stage 1: codes-attention logits, flattened across the whole block ---
    # One (block_b*Lq, D) x (D, n_codes) MXU matmul instead of block_b tiny ones.
    q_flat = q_c.reshape(block_b * Lq, D)
    s1 = lax.dot_general(q_flat, codes, (((1,), (1,)), ((), ())),
                         preferred_element_type=jnp.float32)        # (block_b*Lq, n_codes)
    s1 = s1.reshape(block_b, Lq, n_codes) + bias[:, :, None]        # additive mask, f32

    # Masked softmax over Lq (axis=1), all f32; denominator via EUP approx reciprocal.
    m1 = jnp.max(s1, axis=1, keepdims=True)
    e1 = jnp.exp(s1 - m1)
    a1 = e1 * pl.reciprocal(jnp.sum(e1, axis=1, keepdims=True), approx=True)

    # --- stage 2: ctxt_rep[b,n,d] = sum_l a1[b,l,n] * q[b,l,d]  (batched dot_general) ---
    ctxt_rep = lax.dot_general(a1.astype(compute_dtype), q_c,
                               (((1,), (1,)), ((0,), (0,))),
                               preferred_element_type=jnp.float32)  # (block_b, n_codes, D)
    ctxt_rep_c = ctxt_rep.astype(compute_dtype)

    # --- stage 3: passages attend over ctxt_rep (ctxt_rep_mask is all-ones) ---
    s2 = lax.dot_general(p_c, ctxt_rep_c, (((2,), (2,)), ((0,), (0,))),
                         preferred_element_type=jnp.float32)        # (block_b, C, n_codes)
    m2 = jnp.max(s2, axis=-1, keepdims=True)
    e2 = jnp.exp(s2 - m2)
    a2 = e2 * pl.reciprocal(jnp.sum(e2, axis=-1, keepdims=True), approx=True)

    # --- stage 4: ctxt_final[b,c,d] = sum_n a2[b,c,n] * ctxt_rep[b,n,d] ---
    ctxt_final = lax.dot_general(a2.astype(compute_dtype), ctxt_rep_c,
                                 (((2,), (1,)), ((0,), (0,))),
                                 preferred_element_type=jnp.float32)  # (block_b, C, D)

    # Lane-dense store: (block_b, C*D) with C*D a multiple of 128 (relayout rides the XLU).
    out_ref[...] = ctxt_final.reshape(block_b, C * D).astype(out_ref.dtype)


def poly_encoder_compute_score(codes, h_question, h_question_mask, h_paragraphs,
                               *, block_b=None, use_bf16_matmul=None,
                               vmem_limit_bytes=None, core_parallel=False):
    """PolyEncoderRetriever.forward() + compute_score().

    Returns (ctxt_final_rep [B, C, D], scores [B, C]).
    """
    B, Lq, D = h_question.shape
    _, C, _ = h_paragraphs.shape
    n_codes = codes.shape[0]

    if use_bf16_matmul is None:
        use_bf16_matmul = _mxu_prefers_bf16()
    compute_dtype = jnp.bfloat16 if use_bf16_matmul else jnp.float32

    # Grid collapses by default (block_b = B, one grid step).  For production/BERT-scale
    # shapes pick the largest block_b whose double-buffered per-step footprint
    # ~ 2 * block_b * (Lq*D + Lq + 2*C*D) * 4 bytes fits the scoped VMEM limit
    # (v7x: 64 MiB physical / 32 MiB default scoped; raise via vmem_limit_bytes).
    if block_b is None:
        block_b = B
    block_b = max(1, min(block_b, B))
    pad = (-B) % block_b
    Bp = B + pad

    # Additive mask bias (0 where valid, NEG_INF where padded token); padded batch rows
    # get an all-valid bias so their (discarded) softmaxes stay finite.
    bias = jnp.where(h_question_mask > 0, 0.0, NEG_INF).astype(jnp.float32)

    h_question_in, h_paragraphs_in, bias_in = h_question, h_paragraphs, bias
    if pad:
        h_question_in = jnp.pad(h_question_in, ((0, pad), (0, 0), (0, 0)))
        h_paragraphs_in = jnp.pad(h_paragraphs_in, ((0, pad), (0, 0), (0, 0)))
        bias_in = jnp.pad(bias_in, ((0, pad), (0, 0)))

    num_steps = Bp // block_b
    if num_steps > 1 and core_parallel:
        # v7x only: verify in the trace that the steps actually land on different cores.
        dim_sem = (pltpu.CORE_PARALLEL,)
    elif num_steps > 1:
        dim_sem = ("parallel",)
    else:
        dim_sem = ("arbitrary",)

    # Advisory cost estimate (4 matmuls + 2 softmaxes per batch element).
    flops = 2 * Bp * (2 * n_codes * Lq * D + 2 * C * n_codes * D)
    transcendentals = Bp * (n_codes * Lq + C * n_codes)
    bytes_accessed = 4 * (n_codes * D + Bp * (Lq * D + Lq + 2 * C * D))

    kernel = functools.partial(_poly_encoder_kernel, compute_dtype=compute_dtype)
    ctxt_flat = pl.pallas_call(
        kernel,
        out_shape=jax.ShapeDtypeStruct((Bp, C * D), jnp.float32),
        grid_spec=pltpu.PrefetchScalarGridSpec(
            num_scalar_prefetch=0,
            grid=(num_steps,),
            in_specs=[
                pl.BlockSpec((n_codes, D), lambda b: (0, 0)),         # codes (shared)
                pl.BlockSpec((block_b, Lq, D), lambda b: (b, 0, 0)),  # h_question
                pl.BlockSpec((block_b, Lq), lambda b: (b, 0)),        # additive mask bias
                pl.BlockSpec((block_b, C, D), lambda b: (b, 0, 0)),   # h_paragraphs
            ],
            out_specs=pl.BlockSpec((block_b, C * D), lambda b: (b, 0)),  # lane-dense output
        ),
        compiler_params=pltpu.CompilerParams(
            dimension_semantics=dim_sem,
            vmem_limit_bytes=vmem_limit_bytes,
        ),
        cost_estimate=pl.CostEstimate(flops=flops,
                                      transcendentals=transcendentals,
                                      bytes_accessed=bytes_accessed),
    )(codes, h_question_in, bias_in, h_paragraphs_in)

    ctxt_final = ctxt_flat[:B].reshape(B, C, D)
    # compute_score: lane-dense mul + reduce, fused with neighbors by XLA in the wrapper.
    scores = jnp.sum(ctxt_final * h_paragraphs, axis=-1)
    return ctxt_final, scores


def reference_compute_score(codes, h_question, h_question_mask, h_paragraphs,
                            compute_dtype=jnp.float32):
    """Pure-JAX reference of the same math (ParlAI BasicAttention, attn='basic').

    `compute_dtype` mimics the kernel's matmul-operand precision (f32 accumulation,
    f32 mask/softmax) so the check isolates kernel bugs rather than bf16 rounding.
    """
    cd = compute_dtype
    f32 = jnp.float32
    s1 = jnp.einsum("bld,nd->bln", h_question.astype(cd), codes.astype(cd),
                    preferred_element_type=f32)
    s1 = jnp.where(h_question_mask[:, :, None] > 0, s1, NEG_INF)
    a1 = jax.nn.softmax(s1, axis=1)
    ctxt_rep = jnp.einsum("bln,bld->bnd", a1.astype(cd), h_question.astype(cd),
                          preferred_element_type=f32)
    s2 = jnp.einsum("bcd,bnd->bcn", h_paragraphs.astype(cd), ctxt_rep.astype(cd),
                    preferred_element_type=f32)
    a2 = jax.nn.softmax(s2, axis=-1)
    ctxt_final = jnp.einsum("bcn,bnd->bcd", a2.astype(cd), ctxt_rep.astype(cd),
                            preferred_element_type=f32)
    scores = jnp.sum(ctxt_final * h_paragraphs, axis=-1)
    return ctxt_final, scores


if __name__ == "__main__":
    # hyper_params: polyencoder_type='codes', poly_n_codes=4, attention types 'basic',
    # embedding_size=64.  Small synthetic encoder outputs.
    B, Lq, C, D, N_CODES = 16, 16, 8, 64, 4

    key = jax.random.PRNGKey(0)
    k_codes, k_q, k_p, k_len = jax.random.split(key, 4)

    # Parameter: self.codes = nn.init.uniform_(torch.empty(n_codes, embed_dim))
    codes = jax.random.uniform(k_codes, (N_CODES, D), dtype=jnp.float32)

    # Synthetic encoder outputs (stand-ins for the external BERT encoders).
    h_question = jax.random.normal(k_q, (B, Lq, D), dtype=jnp.float32)
    h_paragraphs = jax.random.normal(k_p, (B, C, D), dtype=jnp.float32)
    # Attention mask with some padding at the end of each question (>=4 valid tokens).
    valid_lens = jax.random.randint(k_len, (B,), 4, Lq + 1)
    h_question_mask = (jnp.arange(Lq)[None, :] < valid_lens[:, None]).astype(jnp.float32)

    use_bf16 = _mxu_prefers_bf16()
    fn = jax.jit(functools.partial(poly_encoder_compute_score, use_bf16_matmul=use_bf16))
    ctxt_final, scores = fn(codes, h_question, h_question_mask, h_paragraphs)
    jax.block_until_ready(scores)

    ref_dtype = jnp.bfloat16 if use_bf16 else jnp.float32
    ref_ctxt, ref_scores = reference_compute_score(
        codes, h_question, h_question_mask, h_paragraphs, compute_dtype=ref_dtype)
    # Tolerance covers the EUP approx-reciprocal softmax denominator + accumulation order.
    assert jnp.allclose(ctxt_final, ref_ctxt, atol=3e-2, rtol=3e-2), "ctxt_final mismatch"
    assert jnp.allclose(scores, ref_scores, atol=3e-2, rtol=3e-2), "scores mismatch"

    print("KERNEL_OK")
</pallas_src>

<mosaic_0001>
module attributes {stable_mosaic.version = 11 : i64} {
  func.func @_poly_encoder_kernel(%arg0: i32, %arg1: memref<4x64xf32, #tpu.memory_space<vmem>>, %arg2: memref<16x16x64xf32, #tpu.memory_space<vmem>>, %arg3: memref<16x16xf32, #tpu.memory_space<vmem>>, %arg4: memref<16x8x64xf32, #tpu.memory_space<vmem>>, %arg5: memref<16x512xf32, #tpu.memory_space<vmem>>) attributes {dimension_semantics = [#tpu.dimension_semantics<arbitrary>], iteration_bounds = array<i64: 1>, scalar_prefetch = 0 : i64, scratch_operands = 0 : i64, tpu.core_type = #tpu.core_type<tc>, window_params = [{pipeline_mode = #tpu.pipeline_mode<synchronous>, transform_indices = @transform_0, window_bounds = array<i64: 4, 64>}, {transform_indices = @transform_1, window_bounds = array<i64: 16, 16, 64>}, {transform_indices = @transform_2, window_bounds = array<i64: 16, 16>}, {transform_indices = @transform_3, window_bounds = array<i64: 16, 8, 64>}, {transform_indices = @transform_4, window_bounds = array<i64: 16, 512>}]} {
    %c0 = arith.constant 0 : index
    %c0_0 = arith.constant 0 : index
    %0 = vector.load %arg1[%c0, %c0_0] : memref<4x64xf32, #tpu.memory_space<vmem>>, vector<4x64xf32>
    %c0_1 = arith.constant 0 : index
    %c0_2 = arith.constant 0 : index
    %c0_3 = arith.constant 0 : index
    %1 = vector.load %arg2[%c0_1, %c0_2, %c0_3] : memref<16x16x64xf32, #tpu.memory_space<vmem>>, vector<16x16x64xf32>
    %c0_4 = arith.constant 0 : index
    %c0_5 = arith.constant 0 : index
    %c0_6 = arith.constant 0 : index
    %2 = vector.load %arg4[%c0_4, %c0_5, %c0_6] : memref<16x8x64xf32, #tpu.memory_space<vmem>>, vector<16x8x64xf32>
    %c0_7 = arith.constant 0 : index
    %c0_8 = arith.constant 0 : index
    %3 = vector.load %arg3[%c0_7, %c0_8] : memref<16x16xf32, #tpu.memory_space<vmem>>, vector<16x16xf32>
    %4 = vector.shape_cast %1 : vector<16x16x64xf32> to vector<256x64xf32>
    %cst = arith.constant dense<0.000000e+00> : vector<256x4xf32>
    %5 = tpu.matmul %4, %0, %cst {dimension_numbers = #tpu.dot_dimension_numbers<[1], [1], [0], [0], [0, 0, 1, 0], [], []>} : vector<256x64xf32>, vector<4x64xf32>, vector<256x4xf32> -> vector<256x4xf32>
    %6 = vector.shape_cast %5 : vector<256x4xf32> to vector<16x16x4xf32>
    %7 = vector.shape_cast %3 : vector<16x16xf32> to vector<16x16x1xf32>
    %8 = vector.broadcast %7 : vector<16x16x1xf32> to vector<16x16x4xf32>
    %9 = arith.addf %6, %8 : vector<16x16x4xf32>
    %cst_9 = arith.constant dense<0xFF800000> : vector<16x4xf32>
    %10 = vector.multi_reduction <maximumf>, %9, %cst_9 [1] : vector<16x16x4xf32> to vector<16x4xf32>
    %11 = vector.shape_cast %10 : vector<16x4xf32> to vector<16x1x4xf32>
    %12 = vector.broadcast %11 : vector<16x1x4xf32> to vector<16x16x4xf32>
    %13 = arith.subf %9, %12 : vector<16x16x4xf32>
    %14 = math.exp %13 : vector<16x16x4xf32>
    %cst_10 = arith.constant dense<0.000000e+00> : vector<16x4xf32>
    %15 = vector.multi_reduction <add>, %14, %cst_10 [1] : vector<16x16x4xf32> to vector<16x4xf32>
    %16 = vector.shape_cast %15 : vector<16x4xf32> to vector<16x1x4xf32>
    %17 = tpu.reciprocal %16 {approx = true} : vector<16x1x4xf32> -> vector<16x1x4xf32>
    %18 = vector.broadcast %17 : vector<16x1x4xf32> to vector<16x16x4xf32>
    %19 = arith.mulf %14, %18 : vector<16x16x4xf32>
    %cst_11 = arith.constant dense<0.000000e+00> : vector<16x4x64xf32>
    %20 = tpu.matmul %19, %1, %cst_11 {dimension_numbers = #tpu.dot_dimension_numbers<[1], [1], [2], [2], [0, 0, 0, 2, 1, 2], [0], [0]>} : vector<16x16x4xf32>, vector<16x16x64xf32>, vector<16x4x64xf32> -> vector<16x4x64xf32>
    %cst_12 = arith.constant dense<0.000000e+00> : vector<16x8x4xf32>
    %21 = tpu.matmul %2, %20, %cst_12 {dimension_numbers = #tpu.dot_dimension_numbers<[2], [2], [1], [1], [0, 0, 0, 1, 1, 1], [0], [0]>} : vector<16x8x64xf32>, vector<16x4x64xf32>, vector<16x8x4xf32> -> vector<16x8x4xf32>
    %cst_13 = arith.constant dense<0xFF800000> : vector<16x8xf32>
    %22 = vector.multi_reduction <maximumf>, %21, %cst_13 [2] : vector<16x8x4xf32> to vector<16x8xf32>
    %23 = vector.shape_cast %22 : vector<16x8xf32> to vector<16x8x1xf32>
    %24 = vector.broadcast %23 : vector<16x8x1xf32> to vector<16x8x4xf32>
    %25 = arith.subf %21, %24 : vector<16x8x4xf32>
    %26 = math.exp %25 : vector<16x8x4xf32>
    %cst_14 = arith.constant dense<0.000000e+00> : vector<16x8xf32>
    %27 = vector.multi_reduction <add>, %26, %cst_14 [2] : vector<16x8x4xf32> to vector<16x8xf32>
    %28 = vector.shape_cast %27 : vector<16x8xf32> to vector<16x8x1xf32>
    %29 = tpu.reciprocal %28 {approx = true} : vector<16x8x1xf32> -> vector<16x8x1xf32>
    %30 = vector.broadcast %29 : vector<16x8x1xf32> to vector<16x8x4xf32>
    %31 = arith.mulf %26, %30 : vector<16x8x4xf32>
    %cst_15 = arith.constant dense<0.000000e+00> : vector<16x8x64xf32>
    %32 = tpu.matmul %31, %20, %cst_15 {dimension_numbers = #tpu.dot_dimension_numbers<[2], [1], [1], [2], [0, 0, 0, 1, 1, 2], [0], [0]>} : vector<16x8x4xf32>, vector<16x4x64xf32>, vector<16x8x64xf32> -> vector<16x8x64xf32>
    %33 = vector.shape_cast %32 : vector<16x8x64xf32> to vector<16x512xf32>
    %c0_16 = arith.constant 0 : index
    %c0_17 = arith.constant 0 : index
    %34 = vector.load %arg5[%c0_16, %c0_17] : memref<16x512xf32, #tpu.memory_space<vmem>>, vector<16x512xf32>
    tpu.vector_store %arg5[%c0_16, %c0_17], %33 {strides = array<i32>} : memref<16x512xf32, #tpu.memory_space<vmem>>, vector<16x512xf32>,
    return
  }
  func.func @transform_0(%arg0: i32) -> (i32, i32) {
    %c0_i32 = arith.constant 0 : i32
    %c0_i32_0 = arith.constant 0 : i32
    %c0_i32_1 = arith.constant 0 : i32
    return %c0_i32, %c0_i32_0 : i32, i32
  }
  func.func @transform_1(%arg0: i32) -> (i32, i32, i32) {
    %c0_i32 = arith.constant 0 : i32
    %c0_i32_0 = arith.constant 0 : i32
    %c0_i32_1 = arith.constant 0 : i32
    return %arg0, %c0_i32, %c0_i32_0 : i32, i32, i32
  }
  func.func @transform_2(%arg0: i32) -> (i32, i32) {
    %c0_i32 = arith.constant 0 : i32
    %c0_i32_0 = arith.constant 0 : i32
    return %arg0, %c0_i32 : i32, i32
  }
  func.func @transform_3(%arg0: i32) -> (i32, i32, i32) {
    %c0_i32 = arith.constant 0 : i32
    %c0_i32_0 = arith.constant 0 : i32
    %c0_i32_1 = arith.constant 0 : i32
    return %arg0, %c0_i32, %c0_i32_0 : i32, i32, i32
  }
  func.func @transform_4(%arg0: i32) -> (i32, i32) {
    %c0_i32 = arith.constant 0 : i32
    %c0_i32_0 = arith.constant 0 : i32
    return %arg0, %c0_i32 : i32, i32
  }
}

</mosaic_0001>

<llo_original>
// kernel: poly_encoder_compute_score.1
$region0: #{poly_encoder_compute_score.1}
  #allocation0 [shape = 'u32[]', space=smem, size = 0x4, offset = 0x4, fixed_abs, tag = 'smem constant byte address 0x4 - core index']
  #allocation1 [shape = 'u32[144,128]{1,0:T(1,128)}', space=vmem, size = 0x12000, scoped, tag = 'internal scratch']
  %s0 = inlined_call_operand.vmem [shape: f32[4,64], index: 0, kind: input, shape index: {}]
  %s1 = inlined_call_operand.hbm [shape: f32[16,16,64], index: 1, kind: input, shape index: {}]
  %s2 = inlined_call_operand.vmem [shape: f32[16,16], index: 2, kind: input, shape index: {}]
  %s3 = inlined_call_operand.hbm [shape: f32[16,8,64], index: 3, kind: input, shape index: {}]
  %s4 = inlined_call_operand.vmem [shape: f32[16,512], index: 4, kind: output, shape index: {}]
  %s5 = sld [smem:[#allocation0]]
  $region34: #{poly_encoder_compute_score.1} parent=0
    _
  %s7 = ssub.s32 1, %s5
  %s8 = scalar_select 0, %s7, %s5
  $region1: #{poly_encoder_compute_score.1} parent=0
    #allocation2 [shape = 'u8[131072]{0}', space=vmem, size = 0x20000, scoped, tag = 'input window, operand 1, single buffered']
    #allocation3 [shape = 's32[1]{0}', space=sflag, size = 0x4, scoped, tag = 'scoped memory for poly_encoder_compute_score.1']
    #allocation4 [shape = 'u8[65536]{0}', space=vmem, size = 0x10000, scoped, tag = 'input window, operand 3, single buffered']
    #allocation5 [shape = 's32[1]{0}', space=sflag, size = 0x4, scoped, tag = 'scoped memory for poly_encoder_compute_score.1']
    %9 = vsyncpa [#allocation3], 0
    %10 = vsyncpa [#allocation5], 0
    // Predicated region
    $region2: #{poly_encoder_compute_score.1} parent=1 // pred_check
      _
    $region3: #{poly_encoder_compute_score.1} parent=1 // pred_check_branch
      %12 = sbr.rel (0) target = $region5
    $region4: #{poly_encoder_compute_score.1} parent=1 // pred_region
      _
    $region5: #{poly_encoder_compute_score.1} parent=1 // pred_fallthru
      _
    // Predicated region
    $region6: #{poly_encoder_compute_score.1} parent=1 // pred_check
      _
    $region7: #{poly_encoder_compute_score.1} parent=1 // pred_check_branch
      %14 = sbr.rel (0) target = $region9
    $region8: #{poly_encoder_compute_score.1} parent=1 // pred_region
      %s16 = ssub.s32 4096, 4096
      %17 = vsyncadd [#allocation3], %s16
      %s18 = sshll.u32 [#allocation2], 4
      %s19 = int_to_ptr.vmem [resolvable:$true] %s18
      %24 = dma.hbm_to_vmem [thread:$0]  %s1, 4096, %s19, [#allocation3], 128, 128, 8
    $region9: #{poly_encoder_compute_score.1} parent=1 // pred_fallthru
      _
    // Predicated region
    $region10: #{poly_encoder_compute_score.1} parent=1 // pred_check
      _
    $region11: #{poly_encoder_compute_score.1} parent=1 // pred_check_branch
      %26 = sbr.rel (0) target = $region13
    $region12: #{poly_encoder_compute_score.1} parent=1 // pred_region
      _
    $region13: #{poly_encoder_compute_score.1} parent=1 // pred_fallthru
      _
    // Predicated region
    $region14: #{poly_encoder_compute_score.1} parent=1 // pred_check
      _
    $region15: #{poly_encoder_compute_score.1} parent=1 // pred_check_branch
      %28 = sbr.rel (0) target = $region17
    $region16: #{poly_encoder_compute_score.1} parent=1 // pred_region
      %s30 = ssub.s32 2048, 2048
      %31 = vsyncadd [#allocation5], %s30
      %s32 = sshll.u32 [#allocation4], 4
      %s33 = int_to_ptr.vmem [resolvable:$true] %s32
      %38 = dma.hbm_to_vmem [thread:$0]  %s3, 2048, %s33, [#allocation5], 128, 128, 8
    $region17: #{poly_encoder_compute_score.1} parent=1 // pred_fallthru
      _
    // Predicated region
    $region18: #{poly_encoder_compute_score.1} parent=1 // pred_check
      _
    $region19: #{poly_encoder_compute_score.1} parent=1 // pred_check_branch
      %40 = sbr.rel (0) target = $region21
    $region20: #{poly_encoder_compute_score.1} parent=1 // pred_region
      %41 = dma.done [#allocation3], 4096
    $region21: #{poly_encoder_compute_score.1} parent=1 // pred_fallthru
      _
    // Predicated region
    $region22: #{poly_encoder_compute_score.1} parent=1 // pred_check
      _
    $region23: #{poly_encoder_compute_score.1} parent=1 // pred_check_branch
      %43 = sbr.rel (0) target = $region25
    $region24: #{poly_encoder_compute_score.1} parent=1 // pred_region
      %44 = dma.done [#allocation5], 2048
    $region25: #{poly_encoder_compute_score.1} parent=1 // pred_fallthru
      _
    %v45 = vld [vmem:[%s0] sm:$0xf]
    %v46 = vld [vmem:[#allocation2] sm:$0xff]
    %v47 = vld [vmem:[#allocation2 + $0x8] sm:$0xff]
    %v48 = vld [vmem:[#allocation2 + $0x10] sm:$0xff]
    %v49 = vld [vmem:[#allocation2 + $0x18] sm:$0xff]
    %v50 = vld [vmem:[#allocation2 + $0x20] sm:$0xff]
    %v51 = vld [vmem:[#allocation2 + $0x28] sm:$0xff]
    %v52 = vld [vmem:[#allocation2 + $0x30] sm:$0xff]
    %v53 = vld [vmem:[#allocation2 + $0x38] sm:$0xff]
    %v54 = vld [vmem:[#allocation2 + $0x40] sm:$0xff]
    %v55 = vld [vmem:[#allocation2 + $0x48] sm:$0xff]
    %v56 = vld [vmem:[#allocation2 + $0x50] sm:$0xff]
    %v57 = vld [vmem:[#allocation2 + $0x58] sm:$0xff]
    %v58 = vld [vmem:[#allocation2 + $0x60] sm:$0xff]
    %v59 = vld [vmem:[#allocation2 + $0x68] sm:$0xff]
    %v60 = vld [vmem:[#allocation2 + $0x70] sm:$0xff]
    %v61 = vld [vmem:[#allocation2 + $0x78] sm:$0xff]
    %v62 = vld [vmem:[#allocation2 + $0x80] sm:$0xff]
    %v63 = vld [vmem:[#allocation2 + $0x88] sm:$0xff]
    %v64 = vld [vmem:[#allocation2 + $0x90] sm:$0xff]
    %v65 = vld [vmem:[#allocation2 + $0x98] sm:$0xff]
    %v66 = vld [vmem:[#allocation2 + $0xa0] sm:$0xff]
    %v67 = vld [vmem:[#allocation2 + $0xa8] sm:$0xff]
    %v68 = vld [vmem:[#allocation2 + $0xb0] sm:$0xff]
    %v69 = vld [vmem:[#allocation2 + $0xb8] sm:$0xff]
    %v70 = vld [vmem:[#allocation2 + $0xc0] sm:$0xff]
    %v71 = vld [vmem:[#allocation2 + $0xc8] sm:$0xff]
    %v72 = vld [vmem:[#allocation2 + $0xd0] sm:$0xff]
    %v73 = vld [vmem:[#allocation2 + $0xd8] sm:$0xff]
    %v74 = vld [vmem:[#allocation2 + $0xe0] sm:$0xff]
    %v75 = vld [vmem:[#allocation2 + $0xe8] sm:$0xff]
    %v76 = vld [vmem:[#allocation2 + $0xf0] sm:$0xff]
    %v77 = vld [vmem:[#allocation2 + $0xf8] sm:$0xff]
    %v78 = vld [vmem:[#allocation4] sm:$0xff]
    %v79 = vld [vmem:[#allocation4 + $0x8] sm:$0xff]
    %v80 = vld [vmem:[#allocation4 + $0x10] sm:$0xff]
    %v81 = vld [vmem:[#allocation4 + $0x18] sm:$0xff]
    %v82 = vld [vmem:[#allocation4 + $0x20] sm:$0xff]
    %v83 = vld [vmem:[#allocation4 + $0x28] sm:$0xff]
    %v84 = vld [vmem:[#allocation4 + $0x30] sm:$0xff]
    %v85 = vld [vmem:[#allocation4 + $0x38] sm:$0xff]
    %v86 = vld [vmem:[#allocation4 + $0x40] sm:$0xff]
    %v87 = vld [vmem:[#allocation4 + $0x48] sm:$0xff]
    %v88 = vld [vmem:[#allocation4 + $0x50] sm:$0xff]
    %v89 = vld [vmem:[#allocation4 + $0x58] sm:$0xff]
    %v90 = vld [vmem:[#allocation4 + $0x60] sm:$0xff]
    %v91 = vld [vmem:[#allocation4 + $0x68] sm:$0xff]
    %v92 = vld [vmem:[#allocation4 + $0x70] sm:$0xff]
    %v93 = vld [vmem:[#allocation4 + $0x78] sm:$0xff]
    %v94 = vld [vmem:[%s2] sm:$0xff]
    %v95 = vld [vmem:[%s2 + $0x8] sm:$0xff]
    %vm96 = vcmask 523264
    %v98 = vsel %vm96, %v46, 0
    %v101 = vsel %vm96, %v47, 0
    %v104 = vsel %vm96, %v48, 0
    %v107 = vsel %vm96, %v49, 0
    %v110 = vsel %vm96, %v50, 0
    %v113 = vsel %vm96, %v51, 0
    %v116 = vsel %vm96, %v52, 0
    %v119 = vsel %vm96, %v53, 0
    %v122 = vsel %vm96, %v54, 0
    %v125 = vsel %vm96, %v55, 0
    %v128 = vsel %vm96, %v56, 0
    %v131 = vsel %vm96, %v57, 0
    %v134 = vsel %vm96, %v58, 0
    %v137 = vsel %vm96, %v59, 0
    %v140 = vsel %vm96, %v60, 0
    %v143 = vsel %vm96, %v61, 0
    %v146 = vsel %vm96, %v62, 0
    %v149 = vsel %vm96, %v63, 0
    %v152 = vsel %vm96, %v64, 0
    %v155 = vsel %vm96, %v65, 0
    %v158 = vsel %vm96, %v66, 0
    %v161 = vsel %vm96, %v67, 0
    %v164 = vsel %vm96, %v68, 0
    %v167 = vsel %vm96, %v69, 0
    %v170 = vsel %vm96, %v70, 0
    %v173 = vsel %vm96, %v71, 0
    %v176 = vsel %vm96, %v72, 0
    %v179 = vsel %vm96, %v73, 0
    %v182 = vsel %vm96, %v74, 0
    %v185 = vsel %vm96, %v75, 0
    %v188 = vsel %vm96, %v76, 0
    %v191 = vsel %vm96, %v77, 0
    %v194 = vsel %vm96, %v45, 0
    %196 = vmatprep.subr.mxu0 0.0
    %197 = vmatpush1.xpose.msra.mxu0 %v194
    %198 = vmatprep.subr.mxu0 0.0
    %199 = vmatpush1.xpose.msra.mxu0 0.0
    %200 = vmatprep.subr.mxu0 0.0
    %201 = vmatpush1.xpose.msra.mxu0 0.0
    %202 = vmatprep.subr.mxu0 0.0
    %203 = vmatpush1.xpose.msra.mxu0 0.0
    %204 = vmatprep.subr.mxu0 0.0
    %205 = vmatpush1.xpose.msra.mxu0 0.0
    %206 = vmatprep.subr.mxu0 0.0
    %207 = vmatpush1.xpose.msra.mxu0 0.0
    %208 = vmatprep.subr.mxu0 0.0
    %209 = vmatpush1.xpose.msra.mxu0 0.0
    %210 = vmatprep.subr.mxu0 0.0
    %211 = vmatpush1.xpose.msra.mxu0 0.0
    %212 = vmatprep.subr.mxu0 0.0
    %213 = vmatpush1.xpose.msra.mxu0 0.0
    %214 = vmatprep.subr.mxu0 0.0
    %215 = vmatpush1.xpose.msra.mxu0 0.0
    %216 = vmatprep.subr.mxu0 0.0
    %217 = vmatpush1.xpose.msra.mxu0 0.0
    %218 = vmatprep.subr.mxu0 0.0
    %219 = vmatpush1.xpose.msra.mxu0 0.0
    %220 = vmatprep.subr.mxu0 0.0
    %221 = vmatpush1.xpose.msra.mxu0 0.0
    %222 = vmatprep.subr.mxu0 0.0
    %223 = vmatpush1.xpose.msra.mxu0 0.0
    %224 = vmatprep.subr.mxu0 0.0
    %225 = vmatpush1.xpose.msra.mxu0 0.0
    %226 = vmatprep.subr.mxu0 0.0
    %227 = vmatpush1.xpose.msra.mxu0 0.0
    %228 = vmatprep.subr.mxu0 0.0
    %229 = vmatpush1.xpose.msra.mxu0 0.0
    %230 = vmatprep.subr.mxu0 0.0
    %231 = vmatpush1.xpose.msra.mxu0 0.0
    %232 = vmatprep.subr.mxu0 0.0
    %233 = vmatpush1.xpose.msra.mxu0 0.0
    %234 = vmatprep.subr.mxu0 0.0
    %235 = vmatpush1.xpose.msra.mxu0 0.0
    %236 = vmatprep.subr.mxu0 0.0
    %237 = vmatpush1.xpose.msra.mxu0 0.0
    %238 = vmatprep.subr.mxu0 0.0
    %239 = vmatpush1.xpose.msra.mxu0 0.0
    %240 = vmatprep.subr.mxu0 0.0
    %241 = vmatpush1.xpose.msra.mxu0 0.0
    %242 = vmatprep.subr.mxu0 0.0
    %243 = vmatpush1.xpose.msra.mxu0 0.0
    %244 = vmatprep.subr.mxu0 0.0
    %245 = vmatpush1.xpose.msra.mxu0 0.0
    %246 = vmatprep.subr.mxu0 0.0
    %247 = vmatpush1.xpose.msra.mxu0 0.0
    %248 = vmatprep.subr.mxu0 0.0
    %249 = vmatpush1.xpose.msra.mxu0 0.0
    %250 = vmatprep.subr.mxu0 0.0
    %251 = vmatpush1.xpose.msra.mxu0 0.0
    %252 = vmatprep.subr.mxu0 0.0
    %253 = vmatpush1.xpose.msra.mxu0 0.0
    %254 = vmatprep.subr.mxu0 0.0
    %255 = vmatpush1.xpose.msra.mxu0 0.0
    %256 = vmatprep.subr.mxu0 0.0
    %257 = vmatpush1.xpose.msra.mxu0 0.0
    %258 = vmatprep.subr.mxu0 0.0
    %259 = vmatpush1.xpose.msra.mxu0 0.0
    %260 = vmatprep.mubr.f32.mxu0 0.0
    %261 = vmatmul.mubr.f32.gmra.mrb[0].mxu0 %v98
    %v262 = vpop.f32.mrb[0].mxu0
    %v263 = vadd.f32 0.0, %v262
    %v264 = vpop.f32.mrb[0].mxu0
    %265 = vmatprep.mubr.f32.mxu0 0.0
    %266 = vmatmul.mubr.f32.gmra.mrb[0].mxu0 %v101
    %v267 = vpop.f32.mrb[0].mxu0
    %v268 = vadd.f32 0.0, %v267
    %v269 = vpop.f32.mrb[0].mxu0
    %270 = vmatprep.mubr.f32.mxu0 0.0
    %271 = vmatmul.mubr.f32.gmra.mrb[0].mxu0 %v104
    %v272 = vpop.f32.mrb[0].mxu0
    %v273 = vadd.f32 0.0, %v272
    %v274 = vpop.f32.mrb[0].mxu0
    %275 = vmatprep.mubr.f32.mxu0 0.0
    %276 = vmatmul.mubr.f32.gmra.mrb[0].mxu0 %v107
    %v277 = vpop.f32.mrb[0].mxu0
    %v278 = vadd.f32 0.0, %v277
    %v279 = vpop.f32.mrb[0].mxu0
    %280 = vmatprep.mubr.f32.mxu0 0.0
    %281 = vmatmul.mubr.f32.gmra.mrb[0].mxu0 %v110
    %v282 = vpop.f32.mrb[0].mxu0
    %v283 = vadd.f32 0.0, %v282
    %v284 = vpop.f32.mrb[0].mxu0
    %285 = vmatprep.mubr.f32.mxu0 0.0
    %286 = vmatmul.mubr.f32.gmra.mrb[0].mxu0 %v113
    %v287 = vpop.f32.mrb[0].mxu0
    %v288 = vadd.f32 0.0, %v287
    %v289 = vpop.f32.mrb[0].mxu0
    %290 = vmatprep.mubr.f32.mxu0 0.0
    %291 = vmatmul.mubr.f32.gmra.mrb[0].mxu0 %v116
    %v292 = vpop.f32.mrb[0].mxu0
    %v293 = vadd.f32 0.0, %v292
    %v294 = vpop.f32.mrb[0].mxu0
    %295 = vmatprep.mubr.f32.mxu0 0.0
    %296 = vmatmul.mubr.f32.gmra.mrb[0].mxu0 %v119
    %v297 = vpop.f32.mrb[0].mxu0
    %v298 = vadd.f32 0.0, %v297
    %v299 = vpop.f32.mrb[0].mxu0
    %300 = vmatprep.mubr.f32.mxu0 0.0
    %301 = vmatmul.mubr.f32.gmra.mrb[0].mxu0 %v122
    %v302 = vpop.f32.mrb[0].mxu0
    %v303 = vadd.f32 0.0, %v302
    %v304 = vpop.f32.mrb[0].mxu0
    %305 = vmatprep.mubr.f32.mxu0 0.0
    %306 = vmatmul.mubr.f32.gmra.mrb[0].mxu0 %v125
    %v307 = vpop.f32.mrb[0].mxu0
    %v308 = vadd.f32 0.0, %v307
    %v309 = vpop.f32.mrb[0].mxu0
    %310 = vmatprep.mubr.f32.mxu0 0.0
    %311 = vmatmul.mubr.f32.gmra.mrb[0].mxu0 %v128
    %v312 = vpop.f32.mrb[0].mxu0
    %v313 = vadd.f32 0.0, %v312
    %v314 = vpop.f32.mrb[0].mxu0
    %315 = vmatprep.mubr.f32.mxu0 0.0
    %316 = vmatmul.mubr.f32.gmra.mrb[0].mxu0 %v131
    %v317 = vpop.f32.mrb[0].mxu0
    %v318 = vadd.f32 0.0, %v317
    %v319 = vpop.f32.mrb[0].mxu0
    %320 = vmatprep.mubr.f32.mxu0 0.0
    %321 = vmatmul.mubr.f32.gmra.mrb[0].mxu0 %v134
    %v322 = vpop.f32.mrb[0].mxu0
    %v323 = vadd.f32 0.0, %v322
    %v324 = vpop.f32.mrb[0].mxu0
    %325 = vmatprep.mubr.f32.mxu0 0.0
    %326 = vmatmul.mubr.f32.gmra.mrb[0].mxu0 %v137
    %v327 = vpop.f32.mrb[0].mxu0
    %v328 = vadd.f32 0.0, %v327
    %v329 = vpop.f32.mrb[0].mxu0
    %330 = vmatprep.mubr.f32.mxu0 0.0
    %331 = vmatmul.mubr.f32.gmra.mrb[0].mxu0 %v140
    %v332 = vpop.f32.mrb[0].mxu0
    %v333 = vadd.f32 0.0, %v332
    %v334 = vpop.f32.mrb[0].mxu0
    %335 = vmatprep.mubr.f32.mxu0 0.0
    %336 = vmatmul.mubr.f32.gmra.mrb[0].mxu0 %v143
    %v337 = vpop.f32.mrb[0].mxu0
    %v338 = vadd.f32 0.0, %v337
    %v339 = vpop.f32.mrb[0].mxu0
    %340 = vmatprep.mubr.f32.mxu0 0.0
    %341 = vmatmul.mubr.f32.gmra.mrb[0].mxu0 %v146
    %v342 = vpop.f32.mrb[0].mxu0
    %v343 = vadd.f32 0.0, %v342
    %v344 = vpop.f32.mrb[0].mxu0
    %345 = vmatprep.mubr.f32.mxu0 0.0
    %346 = vmatmul.mubr.f32.gmra.mrb[0].mxu0 %v149
    %v347 = vpop.f32.mrb[0].mxu0
    %v348 = vadd.f32 0.0, %v347
    %v349 = vpop.f32.mrb[0].mxu0
    %350 = vmatprep.mubr.f32.mxu0 0.0
    %351 = vmatmul.mubr.f32.gmra.mrb[0].mxu0 %v152
    %v352 = vpop.f32.mrb[0].mxu0
    %v353 = vadd.f32 0.0, %v352
    %v354 = vpop.f32.mrb[0].mxu0
    %355 = vmatprep.mubr.f32.mxu0 0.0
    %356 = vmatmul.mubr.f32.gmra.mrb[0].mxu0 %v155
    %v357 = vpop.f32.mrb[0].mxu0
    %v358 = vadd.f32 0.0, %v357
    %v359 = vpop.f32.mrb[0].mxu0
    %360 = vmatprep.mubr.f32.mxu0 0.0
    %361 = vmatmul.mubr.f32.gmra.mrb[0].mxu0 %v158
    %v362 = vpop.f32.mrb[0].mxu0
    %v363 = vadd.f32 0.0, %v362
    %v364 = vpop.f32.mrb[0].mxu0
    %365 = vmatprep.mubr.f32.mxu0 0.0
    %366 = vmatmul.mubr.f32.gmra.mrb[0].mxu0 %v161
    %v367 = vpop.f32.mrb[0].mxu0
    %v368 = vadd.f32 0.0, %v367
    %v369 = vpop.f32.mrb[0].mxu0
    %370 = vmatprep.mubr.f32.mxu0 0.0
    %371 = vmatmul.mubr.f32.gmra.mrb[0].mxu0 %v164
    %v372 = vpop.f32.mrb[0].mxu0
    %v373 = vadd.f32 0.0, %v372
    %v374 = vpop.f32.mrb[0].mxu0
    %375 = vmatprep.mubr.f32.mxu0 0.0
    %376 = vmatmul.mubr.f32.gmra.mrb[0].mxu0 %v167
    %v377 = vpop.f32.mrb[0].mxu0
    %v378 = vadd.f32 0.0, %v377
    %v379 = vpop.f32.mrb[0].mxu0
    %380 = vmatprep.mubr.f32.mxu0 0.0
    %381 = vmatmul.mubr.f32.gmra.mrb[0].mxu0 %v170
    %v382 = vpop.f32.mrb[0].mxu0
    %v383 = vadd.f32 0.0, %v382
    %v384 = vpop.f32.mrb[0].mxu0
    %385 = vmatprep.mubr.f32.mxu0 0.0
    %386 = vmatmul.mubr.f32.gmra.mrb[0].mxu0 %v173
    %v387 = vpop.f32.mrb[0].mxu0
    %v388 = vadd.f32 0.0, %v387
    %v389 = vpop.f32.mrb[0].mxu0
    %390 = vmatprep.mubr.f32.mxu0 0.0
    %391 = vmatmul.mubr.f32.gmra.mrb[0].mxu0 %v176
    %v392 = vpop.f32.mrb[0].mxu0
    %v393 = vadd.f32 0.0, %v392
    %v394 = vpop.f32.mrb[0].mxu0
    %395 = vmatprep.mubr.f32.mxu0 0.0
    %396 = vmatmul.mubr.f32.gmra.mrb[0].mxu0 %v179
    %v397 = vpop.f32.mrb[0].mxu0
    %v398 = vadd.f32 0.0, %v397
    %v399 = vpop.f32.mrb[0].mxu0
    %400 = vmatprep.mubr.f32.mxu0 0.0
    %401 = vmatmul.mubr.f32.gmra.mrb[0].mxu0 %v182
    %v402 = vpop.f32.mrb[0].mxu0
    %v403 = vadd.f32 0.0, %v402
    %v404 = vpop.f32.mrb[0].mxu0
    %405 = vmatprep.mubr.f32.mxu0 0.0
    %406 = vmatmul.mubr.f32.gmra.mrb[0].mxu0 %v185
    %v407 = vpop.f32.mrb[0].mxu0
    %v408 = vadd.f32 0.0, %v407
    %v409 = vpop.f32.mrb[0].mxu0
    %410 = vmatprep.mubr.f32.mxu0 0.0
    %411 = vmatmul.mubr.f32.gmra.mrb[0].mxu0 %v188
    %v412 = vpop.f32.mrb[0].mxu0
    %v413 = vadd.f32 0.0, %v412
    %v414 = vpop.f32.mrb[0].mxu0
    %415 = vmatprep.mubr.f32.mxu0 0.0
    %416 = vmatmul.mubr.f32.gmra.mrb[0].mxu0 %v191
    %v417 = vpop.f32.mrb[0].mxu0
    %v418 = vadd.f32 0.0, %v417
    %v419 = vpop.f32.mrb[0].mxu0
    %420 = vdwg.mxu0
    %v421 = vlaneseq
    %v422 = vshrl.u32 %v421, 7
    %v423 = vsub.s32 0, %v422
    %v424 = vrot.slane %v94, %v423
    %426 = vbcast.lane.b32.xlu0 %v424, 256
    %v427 = vpop.permute.xlu0 %426
    %s429 = sor.u32 256, 8
    %430 = vbcast.lane.b32.xlu0 %v424, %s429
    %v431 = vpop.permute.xlu0 %430
    %v432 = vlaneseq
    %v433 = vshrl.u32 %v432, 7
    %v434 = vsub.s32 1, %v433
    %v435 = vrot.slane %v94, %v434
    %437 = vbcast.lane.b32.xlu0 %v435, 256
    %v438 = vpop.permute.xlu0 %437
    %s440 = sor.u32 256, 8
    %441 = vbcast.lane.b32.xlu0 %v435, %s440
    %v442 = vpop.permute.xlu0 %441
    %v443 = vlaneseq
    %v444 = vshrl.u32 %v443, 7
    %v445 = vsub.s32 2, %v444
    %v446 = vrot.slane %v94, %v445
    %448 = vbcast.lane.b32.xlu0 %v446, 256
    %v449 = vpop.permute.xlu0 %448
    %s451 = sor.u32 256, 8
    %452 = vbcast.lane.b32.xlu0 %v446, %s451
    %v453 = vpop.permute.xlu0 %452
    %v454 = vlaneseq
    %v455 = vshrl.u32 %v454, 7
    %v456 = vsub.s32 3, %v455
    %v457 = vrot.slane %v94, %v456
    %459 = vbcast.lane.b32.xlu0 %v457, 256
    %v460 = vpop.permute.xlu0 %459
    %s462 = sor.u32 256, 8
    %463 = vbcast.lane.b32.xlu0 %v457, %s462
    %v464 = vpop.permute.xlu0 %463
    %v465 = vlaneseq
    %v466 = vshrl.u32 %v465, 7
    %v467 = vsub.s32 4, %v466
    %v468 = vrot.slane %v94, %v467
    %470 = vbcast.lane.b32.xlu0 %v468, 256
    %v471 = vpop.permute.xlu0 %470
    %s473 = sor.u32 256, 8
    %474 = vbcast.lane.b32.xlu0 %v468, %s473
    %v475 = vpop.permute.xlu0 %474
    %v476 = vlaneseq
    %v477 = vshrl.u32 %v476, 7
    %v478 = vsub.s32 5, %v477
    %v479 = vrot.slane %v94, %v478
    %481 = vbcast.lane.b32.xlu0 %v479, 256
    %v482 = vpop.permute.xlu0 %481
    %s484 = sor.u32 256, 8
    %485 = vbcast.lane.b32.xlu0 %v479, %s484
    %v486 = vpop.permute.xlu0 %485
    %v487 = vlaneseq
    %v488 = vshrl.u32 %v487, 7
    %v489 = vsub.s32 6, %v488
    %v490 = vrot.slane %v94, %v489
    %492 = vbcast.lane.b32.xlu0 %v490, 256
    %v493 = vpop.permute.xlu0 %492
    %s495 = sor.u32 256, 8
    %496 = vbcast.lane.b32.xlu0 %v490, %s495
    %v497 = vpop.permute.xlu0 %496
    %v498 = vlaneseq
    %v499 = vshrl.u32 %v498, 7
    %v500 = vsub.s32 7, %v499
    %v501 = vrot.slane %v94, %v500
    %503 = vbcast.lane.b32.xlu0 %v501, 256
    %v504 = vpop.permute.xlu0 %503
    %s506 = sor.u32 256, 8
    %507 = vbcast.lane.b32.xlu0 %v501, %s506
    %v508 = vpop.permute.xlu0 %507
    %v509 = vlaneseq
    %v510 = vshrl.u32 %v509, 7
    %v511 = vsub.s32 0, %v510
    %v512 = vrot.slane %v95, %v511
    %514 = vbcast.lane.b32.xlu0 %v512, 256
    %v515 = vpop.permute.xlu0 %514
    %s517 = sor.u32 256, 8
    %518 = vbcast.lane.b32.xlu0 %v512, %s517
    %v519 = vpop.permute.xlu0 %518
    %v520 = vlaneseq
    %v521 = vshrl.u32 %v520, 7
    %v522 = vsub.s32 1, %v521
    %v523 = vrot.slane %v95, %v522
    %525 = vbcast.lane.b32.xlu0 %v523, 256
    %v526 = vpop.permute.xlu0 %525
    %s528 = sor.u32 256, 8
    %529 = vbcast.lane.b32.xlu0 %v523, %s528
    %v530 = vpop.permute.xlu0 %529
    %v531 = vlaneseq
    %v532 = vshrl.u32 %v531, 7
    %v533 = vsub.s32 2, %v532
    %v534 = vrot.slane %v95, %v533
    %536 = vbcast.lane.b32.xlu0 %v534, 256
    %v537 = vpop.permute.xlu0 %536
    %s539 = sor.u32 256, 8
    %540 = vbcast.lane.b32.xlu0 %v534, %s539
    %v541 = vpop.permute.xlu0 %540
    %v542 = vlaneseq
    %v543 = vshrl.u32 %v542, 7
    %v544 = vsub.s32 3, %v543
    %v545 = vrot.slane %v95, %v544
    %547 = vbcast.lane.b32.xlu0 %v545, 256
    %v548 = vpop.permute.xlu0 %547
    %s550 = sor.u32 256, 8
    %551 = vbcast.lane.b32.xlu0 %v545, %s550
    %v552 = vpop.permute.xlu0 %551
    %v553 = vlaneseq
    %v554 = vshrl.u32 %v553, 7
    %v555 = vsub.s32 4, %v554
    %v556 = vrot.slane %v95, %v555
    %558 = vbcast.lane.b32.xlu0 %v556, 256
    %v559 = vpop.permute.xlu0 %558
    %s561 = sor.u32 256, 8
    %562 = vbcast.lane.b32.xlu0 %v556, %s561
    %v563 = vpop.permute.xlu0 %562
    %v564 = vlaneseq
    %v565 = vshrl.u32 %v564, 7
    %v566 = vsub.s32 5, %v565
    %v567 = vrot.slane %v95, %v566
    %569 = vbcast.lane.b32.xlu0 %v567, 256
    %v570 = vpop.permute.xlu0 %569
    %s572 = sor.u32 256, 8
    %573 = vbcast.lane.b32.xlu0 %v567, %s572
    %v574 = vpop.permute.xlu0 %573
    %v575 = vlaneseq
    %v576 = vshrl.u32 %v575, 7
    %v577 = vsub.s32 6, %v576
    %v578 = vrot.slane %v95, %v577
    %580 = vbcast.lane.b32.xlu0 %v578, 256
    %v581 = vpop.permute.xlu0 %580
    %s583 = sor.u32 256, 8
    %584 = vbcast.lane.b32.xlu0 %v578, %s583
    %v585 = vpop.permute.xlu0 %584
    %v586 = vlaneseq
    %v587 = vshrl.u32 %v586, 7
    %v588 = vsub.s32 7, %v587
    %v589 = vrot.slane %v95, %v588
    %591 = vbcast.lane.b32.xlu0 %v589, 256
    %v592 = vpop.permute.xlu0 %591
    %s594 = sor.u32 256, 8
    %595 = vbcast.lane.b32.xlu0 %v589, %s594
    %v596 = vpop.permute.xlu0 %595
    %v597 = vadd.f32 %v263, %v427
    %v598 = vadd.f32 %v268, %v431
    %v599 = vadd.f32 %v273, %v438
    %v600 = vadd.f32 %v278, %v442
    %v601 = vadd.f32 %v283, %v449
    %v602 = vadd.f32 %v288, %v453
    %v603 = vadd.f32 %v293, %v460
    %v604 = vadd.f32 %v298, %v464
    %v605 = vadd.f32 %v303, %v471
    %v606 = vadd.f32 %v308, %v475
    %v607 = vadd.f32 %v313, %v482
    %v608 = vadd.f32 %v318, %v486
    %v609 = vadd.f32 %v323, %v493
    %v610 = vadd.f32 %v328, %v497
    %v611 = vadd.f32 %v333, %v504
    %v612 = vadd.f32 %v338, %v508
    %v613 = vadd.f32 %v343, %v515
    %v614 = vadd.f32 %v348, %v519
    %v615 = vadd.f32 %v353, %v526
    %v616 = vadd.f32 %v358, %v530
    %v617 = vadd.f32 %v363, %v537
    %v618 = vadd.f32 %v368, %v541
    %v619 = vadd.f32 %v373, %v548
    %v620 = vadd.f32 %v378, %v552
    %v621 = vadd.f32 %v383, %v559
    %v622 = vadd.f32 %v388, %v563
    %v623 = vadd.f32 %v393, %v570
    %v624 = vadd.f32 %v398, %v574
    %v625 = vadd.f32 %v403, %v581
    %v626 = vadd.f32 %v408, %v585
    %v627 = vadd.f32 %v413, %v592
    %v628 = vadd.f32 %v418, %v596
    %vm629 = vcmask 31744
    %v630 = vsel %vm629, %v597, -inf
    %v631 = vsel %vm629, %v598, -inf
    %v632 = vmax.f32 %v630, %v631
    %v633 = vrot.slane %v632, 4
    %v634 = vmax.f32 %v632, %v633
    %v635 = vrot.slane %v634, 2
    %v636 = vmax.f32 %v634, %v635
    %v637 = vrot.slane %v636, 1
    %v638 = vmax.f32 %v636, %v637
    %v639 = vsel %vm629, %v599, -inf
    %v640 = vsel %vm629, %v600, -inf
    %v641 = vmax.f32 %v639, %v640
    %v642 = vrot.slane %v641, 4
    %v643 = vmax.f32 %v641, %v642
    %v644 = vrot.slane %v643, 2
    %v645 = vmax.f32 %v643, %v644
    %v646 = vrot.slane %v645, 1
    %v647 = vmax.f32 %v645, %v646
    %v648 = vsel %vm629, %v601, -inf
    %v649 = vsel %vm629, %v602, -inf
    %v650 = vmax.f32 %v648, %v649
    %v651 = vrot.slane %v650, 4
    %v652 = vmax.f32 %v650, %v651
    %v653 = vrot.slane %v652, 2
    %v654 = vmax.f32 %v652, %v653
    %v655 = vrot.slane %v654, 1
    %v656 = vmax.f32 %v654, %v655
    %v657 = vsel %vm629, %v603, -inf
    %v658 = vsel %vm629, %v604, -inf
    %v659 = vmax.f32 %v657, %v658
    %v660 = vrot.slane %v659, 4
    %v661 = vmax.f32 %v659, %v660
    %v662 = vrot.slane %v661, 2
    %v663 = vmax.f32 %v661, %v662
    %v664 = vrot.slane %v663, 1
    %v665 = vmax.f32 %v663, %v664
    %v666 = vsel %vm629, %v605, -inf
    %v667 = vsel %vm629, %v606, -inf
    %v668 = vmax.f32 %v666, %v667
    %v669 = vrot.slane %v668, 4
    %v670 = vmax.f32 %v668, %v669
    %v671 = vrot.slane %v670, 2
    %v672 = vmax.f32 %v670, %v671
    %v673 = vrot.slane %v672, 1
    %v674 = vmax.f32 %v672, %v673
    %v675 = vsel %vm629, %v607, -inf
    %v676 = vsel %vm629, %v608, -inf
    %v677 = vmax.f32 %v675, %v676
    %v678 = vrot.slane %v677, 4
    %v679 = vmax.f32 %v677, %v678
    %v680 = vrot.slane %v679, 2
    %v681 = vmax.f32 %v679, %v680
    %v682 = vrot.slane %v681, 1
    %v683 = vmax.f32 %v681, %v682
    %v684 = vsel %vm629, %v609, -inf
    %v685 = vsel %vm629, %v610, -inf
    %v686 = vmax.f32 %v684, %v685
    %v687 = vrot.slane %v686, 4
    %v688 = vmax.f32 %v686, %v687
    %v689 = vrot.slane %v688, 2
    %v690 = vmax.f32 %v688, %v689
    %v691 = vrot.slane %v690, 1
    %v692 = vmax.f32 %v690, %v691
    %v693 = vsel %vm629, %v611, -inf
    %v694 = vsel %vm629, %v612, -inf
    %v695 = vmax.f32 %v693, %v694
    %v696 = vrot.slane %v695, 4
    %v697 = vmax.f32 %v695, %v696
    %v698 = vrot.slane %v697, 2
    %v699 = vmax.f32 %v697, %v698
    %v700 = vrot.slane %v699, 1
    %v701 = vmax.f32 %v699, %v700
    %v702 = vsel %vm629, %v613, -inf
    %v703 = vsel %vm629, %v614, -inf
    %v704 = vmax.f32 %v702, %v703
    %v705 = vrot.slane %v704, 4
    %v706 = vmax.f32 %v704, %v705
    %v707 = vrot.slane %v706, 2
    %v708 = vmax.f32 %v706, %v707
    %v709 = vrot.slane %v708, 1
    %v710 = vmax.f32 %v708, %v709
    %v711 = vsel %vm629, %v615, -inf
    %v712 = vsel %vm629, %v616, -inf
    %v713 = vmax.f32 %v711, %v712
    %v714 = vrot.slane %v713, 4
    %v715 = vmax.f32 %v713, %v714
    %v716 = vrot.slane %v715, 2
    %v717 = vmax.f32 %v715, %v716
    %v718 = vrot.slane %v717, 1
    %v719 = vmax.f32 %v717, %v718
    %v720 = vsel %vm629, %v617, -inf
    %v721 = vsel %vm629, %v618, -inf
    %v722 = vmax.f32 %v720, %v721
    %v723 = vrot.slane %v722, 4
    %v724 = vmax.f32 %v722, %v723
    %v725 = vrot.slane %v724, 2
    %v726 = vmax.f32 %v724, %v725
    %v727 = vrot.slane %v726, 1
    %v728 = vmax.f32 %v726, %v727
    %v729 = vsel %vm629, %v619, -inf
    %v730 = vsel %vm629, %v620, -inf
    %v731 = vmax.f32 %v729, %v730
    %v732 = vrot.slane %v731, 4
    %v733 = vmax.f32 %v731, %v732
    %v734 = vrot.slane %v733, 2
    %v735 = vmax.f32 %v733, %v734
    %v736 = vrot.slane %v735, 1
    %v737 = vmax.f32 %v735, %v736
    %v738 = vsel %vm629, %v621, -inf
    %v739 = vsel %vm629, %v622, -inf
    %v740 = vmax.f32 %v738, %v739
    %v741 = vrot.slane %v740, 4
    %v742 = vmax.f32 %v740, %v741
    %v743 = vrot.slane %v742, 2
    %v744 = vmax.f32 %v742, %v743
    %v745 = vrot.slane %v744, 1
    %v746 = vmax.f32 %v744, %v745
    %v747 = vsel %vm629, %v623, -inf
    %v748 = vsel %vm629, %v624, -inf
    %v749 = vmax.f32 %v747, %v748
    %v750 = vrot.slane %v749, 4
    %v751 = vmax.f32 %v749, %v750
    %v752 = vrot.slane %v751, 2
    %v753 = vmax.f32 %v751, %v752
    %v754 = vrot.slane %v753, 1
    %v755 = vmax.f32 %v753, %v754
    %v756 = vsel %vm629, %v625, -inf
    %v757 = vsel %vm629, %v626, -inf
    %v758 = vmax.f32 %v756, %v757
    %v759 = vrot.slane %v758, 4
    %v760 = vmax.f32 %v758, %v759
    %v761 = vrot.slane %v760, 2
    %v762 = vmax.f32 %v760, %v761
    %v763 = vrot.slane %v762, 1
    %v764 = vmax.f32 %v762, %v763
    %v765 = vsel %vm629, %v627, -inf
    %v766 = vsel %vm629, %v628, -inf
    %v767 = vmax.f32 %v765, %v766
    %v768 = vrot.slane %v767, 4
    %v769 = vmax.f32 %v767, %v768
    %v770 = vrot.slane %v769, 2
    %v771 = vmax.f32 %v769, %v770
    %v772 = vrot.slane %v771, 1
    %v773 = vmax.f32 %v771, %v772
    %v774 = vsub.f32 %v597, %v638
    %v775 = vsub.f32 %v598, %v638
    %v776 = vsub.f32 %v599, %v647
    %v777 = vsub.f32 %v600, %v647
    %v778 = vsub.f32 %v601, %v656
    %v779 = vsub.f32 %v602, %v656
    %v780 = vsub.f32 %v603, %v665
    %v781 = vsub.f32 %v604, %v665
    %v782 = vsub.f32 %v605, %v674
    %v783 = vsub.f32 %v606, %v674
    %v784 = vsub.f32 %v607, %v683
    %v785 = vsub.f32 %v608, %v683
    %v786 = vsub.f32 %v609, %v692
    %v787 = vsub.f32 %v610, %v692
    %v788 = vsub.f32 %v611, %v701
    %v789 = vsub.f32 %v612, %v701
    %v790 = vsub.f32 %v613, %v710
    %v791 = vsub.f32 %v614, %v710
    %v792 = vsub.f32 %v615, %v719
    %v793 = vsub.f32 %v616, %v719
    %v794 = vsub.f32 %v617, %v728
    %v795 = vsub.f32 %v618, %v728
    %v796 = vsub.f32 %v619, %v737
    %v797 = vsub.f32 %v620, %v737
    %v798 = vsub.f32 %v621, %v746
    %v799 = vsub.f32 %v622, %v746
    %v800 = vsub.f32 %v623, %v755
    %v801 = vsub.f32 %v624, %v755
    %v802 = vsub.f32 %v625, %v764
    %v803 = vsub.f32 %v626, %v764
    %v804 = vsub.f32 %v627, %v773
    %v805 = vsub.f32 %v628, %v773
    %v806 = vmul.f32 %v774, 1.442695
    %v807 = vpow.pop %v806
    %v808 = vmul.f32 %v775, 1.442695
    %v809 = vpow.pop %v808
    %v810 = vmul.f32 %v776, 1.442695
    %v811 = vpow.pop %v810
    %v812 = vmul.f32 %v777, 1.442695
    %v813 = vpow.pop %v812
    %v814 = vmul.f32 %v778, 1.442695
    %v815 = vpow.pop %v814
    %v816 = vmul.f32 %v779, 1.442695
    %v817 = vpow.pop %v816
    %v818 = vmul.f32 %v780, 1.442695
    %v819 = vpow.pop %v818
    %v820 = vmul.f32 %v781, 1.442695
    %v821 = vpow.pop %v820
    %v822 = vmul.f32 %v782, 1.442695
    %v823 = vpow.pop %v822
    %v824 = vmul.f32 %v783, 1.442695
    %v825 = vpow.pop %v824
    %v826 = vmul.f32 %v784, 1.442695
    %v827 = vpow.pop %v826
    %v828 = vmul.f32 %v785, 1.442695
    %v829 = vpow.pop %v828
    %v830 = vmul.f32 %v786, 1.442695
    %v831 = vpow.pop %v830
    %v832 = vmul.f32 %v787, 1.442695
    %v833 = vpow.pop %v832
    %v834 = vmul.f32 %v788, 1.442695
    %v835 = vpow.pop %v834
    %v836 = vmul.f32 %v789, 1.442695
    %v837 = vpow.pop %v836
    %v838 = vmul.f32 %v790, 1.442695
    %v839 = vpow.pop %v838
    %v840 = vmul.f32 %v791, 1.442695
    %v841 = vpow.pop %v840
    %v842 = vmul.f32 %v792, 1.442695
    %v843 = vpow.pop %v842
    %v844 = vmul.f32 %v793, 1.442695
    %v845 = vpow.pop %v844
    %v846 = vmul.f32 %v794, 1.442695
    %v847 = vpow.pop %v846
    %v848 = vmul.f32 %v795, 1.442695
    %v849 = vpow.pop %v848
    %v850 = vmul.f32 %v796, 1.442695
    %v851 = vpow.pop %v850
    %v852 = vmul.f32 %v797, 1.442695
    %v853 = vpow.pop %v852
    %v854 = vmul.f32 %v798, 1.442695
    %v855 = vpow.pop %v854
    %v856 = vmul.f32 %v799, 1.442695
    %v857 = vpow.pop %v856
    %v858 = vmul.f32 %v800, 1.442695
    %v859 = vpow.pop %v858
    %v860 = vmul.f32 %v801, 1.442695
    %v861 = vpow.pop %v860
    %v862 = vmul.f32 %v802, 1.442695
    %v863 = vpow.pop %v862
    %v864 = vmul.f32 %v803, 1.442695
    %v865 = vpow.pop %v864
    %v866 = vmul.f32 %v804, 1.442695
    %v867 = vpow.pop %v866
    %v868 = vmul.f32 %v805, 1.442695
    %v869 = vpow.pop %v868
    %v870 = vsel %vm629, %v807, 0.0
    %v871 = vsel %vm629, %v809, 0.0
    %v872 = vadd.f32 %v870, %v871
    %v873 = vrot.slane %v872, 4
    %v874 = vadd.f32 %v872, %v873
    %v875 = vrot.slane %v874, 2
    %v876 = vadd.f32 %v874, %v875
    %v877 = vrot.slane %v876, 1
    %v878 = vadd.f32 %v876, %v877
    %v879 = vsel %vm629, %v811, 0.0
    %v880 = vsel %vm629, %v813, 0.0
    %v881 = vadd.f32 %v879, %v880
    %v882 = vrot.slane %v881, 4
    %v883 = vadd.f32 %v881, %v882
    %v884 = vrot.slane %v883, 2
    %v885 = vadd.f32 %v883, %v884
    %v886 = vrot.slane %v885, 1
    %v887 = vadd.f32 %v885, %v886
    %v888 = vsel %vm629, %v815, 0.0
    %v889 = vsel %vm629, %v817, 0.0
    %v890 = vadd.f32 %v888, %v889
    %v891 = vrot.slane %v890, 4
    %v892 = vadd.f32 %v890, %v891
    %v893 = vrot.slane %v892, 2
    %v894 = vadd.f32 %v892, %v893
    %v895 = vrot.slane %v894, 1
    %v896 = vadd.f32 %v894, %v895
    %v897 = vsel %vm629, %v819, 0.0
    %v898 = vsel %vm629, %v821, 0.0
    %v899 = vadd.f32 %v897, %v898
    %v900 = vrot.slane %v899, 4
    %v901 = vadd.f32 %v899, %v900
    %v902 = vrot.slane %v901, 2
    %v903 = vadd.f32 %v901, %v902
    %v904 = vrot.slane %v903, 1
    %v905 = vadd.f32 %v903, %v904
    %v906 = vsel %vm629, %v823, 0.0
    %v907 = vsel %vm629, %v825, 0.0
    %v908 = vadd.f32 %v906, %v907
    %v909 = vrot.slane %v908, 4
    %v910 = vadd.f32 %v908, %v909
    %v911 = vrot.slane %v910, 2
    %v912 = vadd.f32 %v910, %v911
    %v913 = vrot.slane %v912, 1
    %v914 = vadd.f32 %v912, %v913
    %v915 = vsel %vm629, %v827, 0.0
    %v916 = vsel %vm629, %v829, 0.0
    %v917 = vadd.f32 %v915, %v916
    %v918 = vrot.slane %v917, 4
    %v919 = vadd.f32 %v917, %v918
    %v920 = vrot.slane %v919, 2
    %v921 = vadd.f32 %v919, %v920
    %v922 = vrot.slane %v921, 1
    %v923 = vadd.f32 %v921, %v922
    %v924 = vsel %vm629, %v831, 0.0
    %v925 = vsel %vm629, %v833, 0.0
    %v926 = vadd.f32 %v924, %v925
    %v927 = vrot.slane %v926, 4
    %v928 = vadd.f32 %v926, %v927
    %v929 = vrot.slane %v928, 2
    %v930 = vadd.f32 %v928, %v929
    %v931 = vrot.slane %v930, 1
    %v932 = vadd.f32 %v930, %v931
    %v933 = vsel %vm629, %v835, 0.0
    %v934 = vsel %vm629, %v837, 0.0
    %v935 = vadd.f32 %v933, %v934
    %v936 = vrot.slane %v935, 4
    %v937 = vadd.f32 %v935, %v936
    %v938 = vrot.slane %v937, 2
    %v939 = vadd.f32 %v937, %v938
    %v940 = vrot.slane %v939, 1
    %v941 = vadd.f32 %v939, %v940
    %v942 = vsel %vm629, %v839, 0.0
    %v943 = vsel %vm629, %v841, 0.0
    %v944 = vadd.f32 %v942, %v943
    %v945 = vrot.slane %v944, 4
    %v946 = vadd.f32 %v944, %v945
    %v947 = vrot.slane %v946, 2
    %v948 = vadd.f32 %v946, %v947
    %v949 = vrot.slane %v948, 1
    %v950 = vadd.f32 %v948, %v949
    %v951 = vsel %vm629, %v843, 0.0
    %v952 = vsel %vm629, %v845, 0.0
    %v953 = vadd.f32 %v951, %v952
    %v954 = vrot.slane %v953, 4
    %v955 = vadd.f32 %v953, %v954
    %v956 = vrot.slane %v955, 2
    %v957 = vadd.f32 %v955, %v956
    %v958 = vrot.slane %v957, 1
    %v959 = vadd.f32 %v957, %v958
    %v960 = vsel %vm629, %v847, 0.0
    %v961 = vsel %vm629, %v849, 0.0
    %v962 = vadd.f32 %v960, %v961
    %v963 = vrot.slane %v962, 4
    %v964 = vadd.f32 %v962, %v963
    %v965 = vrot.slane %v964, 2
    %v966 = vadd.f32 %v964, %v965
    %v967 = vrot.slane %v966, 1
    %v968 = vadd.f32 %v966, %v967
    %v969 = vsel %vm629, %v851, 0.0
    %v970 = vsel %vm629, %v853, 0.0
    %v971 = vadd.f32 %v969, %v970
    %v972 = vrot.slane %v971, 4
    %v973 = vadd.f32 %v971, %v972
    %v974 = vrot.slane %v973, 2
    %v975 = vadd.f32 %v973, %v974
    %v976 = vrot.slane %v975, 1
    %v977 = vadd.f32 %v975, %v976
    %v978 = vsel %vm629, %v855, 0.0
    %v979 = vsel %vm629, %v857, 0.0
    %v980 = vadd.f32 %v978, %v979
    %v981 = vrot.slane %v980, 4
    %v982 = vadd.f32 %v980, %v981
    %v983 = vrot.slane %v982, 2
    %v984 = vadd.f32 %v982, %v983
    %v985 = vrot.slane %v984, 1
    %v986 = vadd.f32 %v984, %v985
    %v987 = vsel %vm629, %v859, 0.0
    %v988 = vsel %vm629, %v861, 0.0
    %v989 = vadd.f32 %v987, %v988
    %v990 = vrot.slane %v989, 4
    %v991 = vadd.f32 %v989, %v990
    %v992 = vrot.slane %v991, 2
    %v993 = vadd.f32 %v991, %v992
    %v994 = vrot.slane %v993, 1
    %v995 = vadd.f32 %v993, %v994
    %v996 = vsel %vm629, %v863, 0.0
    %v997 = vsel %vm629, %v865, 0.0
    %v998 = vadd.f32 %v996, %v997
    %v999 = vrot.slane %v998, 4
    %v1000 = vadd.f32 %v998, %v999
    %v1001 = vrot.slane %v1000, 2
    %v1002 = vadd.f32 %v1000, %v1001
    %v1003 = vrot.slane %v1002, 1
    %v1004 = vadd.f32 %v1002, %v1003
    %v1005 = vsel %vm629, %v867, 0.0
    %v1006 = vsel %vm629, %v869, 0.0
    %v1007 = vadd.f32 %v1005, %v1006
    %v1008 = vrot.slane %v1007, 4
    %v1009 = vadd.f32 %v1007, %v1008
    %v1010 = vrot.slane %v1009, 2
    %v1011 = vadd.f32 %v1009, %v1010
    %v1012 = vrot.slane %v1011, 1
    %v1013 = vadd.f32 %v1011, %v1012
    %v1014 = vrcp.pop %v878
    %v1015 = vrcp.pop %v887
    %v1016 = vrcp.pop %v896
    %v1017 = vrcp.pop %v905
    %v1018 = vrcp.pop %v914
    %v1019 = vrcp.pop %v923
    %v1020 = vrcp.pop %v932
    %v1021 = vrcp.pop %v941
    %v1022 = vrcp.pop %v950
    %v1023 = vrcp.pop %v959
    %v1024 = vrcp.pop %v968
    %v1025 = vrcp.pop %v977
    %v1026 = vrcp.pop %v986
    %v1027 = vrcp.pop %v995
    %v1028 = vrcp.pop %v1004
    %v1029 = vrcp.pop %v1013
    %v1030 = vmul.f32 %v807, %v1014
    %v1031 = vmul.f32 %v809, %v1014
    %v1032 = vmul.f32 %v811, %v1015
    %v1033 = vmul.f32 %v813, %v1015
    %v1034 = vmul.f32 %v815, %v1016
    %v1035 = vmul.f32 %v817, %v1016
    %v1036 = vmul.f32 %v819, %v1017
    %v1037 = vmul.f32 %v821, %v1017
    %v1038 = vmul.f32 %v823, %v1018
    %v1039 = vmul.f32 %v825, %v1018
    %v1040 = vmul.f32 %v827, %v1019
    %v1041 = vmul.f32 %v829, %v1019
    %v1042 = vmul.f32 %v831, %v1020
    %v1043 = vmul.f32 %v833, %v1020
    %v1044 = vmul.f32 %v835, %v1021
    %v1045 = vmul.f32 %v837, %v1021
    %v1046 = vmul.f32 %v839, %v1022
    %v1047 = vmul.f32 %v841, %v1022
    %v1048 = vmul.f32 %v843, %v1023
    %v1049 = vmul.f32 %v845, %v1023
    %v1050 = vmul.f32 %v847, %v1024
    %v1051 = vmul.f32 %v849, %v1024
    %v1052 = vmul.f32 %v851, %v1025
    %v1053 = vmul.f32 %v853, %v1025
    %v1054 = vmul.f32 %v855, %v1026
    %v1055 = vmul.f32 %v857, %v1026
    %v1056 = vmul.f32 %v859, %v1027
    %v1057 = vmul.f32 %v861, %v1027
    %v1058 = vmul.f32 %v863, %v1028
    %v1059 = vmul.f32 %v865, %v1028
    %v1060 = vmul.f32 %v867, %v1029
    %v1061 = vmul.f32 %v869, %v1029
    %1062 = vxpose.xlu0.b32.start [1/16] %v1030, 128
    %1063 = vxpose.xlu0.b32.cont [2/16] %v1031, 128
    %1064 = vxpose.xlu0.b32.cont [3/16] 0.0, 128
    %1065 = vxpose.xlu0.b32.cont [4/16] 0.0, 128
    %1066 = vxpose.xlu0.b32.cont [5/16] 0.0, 128
    %1067 = vxpose.xlu0.b32.cont [6/16] 0.0, 128
    %1068 = vxpose.xlu0.b32.cont [7/16] 0.0, 128
    %1069 = vxpose.xlu0.b32.cont [8/16] 0.0, 128
    %1070 = vxpose.xlu0.b32.cont [9/16] 0.0, 128
    %1071 = vxpose.xlu0.b32.cont [10/16] 0.0, 128
    %1072 = vxpose.xlu0.b32.cont [11/16] 0.0, 128
    %1073 = vxpose.xlu0.b32.cont [12/16] 0.0, 128
    %1074 = vxpose.xlu0.b32.cont [13/16] 0.0, 128
    %1075 = vxpose.xlu0.b32.cont [14/16] 0.0, 128
    %1076 = vxpose.xlu0.b32.cont [15/16] 0.0, 128
    %1077 = vxpose.xlu0.b32.end [16/16] 0.0, 128
    %v1078 = vpop.trf.xlu0
    %v1079 = vpop.trf.xlu0
    %v1080 = vpop.trf.xlu0
    %v1081 = vpop.trf.xlu0
    %v1082 = vpop.trf.xlu0
    %v1083 = vpop.trf.xlu0
    %v1084 = vpop.trf.xlu0
    %v1085 = vpop.trf.xlu0
    %v1086 = vpop.trf.xlu0
    %v1087 = vpop.trf.xlu0
    %v1088 = vpop.trf.xlu0
    %v1089 = vpop.trf.xlu0
    %v1090 = vpop.trf.xlu0
    %v1091 = vpop.trf.xlu0
    %v1092 = vpop.trf.xlu0
    %v1093 = vpop.trf.xlu0
    %vm1094 = vcmask 130048
    %v1096 = vsel %vm1094, %v1078, 0
    %1098 = vmatprep.subr.mxu0 0.0
    %1099 = vmatpush1.msra.mxu0 %v46
    %1100 = vmatprep.subr.mxu0 0.0
    %1101 = vmatpush1.msra.mxu0 %v47
    %1102 = vmatprep.subr.mxu0 0.0
    %1103 = vmatpush1.msra.mxu0 0.0
    %1104 = vmatprep.subr.mxu0 0.0
    %1105 = vmatpush1.msra.mxu0 0.0
    %1106 = vmatprep.subr.mxu0 0.0
    %1107 = vmatpush1.msra.mxu0 0.0
    %1108 = vmatprep.subr.mxu0 0.0
    %1109 = vmatpush1.msra.mxu0 0.0
    %1110 = vmatprep.subr.mxu0 0.0
    %1111 = vmatpush1.msra.mxu0 0.0
    %1112 = vmatprep.subr.mxu0 0.0
    %1113 = vmatpush1.msra.mxu0 0.0
    %1114 = vmatprep.subr.mxu0 0.0
    %1115 = vmatpush1.msra.mxu0 0.0
    %1116 = vmatprep.subr.mxu0 0.0
    %1117 = vmatpush1.msra.mxu0 0.0
    %1118 = vmatprep.subr.mxu0 0.0
    %1119 = vmatpush1.msra.mxu0 0.0
    %1120 = vmatprep.subr.mxu0 0.0
    %1121 = vmatpush1.msra.mxu0 0.0
    %1122 = vmatprep.subr.mxu0 0.0
    %1123 = vmatpush1.msra.mxu0 0.0
    %1124 = vmatprep.subr.mxu0 0.0
    %1125 = vmatpush1.msra.mxu0 0.0
    %1126 = vmatprep.subr.mxu0 0.0
    %1127 = vmatpush1.msra.mxu0 0.0
    %1128 = vmatprep.subr.mxu0 0.0
    %1129 = vmatpush1.msra.mxu0 0.0
    %1130 = vmatprep.subr.mxu0 0.0
    %1131 = vmatpush1.msra.mxu0 0.0
    %1132 = vmatprep.subr.mxu0 0.0
    %1133 = vmatpush1.msra.mxu0 0.0
    %1134 = vmatprep.subr.mxu0 0.0
    %1135 = vmatpush1.msra.mxu0 0.0
    %1136 = vmatprep.subr.mxu0 0.0
    %1137 = vmatpush1.msra.mxu0 0.0
    %1138 = vmatprep.subr.mxu0 0.0
    %1139 = vmatpush1.msra.mxu0 0.0
    %1140 = vmatprep.subr.mxu0 0.0
    %1141 = vmatpush1.msra.mxu0 0.0
    %1142 = vmatprep.subr.mxu0 0.0
    %1143 = vmatpush1.msra.mxu0 0.0
    %1144 = vmatprep.subr.mxu0 0.0
    %1145 = vmatpush1.msra.mxu0 0.0
    %1146 = vmatprep.subr.mxu0 0.0
    %1147 = vmatpush1.msra.mxu0 0.0
    %1148 = vmatprep.subr.mxu0 0.0
    %1149 = vmatpush1.msra.mxu0 0.0
    %1150 = vmatprep.subr.mxu0 0.0
    %1151 = vmatpush1.msra.mxu0 0.0
    %1152 = vmatprep.subr.mxu0 0.0
    %1153 = vmatpush1.msra.mxu0 0.0
    %1154 = vmatprep.subr.mxu0 0.0
    %1155 = vmatpush1.msra.mxu0 0.0
    %1156 = vmatprep.subr.mxu0 0.0
    %1157 = vmatpush1.msra.mxu0 0.0
    %1158 = vmatprep.subr.mxu0 0.0
    %1159 = vmatpush1.msra.mxu0 0.0
    %1160 = vmatprep.subr.mxu0 0.0
    %1161 = vmatpush1.msra.mxu0 0.0
    %1162 = vmatprep.mubr.f32.mxu0 0.0
    %1163 = vmatmul.mubr.f32.gmra.mrb[0].mxu0 %v1096
    %v1164 = vpop.f32.mrb[0].mxu0
    %v1165 = vadd.f32 0.0, %v1164
    %v1166 = vpop.f32.mrb[0].mxu0
    %1167 = vdwg.mxu0
    %1168 = vxpose.xlu0.b32.start [1/16] %v1032, 128
    %1169 = vxpose.xlu0.b32.cont [2/16] %v1033, 128
    %1170 = vxpose.xlu0.b32.cont [3/16] 0.0, 128
    %1171 = vxpose.xlu0.b32.cont [4/16] 0.0, 128
    %1172 = vxpose.xlu0.b32.cont [5/16] 0.0, 128
    %1173 = vxpose.xlu0.b32.cont [6/16] 0.0, 128
    %1174 = vxpose.xlu0.b32.cont [7/16] 0.0, 128
    %1175 = vxpose.xlu0.b32.cont [8/16] 0.0, 128
    %1176 = vxpose.xlu0.b32.cont [9/16] 0.0, 128
    %1177 = vxpose.xlu0.b32.cont [10/16] 0.0, 128
    %1178 = vxpose.xlu0.b32.cont [11/16] 0.0, 128
    %1179 = vxpose.xlu0.b32.cont [12/16] 0.0, 128
    %1180 = vxpose.xlu0.b32.cont [13/16] 0.0, 128
    %1181 = vxpose.xlu0.b32.cont [14/16] 0.0, 128
    %1182 = vxpose.xlu0.b32.cont [15/16] 0.0, 128
    %1183 = vxpose.xlu0.b32.end [16/16] 0.0, 128
    %v1184 = vpop.trf.xlu0
    %v1185 = vpop.trf.xlu0
    %v1186 = vpop.trf.xlu0
    %v1187 = vpop.trf.xlu0
    %v1188 = vpop.trf.xlu0
    %v1189 = vpop.trf.xlu0
    %v1190 = vpop.trf.xlu0
    %v1191 = vpop.trf.xlu0
    %v1192 = vpop.trf.xlu0
    %v1193 = vpop.trf.xlu0
    %v1194 = vpop.trf.xlu0
    %v1195 = vpop.trf.xlu0
    %v1196 = vpop.trf.xlu0
    %v1197 = vpop.trf.xlu0
    %v1198 = vpop.trf.xlu0
    %v1199 = vpop.trf.xlu0
    %v1201 = vsel %vm1094, %v1184, 0
    %1203 = vmatprep.subr.mxu0 0.0
    %1204 = vmatpush1.msra.mxu0 %v48
    %1205 = vmatprep.subr.mxu0 0.0
    %1206 = vmatpush1.msra.mxu0 %v49
    %1207 = vmatprep.subr.mxu0 0.0
    %1208 = vmatpush1.msra.mxu0 0.0
    %1209 = vmatprep.subr.mxu0 0.0
    %1210 = vmatpush1.msra.mxu0 0.0
    %1211 = vmatprep.subr.mxu0 0.0
    %1212 = vmatpush1.msra.mxu0 0.0
    %1213 = vmatprep.subr.mxu0 0.0
    %1214 = vmatpush1.msra.mxu0 0.0
    %1215 = vmatprep.subr.mxu0 0.0
    %1216 = vmatpush1.msra.mxu0 0.0
    %1217 = vmatprep.subr.mxu0 0.0
    %1218 = vmatpush1.msra.mxu0 0.0
    %1219 = vmatprep.subr.mxu0 0.0
    %1220 = vmatpush1.msra.mxu0 0.0
    %1221 = vmatprep.subr.mxu0 0.0
    %1222 = vmatpush1.msra.mxu0 0.0
    %1223 = vmatprep.subr.mxu0 0.0
    %1224 = vmatpush1.msra.mxu0 0.0
    %1225 = vmatprep.subr.mxu0 0.0
    %1226 = vmatpush1.msra.mxu0 0.0
    %1227 = vmatprep.subr.mxu0 0.0
    %1228 = vmatpush1.msra.mxu0 0.0
    %1229 = vmatprep.subr.mxu0 0.0
    %1230 = vmatpush1.msra.mxu0 0.0
    %1231 = vmatprep.subr.mxu0 0.0
    %1232 = vmatpush1.msra.mxu0 0.0
    %1233 = vmatprep.subr.mxu0 0.0
    %1234 = vmatpush1.msra.mxu0 0.0
    %1235 = vmatprep.subr.mxu0 0.0
    %1236 = vmatpush1.msra.mxu0 0.0
    %1237 = vmatprep.subr.mxu0 0.0
    %1238 = vmatpush1.msra.mxu0 0.0
    %1239 = vmatprep.subr.mxu0 0.0
    %1240 = vmatpush1.msra.mxu0 0.0
    %1241 = vmatprep.subr.mxu0 0.0
    %1242 = vmatpush1.msra.mxu0 0.0
    %1243 = vmatprep.subr.mxu0 0.0
    %1244 = vmatpush1.msra.mxu0 0.0
    %1245 = vmatprep.subr.mxu0 0.0
    %1246 = vmatpush1.msra.mxu0 0.0
    %1247 = vmatprep.subr.mxu0 0.0
    %1248 = vmatpush1.msra.mxu0 0.0
    %1249 = vmatprep.subr.mxu0 0.0
    %1250 = vmatpush1.msra.mxu0 0.0
    %1251 = vmatprep.subr.mxu0 0.0
    %1252 = vmatpush1.msra.mxu0 0.0
    %1253 = vmatprep.subr.mxu0 0.0
    %1254 = vmatpush1.msra.mxu0 0.0
    %1255 = vmatprep.subr.mxu0 0.0
    %1256 = vmatpush1.msra.mxu0 0.0
    %1257 = vmatprep.subr.mxu0 0.0
    %1258 = vmatpush1.msra.mxu0 0.0
    %1259 = vmatprep.subr.mxu0 0.0
    %1260 = vmatpush1.msra.mxu0 0.0
    %1261 = vmatprep.subr.mxu0 0.0
    %1262 = vmatpush1.msra.mxu0 0.0
    %1263 = vmatprep.subr.mxu0 0.0
    %1264 = vmatpush1.msra.mxu0 0.0
    %1265 = vmatprep.subr.mxu0 0.0
    %1266 = vmatpush1.msra.mxu0 0.0
    %1267 = vmatprep.mubr.f32.mxu0 0.0
    %1268 = vmatmul.mubr.f32.gmra.mrb[0].mxu0 %v1201
    %v1269 = vpop.f32.mrb[0].mxu0
    %v1270 = vadd.f32 0.0, %v1269
    %v1271 = vpop.f32.mrb[0].mxu0
    %1272 = vdwg.mxu0
    %1273 = vxpose.xlu0.b32.start [1/16] %v1034, 128
    %1274 = vxpose.xlu0.b32.cont [2/16] %v1035, 128
    %1275 = vxpose.xlu0.b32.cont [3/16] 0.0, 128
    %1276 = vxpose.xlu0.b32.cont [4/16] 0.0, 128
    %1277 = vxpose.xlu0.b32.cont [5/16] 0.0, 128
    %1278 = vxpose.xlu0.b32.cont [6/16] 0.0, 128
    %1279 = vxpose.xlu0.b32.cont [7/16] 0.0, 128
    %1280 = vxpose.xlu0.b32.cont [8/16] 0.0, 128
    %1281 = vxpose.xlu0.b32.cont [9/16] 0.0, 128
    %1282 = vxpose.xlu0.b32.cont [10/16] 0.0, 128
    %1283 = vxpose.xlu0.b32.cont [11/16] 0.0, 128
    %1284 = vxpose.xlu0.b32.cont [12/16] 0.0, 128
    %1285 = vxpose.xlu0.b32.cont [13/16] 0.0, 128
    %1286 = vxpose.xlu0.b32.cont [14/16] 0.0, 128
    %1287 = vxpose.xlu0.b32.cont [15/16] 0.0, 128
    %1288 = vxpose.xlu0.b32.end [16/16] 0.0, 128
    %v1289 = vpop.trf.xlu0
    %v1290 = vpop.trf.xlu0
    %v1291 = vpop.trf.xlu0
    %v1292 = vpop.trf.xlu0
    %v1293 = vpop.trf.xlu0
    %v1294 = vpop.trf.xlu0
    %v1295 = vpop.trf.xlu0
    %v1296 = vpop.trf.xlu0
    %v1297 = vpop.trf.xlu0
    %v1298 = vpop.trf.xlu0
    %v1299 = vpop.trf.xlu0
    %v1300 = vpop.trf.xlu0
    %v1301 = vpop.trf.xlu0
    %v1302 = vpop.trf.xlu0
    %v1303 = vpop.trf.xlu0
    %v1304 = vpop.trf.xlu0
    %v1306 = vsel %vm1094, %v1289, 0
    %1308 = vmatprep.subr.mxu0 0.0
    %1309 = vmatpush1.msra.mxu0 %v50
    %1310 = vmatprep.subr.mxu0 0.0
    %1311 = vmatpush1.msra.mxu0 %v51
    %1312 = vmatprep.subr.mxu0 0.0
    %1313 = vmatpush1.msra.mxu0 0.0
    %1314 = vmatprep.subr.mxu0 0.0
    %1315 = vmatpush1.msra.mxu0 0.0
    %1316 = vmatprep.subr.mxu0 0.0
    %1317 = vmatpush1.msra.mxu0 0.0
    %1318 = vmatprep.subr.mxu0 0.0
    %1319 = vmatpush1.msra.mxu0 0.0
    %1320 = vmatprep.subr.mxu0 0.0
    %1321 = vmatpush1.msra.mxu0 0.0
    %1322 = vmatprep.subr.mxu0 0.0
    %1323 = vmatpush1.msra.mxu0 0.0
    %1324 = vmatprep.subr.mxu0 0.0
    %1325 = vmatpush1.msra.mxu0 0.0
    %1326 = vmatprep.subr.mxu0 0.0
    %1327 = vmatpush1.msra.mxu0 0.0
    %1328 = vmatprep.subr.mxu0 0.0
    %1329 = vmatpush1.msra.mxu0 0.0
    %1330 = vmatprep.subr.mxu0 0.0
    %1331 = vmatpush1.msra.mxu0 0.0
    %1332 = vmatprep.subr.mxu0 0.0
    %1333 = vmatpush1.msra.mxu0 0.0
    %1334 = vmatprep.subr.mxu0 0.0
    %1335 = vmatpush1.msra.mxu0 0.0
    %1336 = vmatprep.subr.mxu0 0.0
    %1337 = vmatpush1.msra.mxu0 0.0
    %1338 = vmatprep.subr.mxu0 0.0
    %1339 = vmatpush1.msra.mxu0 0.0
    %1340 = vmatprep.subr.mxu0 0.0
    %1341 = vmatpush1.msra.mxu0 0.0
    %1342 = vmatprep.subr.mxu0 0.0
    %1343 = vmatpush1.msra.mxu0 0.0
    %1344 = vmatprep.subr.mxu0 0.0
    %1345 = vmatpush1.msra.mxu0 0.0
    %1346 = vmatprep.subr.mxu0 0.0
    %1347 = vmatpush1.msra.mxu0 0.0
    %1348 = vmatprep.subr.mxu0 0.0
    %1349 = vmatpush1.msra.mxu0 0.0
    %1350 = vmatprep.subr.mxu0 0.0
    %1351 = vmatpush1.msra.mxu0 0.0
    %1352 = vmatprep.subr.mxu0 0.0
    %1353 = vmatpush1.msra.mxu0 0.0
    %1354 = vmatprep.subr.mxu0 0.0
    %1355 = vmatpush1.msra.mxu0 0.0
    %1356 = vmatprep.subr.mxu0 0.0
    %1357 = vmatpush1.msra.mxu0 0.0
    %1358 = vmatprep.subr.mxu0 0.0
    %1359 = vmatpush1.msra.mxu0 0.0
    %1360 = vmatprep.subr.mxu0 0.0
    %1361 = vmatpush1.msra.mxu0 0.0
    %1362 = vmatprep.subr.mxu0 0.0
    %1363 = vmatpush1.msra.mxu0 0.0
    %1364 = vmatprep.subr.mxu0 0.0
    %1365 = vmatpush1.msra.mxu0 0.0
    %1366 = vmatprep.subr.mxu0 0.0
    %1367 = vmatpush1.msra.mxu0 0.0
    %1368 = vmatprep.subr.mxu0 0.0
    %1369 = vmatpush1.msra.mxu0 0.0
    %1370 = vmatprep.subr.mxu0 0.0
    %1371 = vmatpush1.msra.mxu0 0.0
    %1372 = vmatprep.mubr.f32.mxu0 0.0
    %1373 = vmatmul.mubr.f32.gmra.mrb[0].mxu0 %v1306
    %v1374 = vpop.f32.mrb[0].mxu0
    %v1375 = vadd.f32 0.0, %v1374
    %v1376 = vpop.f32.mrb[0].mxu0
    %1377 = vdwg.mxu0
    %1378 = vxpose.xlu0.b32.start [1/16] %v1036, 128
    %1379 = vxpose.xlu0.b32.cont [2/16] %v1037, 128
    %1380 = vxpose.xlu0.b32.cont [3/16] 0.0, 128
    %1381 = vxpose.xlu0.b32.cont [4/16] 0.0, 128
    %1382 = vxpose.xlu0.b32.cont [5/16] 0.0, 128
    %1383 = vxpose.xlu0.b32.cont [6/16] 0.0, 128
    %1384 = vxpose.xlu0.b32.cont [7/16] 0.0, 128
    %1385 = vxpose.xlu0.b32.cont [8/16] 0.0, 128
    %1386 = vxpose.xlu0.b32.cont [9/16] 0.0, 128
    %1387 = vxpose.xlu0.b32.cont [10/16] 0.0, 128
    %1388 = vxpose.xlu0.b32.cont [11/16] 0.0, 128
    %1389 = vxpose.xlu0.b32.cont [12/16] 0.0, 128
    %1390 = vxpose.xlu0.b32.cont [13/16] 0.0, 128
    %1391 = vxpose.xlu0.b32.cont [14/16] 0.0, 128
    %1392 = vxpose.xlu0.b32.cont [15/16] 0.0, 128
    %1393 = vxpose.xlu0.b32.end [16/16] 0.0, 128
    %v1394 = vpop.trf.xlu0
    %v1395 = vpop.trf.xlu0
    %v1396 = vpop.trf.xlu0
    %v1397 = vpop.trf.xlu0
    %v1398 = vpop.trf.xlu0
    %v1399 = vpop.trf.xlu0
    %v1400 = vpop.trf.xlu0
    %v1401 = vpop.trf.xlu0
    %v1402 = vpop.trf.xlu0
    %v1403 = vpop.trf.xlu0
    %v1404 = vpop.trf.xlu0
    %v1405 = vpop.trf.xlu0
    %v1406 = vpop.trf.xlu0
    %v1407 = vpop.trf.xlu0
    %v1408 = vpop.trf.xlu0
    %v1409 = vpop.trf.xlu0
    %v1411 = vsel %vm1094, %v1394, 0
    %1413 = vmatprep.subr.mxu0 0.0
    %1414 = vmatpush1.msra.mxu0 %v52
    %1415 = vmatprep.subr.mxu0 0.0
    %1416 = vmatpush1.msra.mxu0 %v53
    %1417 = vmatprep.subr.mxu0 0.0
    %1418 = vmatpush1.msra.mxu0 0.0
    %1419 = vmatprep.subr.mxu0 0.0
    %1420 = vmatpush1.msra.mxu0 0.0
    %1421 = vmatprep.subr.mxu0 0.0
    %1422 = vmatpush1.msra.mxu0 0.0
    %1423 = vmatprep.subr.mxu0 0.0
    %1424 = vmatpush1.msra.mxu0 0.0
    %1425 = vmatprep.subr.mxu0 0.0
    %1426 = vmatpush1.msra.mxu0 0.0
    %1427 = vmatprep.subr.mxu0 0.0
    %1428 = vmatpush1.msra.mxu0 0.0
    %1429 = vmatprep.subr.mxu0 0.0
    %1430 = vmatpush1.msra.mxu0 0.0
    %1431 = vmatprep.subr.mxu0 0.0
    %1432 = vmatpush1.msra.mxu0 0.0
    %1433 = vmatprep.subr.mxu0 0.0
    %1434 = vmatpush1.msra.mxu0 0.0
    %1435 = vmatprep.subr.mxu0 0.0
    %1436 = vmatpush1.msra.mxu0 0.0
    %1437 = vmatprep.subr.mxu0 0.0
    %1438 = vmatpush1.msra.mxu0 0.0
    %1439 = vmatprep.subr.mxu0 0.0
    %1440 = vmatpush1.msra.mxu0 0.0
    %1441 = vmatprep.subr.mxu0 0.0
    %1442 = vmatpush1.msra.mxu0 0.0
    %1443 = vmatprep.subr.mxu0 0.0
    %1444 = vmatpush1.msra.mxu0 0.0
    %1445 = vmatprep.subr.mxu0 0.0
    %1446 = vmatpush1.msra.mxu0 0.0
    %1447 = vmatprep.subr.mxu0 0.0
    %1448 = vmatpush1.msra.mxu0 0.0
    %1449 = vmatprep.subr.mxu0 0.0
    %1450 = vmatpush1.msra.mxu0 0.0
    %1451 = vmatprep.subr.mxu0 0.0
    %1452 = vmatpush1.msra.mxu0 0.0
    %1453 = vmatprep.subr.mxu0 0.0
    %1454 = vmatpush1.msra.mxu0 0.0
    %1455 = vmatprep.subr.mxu0 0.0
    %1456 = vmatpush1.msra.mxu0 0.0
    %1457 = vmatprep.subr.mxu0 0.0
    %1458 = vmatpush1.msra.mxu0 0.0
    %1459 = vmatprep.subr.mxu0 0.0
    %1460 = vmatpush1.msra.mxu0 0.0
    %1461 = vmatprep.subr.mxu0 0.0
    %1462 = vmatpush1.msra.mxu0 0.0
    %1463 = vmatprep.subr.mxu0 0.0
    %1464 = vmatpush1.msra.mxu0 0.0
    %1465 = vmatprep.subr.mxu0 0.0
    %1466 = vmatpush1.msra.mxu0 0.0
    %1467 = vmatprep.subr.mxu0 0.0
    %1468 = vmatpush1.msra.mxu0 0.0
    %1469 = vmatprep.subr.mxu0 0.0
    %1470 = vmatpush1.msra.mxu0 0.0
    %1471 = vmatprep.subr.mxu0 0.0
    %1472 = vmatpush1.msra.mxu0 0.0
    %1473 = vmatprep.subr.mxu0 0.0
    %1474 = vmatpush1.msra.mxu0 0.0
    %1475 = vmatprep.subr.mxu0 0.0
    %1476 = vmatpush1.msra.mxu0 0.0
    %1477 = vmatprep.mubr.f32.mxu0 0.0
    %1478 = vmatmul.mubr.f32.gmra.mrb[0].mxu0 %v1411
    %v1479 = vpop.f32.mrb[0].mxu0
    %v1480 = vadd.f32 0.0, %v1479
    %v1481 = vpop.f32.mrb[0].mxu0
    %1482 = vdwg.mxu0
    %1483 = vxpose.xlu0.b32.start [1/16] %v1038, 128
    %1484 = vxpose.xlu0.b32.cont [2/16] %v1039, 128
    %1485 = vxpose.xlu0.b32.cont [3/16] 0.0, 128
    %1486 = vxpose.xlu0.b32.cont [4/16] 0.0, 128
    %1487 = vxpose.xlu0.b32.cont [5/16] 0.0, 128
    %1488 = vxpose.xlu0.b32.cont [6/16] 0.0, 128
    %1489 = vxpose.xlu0.b32.cont [7/16] 0.0, 128
    %1490 = vxpose.xlu0.b32.cont [8/16] 0.0, 128
    %1491 = vxpose.xlu0.b32.cont [9/16] 0.0, 128
    %1492 = vxpose.xlu0.b32.cont [10/16] 0.0, 128
    %1493 = vxpose.xlu0.b32.cont [11/16] 0.0, 128
    %1494 = vxpose.xlu0.b32.cont [12/16] 0.0, 128
    %1495 = vxpose.xlu0.b32.cont [13/16] 0.0, 128
    %1496 = vxpose.xlu0.b32.cont [14/16] 0.0, 128
    %1497 = vxpose.xlu0.b32.cont [15/16] 0.0, 128
    %1498 = vxpose.xlu0.b32.end [16/16] 0.0, 128
    %v1499 = vpop.trf.xlu0
    %v1500 = vpop.trf.xlu0
    %v1501 = vpop.trf.xlu0
    %v1502 = vpop.trf.xlu0
    %v1503 = vpop.trf.xlu0
    %v1504 = vpop.trf.xlu0
    %v1505 = vpop.trf.xlu0
    %v1506 = vpop.trf.xlu0
    %v1507 = vpop.trf.xlu0
    %v1508 = vpop.trf.xlu0
    %v1509 = vpop.trf.xlu0
    %v1510 = vpop.trf.xlu0
    %v1511 = vpop.trf.xlu0
    %v1512 = vpop.trf.xlu0
    %v1513 = vpop.trf.xlu0
    %v1514 = vpop.trf.xlu0
    %v1516 = vsel %vm1094, %v1499, 0
    %1518 = vmatprep.subr.mxu0 0.0
    %1519 = vmatpush1.msra.mxu0 %v54
    %1520 = vmatprep.subr.mxu0 0.0
    %1521 = vmatpush1.msra.mxu0 %v55
    %1522 = vmatprep.subr.mxu0 0.0
    %1523 = vmatpush1.msra.mxu0 0.0
    %1524 = vmatprep.subr.mxu0 0.0
    %1525 = vmatpush1.msra.mxu0 0.0
    %1526 = vmatprep.subr.mxu0 0.0
    %1527 = vmatpush1.msra.mxu0 0.0
    %1528 = vmatprep.subr.mxu0 0.0
    %1529 = vmatpush1.msra.mxu0 0.0
    %1530 = vmatprep.subr.mxu0 0.0
    %1531 = vmatpush1.msra.mxu0 0.0
    %1532 = vmatprep.subr.mxu0 0.0
    %1533 = vmatpush1.msra.mxu0 0.0
    %1534 = vmatprep.subr.mxu0 0.0
    %1535 = vmatpush1.msra.mxu0 0.0
    %1536 = vmatprep.subr.mxu0 0.0
    %1537 = vmatpush1.msra.mxu0 0.0
    %1538 = vmatprep.subr.mxu0 0.0
    %1539 = vmatpush1.msra.mxu0 0.0
    %1540 = vmatprep.subr.mxu0 0.0
    %1541 = vmatpush1.msra.mxu0 0.0
    %1542 = vmatprep.subr.mxu0 0.0
    %1543 = vmatpush1.msra.mxu0 0.0
    %1544 = vmatprep.subr.mxu0 0.0
    %1545 = vmatpush1.msra.mxu0 0.0
    %1546 = vmatprep.subr.mxu0 0.0
    %1547 = vmatpush1.msra.mxu0 0.0
    %1548 = vmatprep.subr.mxu0 0.0
    %1549 = vmatpush1.msra.mxu0 0.0
    %1550 = vmatprep.subr.mxu0 0.0
    %1551 = vmatpush1.msra.mxu0 0.0
    %1552 = vmatprep.subr.mxu0 0.0
    %1553 = vmatpush1.msra.mxu0 0.0
    %1554 = vmatprep.subr.mxu0 0.0
    %1555 = vmatpush1.msra.mxu0 0.0
    %1556 = vmatprep.subr.mxu0 0.0
    %1557 = vmatpush1.msra.mxu0 0.0
    %1558 = vmatprep.subr.mxu0 0.0
    %1559 = vmatpush1.msra.mxu0 0.0
    %1560 = vmatprep.subr.mxu0 0.0
    %1561 = vmatpush1.msra.mxu0 0.0
    %1562 = vmatprep.subr.mxu0 0.0
    %1563 = vmatpush1.msra.mxu0 0.0
    %1564 = vmatprep.subr.mxu0 0.0
    %1565 = vmatpush1.msra.mxu0 0.0
    %1566 = vmatprep.subr.mxu0 0.0
    %1567 = vmatpush1.msra.mxu0 0.0
    %1568 = vmatprep.subr.mxu0 0.0
    %1569 = vmatpush1.msra.mxu0 0.0
    %1570 = vmatprep.subr.mxu0 0.0
    %1571 = vmatpush1.msra.mxu0 0.0
    %1572 = vmatprep.subr.mxu0 0.0
    %1573 = vmatpush1.msra.mxu0 0.0
    %1574 = vmatprep.subr.mxu0 0.0
    %1575 = vmatpush1.msra.mxu0 0.0
    %1576 = vmatprep.subr.mxu0 0.0
    %1577 = vmatpush1.msra.mxu0 0.0
    %1578 = vmatprep.subr.mxu0 0.0
    %1579 = vmatpush1.msra.mxu0 0.0
    %1580 = vmatprep.subr.mxu0 0.0
    %1581 = vmatpush1.msra.mxu0 0.0
    %1582 = vmatprep.mubr.f32.mxu0 0.0
    %1583 = vmatmul.mubr.f32.gmra.mrb[0].mxu0 %v1516
    %v1584 = vpop.f32.mrb[0].mxu0
    %v1585 = vadd.f32 0.0, %v1584
    %v1586 = vpop.f32.mrb[0].mxu0
    %1587 = vdwg.mxu0
    %1588 = vxpose.xlu0.b32.start [1/16] %v1040, 128
    %1589 = vxpose.xlu0.b32.cont [2/16] %v1041, 128
    %1590 = vxpose.xlu0.b32.cont [3/16] 0.0, 128
    %1591 = vxpose.xlu0.b32.cont [4/16] 0.0, 128
    %1592 = vxpose.xlu0.b32.cont [5/16] 0.0, 128
    %1593 = vxpose.xlu0.b32.cont [6/16] 0.0, 128
    %1594 = vxpose.xlu0.b32.cont [7/16] 0.0, 128
    %1595 = vxpose.xlu0.b32.cont [8/16] 0.0, 128
    %1596 = vxpose.xlu0.b32.cont [9/16] 0.0, 128
    %1597 = vxpose.xlu0.b32.cont [10/16] 0.0, 128
    %1598 = vxpose.xlu0.b32.cont [11/16] 0.0, 128
    %1599 = vxpose.xlu0.b32.cont [12/16] 0.0, 128
    %1600 = vxpose.xlu0.b32.cont [13/16] 0.0, 128
    %1601 = vxpose.xlu0.b32.cont [14/16] 0.0, 128
    %1602 = vxpose.xlu0.b32.cont [15/16] 0.0, 128
    %1603 = vxpose.xlu0.b32.end [16/16] 0.0, 128
    %v1604 = vpop.trf.xlu0
    %v1605 = vpop.trf.xlu0
    %v1606 = vpop.trf.xlu0
    %v1607 = vpop.trf.xlu0
    %v1608 = vpop.trf.xlu0
    %v1609 = vpop.trf.xlu0
    %v1610 = vpop.trf.xlu0
    %v1611 = vpop.trf.xlu0
    %v1612 = vpop.trf.xlu0
    %v1613 = vpop.trf.xlu0
    %v1614 = vpop.trf.xlu0
    %v1615 = vpop.trf.xlu0
    %v1616 = vpop.trf.xlu0
    %v1617 = vpop.trf.xlu0
    %v1618 = vpop.trf.xlu0
    %v1619 = vpop.trf.xlu0
    %v1621 = vsel %vm1094, %v1604, 0
    %1623 = vmatprep.subr.mxu0 0.0
    %1624 = vmatpush1.msra.mxu0 %v56
    %1625 = vmatprep.subr.mxu0 0.0
    %1626 = vmatpush1.msra.mxu0 %v57
    %1627 = vmatprep.subr.mxu0 0.0
    %1628 = vmatpush1.msra.mxu0 0.0
    %1629 = vmatprep.subr.mxu0 0.0
    %1630 = vmatpush1.msra.mxu0 0.0
    %1631 = vmatprep.subr.mxu0 0.0
    %1632 = vmatpush1.msra.mxu0 0.0
    %1633 = vmatprep.subr.mxu0 0.0
    %1634 = vmatpush1.msra.mxu0 0.0
    %1635 = vmatprep.subr.mxu0 0.0
    %1636 = vmatpush1.msra.mxu0 0.0
    %1637 = vmatprep.subr.mxu0 0.0
    %1638 = vmatpush1.msra.mxu0 0.0
    %1639 = vmatprep.subr.mxu0 0.0
    %1640 = vmatpush1.msra.mxu0 0.0
    %1641 = vmatprep.subr.mxu0 0.0
    %1642 = vmatpush1.msra.mxu0 0.0
    %1643 = vmatprep.subr.mxu0 0.0
    %1644 = vmatpush1.msra.mxu0 0.0
    %1645 = vmatprep.subr.mxu0 0.0
    %1646 = vmatpush1.msra.mxu0 0.0
    %1647 = vmatprep.subr.mxu0 0.0
    %1648 = vmatpush1.msra.mxu0 0.0
    %1649 = vmatprep.subr.mxu0 0.0
    %1650 = vmatpush1.msra.mxu0 0.0
    %1651 = vmatprep.subr.mxu0 0.0
    %1652 = vmatpush1.msra.mxu0 0.0
    %1653 = vmatprep.subr.mxu0 0.0
    %1654 = vmatpush1.msra.mxu0 0.0
    %1655 = vmatprep.subr.mxu0 0.0
    %1656 = vmatpush1.msra.mxu0 0.0
    %1657 = vmatprep.subr.mxu0 0.0
    %1658 = vmatpush1.msra.mxu0 0.0
    %1659 = vmatprep.subr.mxu0 0.0
    %1660 = vmatpush1.msra.mxu0 0.0
    %1661 = vmatprep.subr.mxu0 0.0
    %1662 = vmatpush1.msra.mxu0 0.0
    %1663 = vmatprep.subr.mxu0 0.0
    %1664 = vmatpush1.msra.mxu0 0.0
    %1665 = vmatprep.subr.mxu0 0.0
    %1666 = vmatpush1.msra.mxu0 0.0
    %1667 = vmatprep.subr.mxu0 0.0
    %1668 = vmatpush1.msra.mxu0 0.0
    %1669 = vmatprep.subr.mxu0 0.0
    %1670 = vmatpush1.msra.mxu0 0.0
    %1671 = vmatprep.subr.mxu0 0.0
    %1672 = vmatpush1.msra.mxu0 0.0
    %1673 = vmatprep.subr.mxu0 0.0
    %1674 = vmatpush1.msra.mxu0 0.0
    %1675 = vmatprep.subr.mxu0 0.0
    %1676 = vmatpush1.msra.mxu0 0.0
    %1677 = vmatprep.subr.mxu0 0.0
    %1678 = vmatpush1.msra.mxu0 0.0
    %1679 = vmatprep.subr.mxu0 0.0
    %1680 = vmatpush1.msra.mxu0 0.0
    %1681 = vmatprep.subr.mxu0 0.0
    %1682 = vmatpush1.msra.mxu0 0.0
    %1683 = vmatprep.subr.mxu0 0.0
    %1684 = vmatpush1.msra.mxu0 0.0
    %1685 = vmatprep.subr.mxu0 0.0
    %1686 = vmatpush1.msra.mxu0 0.0
    %1687 = vmatprep.mubr.f32.mxu0 0.0
    %1688 = vmatmul.mubr.f32.gmra.mrb[0].mxu0 %v1621
    %v1689 = vpop.f32.mrb[0].mxu0
    %v1690 = vadd.f32 0.0, %v1689
    %v1691 = vpop.f32.mrb[0].mxu0
    %1692 = vdwg.mxu0
    %1693 = vxpose.xlu0.b32.start [1/16] %v1042, 128
    %1694 = vxpose.xlu0.b32.cont [2/16] %v1043, 128
    %1695 = vxpose.xlu0.b32.cont [3/16] 0.0, 128
    %1696 = vxpose.xlu0.b32.cont [4/16] 0.0, 128
    %1697 = vxpose.xlu0.b32.cont [5/16] 0.0, 128
    %1698 = vxpose.xlu0.b32.cont [6/16] 0.0, 128
    %1699 = vxpose.xlu0.b32.cont [7/16] 0.0, 128
    %1700 = vxpose.xlu0.b32.cont [8/16] 0.0, 128
    %1701 = vxpose.xlu0.b32.cont [9/16] 0.0, 128
    %1702 = vxpose.xlu0.b32.cont [10/16] 0.0, 128
    %1703 = vxpose.xlu0.b32.cont [11/16] 0.0, 128
    %1704 = vxpose.xlu0.b32.cont [12/16] 0.0, 128
    %1705 = vxpose.xlu0.b32.cont [13/16] 0.0, 128
    %1706 = vxpose.xlu0.b32.cont [14/16] 0.0, 128
    %1707 = vxpose.xlu0.b32.cont [15/16] 0.0, 128
    %1708 = vxpose.xlu0.b32.end [16/16] 0.0, 128
    %v1709 = vpop.trf.xlu0
    %v1710 = vpop.trf.xlu0
    %v1711 = vpop.trf.xlu0
    %v1712 = vpop.trf.xlu0
    %v1713 = vpop.trf.xlu0
    %v1714 = vpop.trf.xlu0
    %v1715 = vpop.trf.xlu0
    %v1716 = vpop.trf.xlu0
    %v1717 = vpop.trf.xlu0
    %v1718 = vpop.trf.xlu0
    %v1719 = vpop.trf.xlu0
    %v1720 = vpop.trf.xlu0
    %v1721 = vpop.trf.xlu0
    %v1722 = vpop.trf.xlu0
    %v1723 = vpop.trf.xlu0
    %v1724 = vpop.trf.xlu0
    %v1726 = vsel %vm1094, %v1709, 0
    %1728 = vmatprep.subr.mxu0 0.0
    %1729 = vmatpush1.msra.mxu0 %v58
    %1730 = vmatprep.subr.mxu0 0.0
    %1731 = vmatpush1.msra.mxu0 %v59
    %1732 = vmatprep.subr.mxu0 0.0
    %1733 = vmatpush1.msra.mxu0 0.0
    %1734 = vmatprep.subr.mxu0 0.0
    %1735 = vmatpush1.msra.mxu0 0.0
    %1736 = vmatprep.subr.mxu0 0.0
    %1737 = vmatpush1.msra.mxu0 0.0
    %1738 = vmatprep.subr.mxu0 0.0
    %1739 = vmatpush1.msra.mxu0 0.0
    %1740 = vmatprep.subr.mxu0 0.0
    %1741 = vmatpush1.msra.mxu0 0.0
    %1742 = vmatprep.subr.mxu0 0.0
    %1743 = vmatpush1.msra.mxu0 0.0
    %1744 = vmatprep.subr.mxu0 0.0
    %1745 = vmatpush1.msra.mxu0 0.0
    %1746 = vmatprep.subr.mxu0 0.0
    %1747 = vmatpush1.msra.mxu0 0.0
    %1748 = vmatprep.subr.mxu0 0.0
    %1749 = vmatpush1.msra.mxu0 0.0
    %1750 = vmatprep.subr.mxu0 0.0
    %1751 = vmatpush1.msra.mxu0 0.0
    %1752 = vmatprep.subr.mxu0 0.0
    %1753 = vmatpush1.msra.mxu0 0.0
    %1754 = vmatprep.subr.mxu0 0.0
    %1755 = vmatpush1.msra.mxu0 0.0
    %1756 = vmatprep.subr.mxu0 0.0
    %1757 = vmatpush1.msra.mxu0 0.0
    %1758 = vmatprep.subr.mxu0 0.0
    %1759 = vmatpush1.msra.mxu0 0.0
    %1760 = vmatprep.subr.mxu0 0.0
    %1761 = vmatpush1.msra.mxu0 0.0
    %1762 = vmatprep.subr.mxu0 0.0
    %1763 = vmatpush1.msra.mxu0 0.0
    %1764 = vmatprep.subr.mxu0 0.0
    %1765 = vmatpush1.msra.mxu0 0.0
    %1766 = vmatprep.subr.mxu0 0.0
    %1767 = vmatpush1.msra.mxu0 0.0
    %1768 = vmatprep.subr.mxu0 0.0
    %1769 = vmatpush1.msra.mxu0 0.0
    %1770 = vmatprep.subr.mxu0 0.0
    %1771 = vmatpush1.msra.mxu0 0.0
    %1772 = vmatprep.subr.mxu0 0.0
    %1773 = vmatpush1.msra.mxu0 0.0
    %1774 = vmatprep.subr.mxu0 0.0
    %1775 = vmatpush1.msra.mxu0 0.0
    %1776 = vmatprep.subr.mxu0 0.0
    %1777 = vmatpush1.msra.mxu0 0.0
    %1778 = vmatprep.subr.mxu0 0.0
    %1779 = vmatpush1.msra.mxu0 0.0
    %1780 = vmatprep.subr.mxu0 0.0
    %1781 = vmatpush1.msra.mxu0 0.0
    %1782 = vmatprep.subr.mxu0 0.0
    %1783 = vmatpush1.msra.mxu0 0.0
    %1784 = vmatprep.subr.mxu0 0.0
    %1785 = vmatpush1.msra.mxu0 0.0
    %1786 = vmatprep.subr.mxu0 0.0
    %1787 = vmatpush1.msra.mxu0 0.0
    %1788 = vmatprep.subr.mxu0 0.0
    %1789 = vmatpush1.msra.mxu0 0.0
    %1790 = vmatprep.subr.mxu0 0.0
    %1791 = vmatpush1.msra.mxu0 0.0
    %1792 = vmatprep.mubr.f32.mxu0 0.0
    %1793 = vmatmul.mubr.f32.gmra.mrb[0].mxu0 %v1726
    %v1794 = vpop.f32.mrb[0].mxu0
    %v1795 = vadd.f32 0.0, %v1794
    %v1796 = vpop.f32.mrb[0].mxu0
    %1797 = vdwg.mxu0
    %1798 = vxpose.xlu0.b32.start [1/16] %v1044, 128
    %1799 = vxpose.xlu0.b32.cont [2/16] %v1045, 128
    %1800 = vxpose.xlu0.b32.cont [3/16] 0.0, 128
    %1801 = vxpose.xlu0.b32.cont [4/16] 0.0, 128
    %1802 = vxpose.xlu0.b32.cont [5/16] 0.0, 128
    %1803 = vxpose.xlu0.b32.cont [6/16] 0.0, 128
    %1804 = vxpose.xlu0.b32.cont [7/16] 0.0, 128
    %1805 = vxpose.xlu0.b32.cont [8/16] 0.0, 128
    %1806 = vxpose.xlu0.b32.cont [9/16] 0.0, 128
    %1807 = vxpose.xlu0.b32.cont [10/16] 0.0, 128
    %1808 = vxpose.xlu0.b32.cont [11/16] 0.0, 128
    %1809 = vxpose.xlu0.b32.cont [12/16] 0.0, 128
    %1810 = vxpose.xlu0.b32.cont [13/16] 0.0, 128
    %1811 = vxpose.xlu0.b32.cont [14/16] 0.0, 128
    %1812 = vxpose.xlu0.b32.cont [15/16] 0.0, 128
    %1813 = vxpose.xlu0.b32.end [16/16] 0.0, 128
    %v1814 = vpop.trf.xlu0
    %v1815 = vpop.trf.xlu0
    %v1816 = vpop.trf.xlu0
    %v1817 = vpop.trf.xlu0
    %v1818 = vpop.trf.xlu0
    %v1819 = vpop.trf.xlu0
    %v1820 = vpop.trf.xlu0
    %v1821 = vpop.trf.xlu0
    %v1822 = vpop.trf.xlu0
    %v1823 = vpop.trf.xlu0
    %v1824 = vpop.trf.xlu0
    %v1825 = vpop.trf.xlu0
    %v1826 = vpop.trf.xlu0
    %v1827 = vpop.trf.xlu0
    %v1828 = vpop.trf.xlu0
    %v1829 = vpop.trf.xlu0
    %v1831 = vsel %vm1094, %v1814, 0
    %1833 = vmatprep.subr.mxu0 0.0
    %1834 = vmatpush1.msra.mxu0 %v60
    %1835 = vmatprep.subr.mxu0 0.0
    %1836 = vmatpush1.msra.mxu0 %v61
    %1837 = vmatprep.subr.mxu0 0.0
    %1838 = vmatpush1.msra.mxu0 0.0
    %1839 = vmatprep.subr.mxu0 0.0
    %1840 = vmatpush1.msra.mxu0 0.0
    %1841 = vmatprep.subr.mxu0 0.0
    %1842 = vmatpush1.msra.mxu0 0.0
    %1843 = vmatprep.subr.mxu0 0.0
    %1844 = vmatpush1.msra.mxu0 0.0
    %1845 = vmatprep.subr.mxu0 0.0
    %1846 = vmatpush1.msra.mxu0 0.0
    %1847 = vmatprep.subr.mxu0 0.0
    %1848 = vmatpush1.msra.mxu0 0.0
    %1849 = vmatprep.subr.mxu0 0.0
    %1850 = vmatpush1.msra.mxu0 0.0
    %1851 = vmatprep.subr.mxu0 0.0
    %1852 = vmatpush1.msra.mxu0 0.0
    %1853 = vmatprep.subr.mxu0 0.0
    %1854 = vmatpush1.msra.mxu0 0.0
    %1855 = vmatprep.subr.mxu0 0.0
    %1856 = vmatpush1.msra.mxu0 0.0
    %1857 = vmatprep.subr.mxu0 0.0
    %1858 = vmatpush1.msra.mxu0 0.0
    %1859 = vmatprep.subr.mxu0 0.0
    %1860 = vmatpush1.msra.mxu0 0.0
    %1861 = vmatprep.subr.mxu0 0.0
    %1862 = vmatpush1.msra.mxu0 0.0
    %1863 = vmatprep.subr.mxu0 0.0
    %1864 = vmatpush1.msra.mxu0 0.0
    %1865 = vmatprep.subr.mxu0 0.0
    %1866 = vmatpush1.msra.mxu0 0.0
    %1867 = vmatprep.subr.mxu0 0.0
    %1868 = vmatpush1.msra.mxu0 0.0
    %1869 = vmatprep.subr.mxu0 0.0
    %1870 = vmatpush1.msra.mxu0 0.0
    %1871 = vmatprep.subr.mxu0 0.0
    %1872 = vmatpush1.msra.mxu0 0.0
    %1873 = vmatprep.subr.mxu0 0.0
    %1874 = vmatpush1.msra.mxu0 0.0
    %1875 = vmatprep.subr.mxu0 0.0
    %1876 = vmatpush1.msra.mxu0 0.0
    %1877 = vmatprep.subr.mxu0 0.0
    %1878 = vmatpush1.msra.mxu0 0.0
    %1879 = vmatprep.subr.mxu0 0.0
    %1880 = vmatpush1.msra.mxu0 0.0
    %1881 = vmatprep.subr.mxu0 0.0
    %1882 = vmatpush1.msra.mxu0 0.0
    %1883 = vmatprep.subr.mxu0 0.0
    %1884 = vmatpush1.msra.mxu0 0.0
    %1885 = vmatprep.subr.mxu0 0.0
    %1886 = vmatpush1.msra.mxu0 0.0
    %1887 = vmatprep.subr.mxu0 0.0
    %1888 = vmatpush1.msra.mxu0 0.0
    %1889 = vmatprep.subr.mxu0 0.0
    %1890 = vmatpush1.msra.mxu0 0.0
    %1891 = vmatprep.subr.mxu0 0.0
    %1892 = vmatpush1.msra.mxu0 0.0
    %1893 = vmatprep.subr.mxu0 0.0
    %1894 = vmatpush1.msra.mxu0 0.0
    %1895 = vmatprep.subr.mxu0 0.0
    %1896 = vmatpush1.msra.mxu0 0.0
    %1897 = vmatprep.mubr.f32.mxu0 0.0
    %1898 = vmatmul.mubr.f32.gmra.mrb[0].mxu0 %v1831
    %v1899 = vpop.f32.mrb[0].mxu0
    %v1900 = vadd.f32 0.0, %v1899
    %v1901 = vpop.f32.mrb[0].mxu0
    %1902 = vdwg.mxu0
    %1903 = vxpose.xlu0.b32.start [1/16] %v1046, 128
    %1904 = vxpose.xlu0.b32.cont [2/16] %v1047, 128
    %1905 = vxpose.xlu0.b32.cont [3/16] 0.0, 128
    %1906 = vxpose.xlu0.b32.cont [4/16] 0.0, 128
    %1907 = vxpose.xlu0.b32.cont [5/16] 0.0, 128
    %1908 = vxpose.xlu0.b32.cont [6/16] 0.0, 128
    %1909 = vxpose.xlu0.b32.cont [7/16] 0.0, 128
    %1910 = vxpose.xlu0.b32.cont [8/16] 0.0, 128
    %1911 = vxpose.xlu0.b32.cont [9/16] 0.0, 128
    %1912 = vxpose.xlu0.b32.cont [10/16] 0.0, 128
    %1913 = vxpose.xlu0.b32.cont [11/16] 0.0, 128
    %1914 = vxpose.xlu0.b32.cont [12/16] 0.0, 128
    %1915 = vxpose.xlu0.b32.cont [13/16] 0.0, 128
    %1916 = vxpose.xlu0.b32.cont [14/16] 0.0, 128
    %1917 = vxpose.xlu0.b32.cont [15/16] 0.0, 128
    %1918 = vxpose.xlu0.b32.end [16/16] 0.0, 128
    %v1919 = vpop.trf.xlu0
    %v1920 = vpop.trf.xlu0
    %v1921 = vpop.trf.xlu0
    %v1922 = vpop.trf.xlu0
    %v1923 = vpop.trf.xlu0
    %v1924 = vpop.trf.xlu0
    %v1925 = vpop.trf.xlu0
    %v1926 = vpop.trf.xlu0
    %v1927 = vpop.trf.xlu0
    %v1928 = vpop.trf.xlu0
    %v1929 = vpop.trf.xlu0
    %v1930 = vpop.trf.xlu0
    %v1931 = vpop.trf.xlu0
    %v1932 = vpop.trf.xlu0
    %v1933 = vpop.trf.xlu0
    %v1934 = vpop.trf.xlu0
    %v1936 = vsel %vm1094, %v1919, 0
    %1938 = vmatprep.subr.mxu0 0.0
    %1939 = vmatpush1.msra.mxu0 %v62
    %1940 = vmatprep.subr.mxu0 0.0
    %1941 = vmatpush1.msra.mxu0 %v63
    %1942 = vmatprep.subr.mxu0 0.0
    %1943 = vmatpush1.msra.mxu0 0.0
    %1944 = vmatprep.subr.mxu0 0.0
    %1945 = vmatpush1.msra.mxu0 0.0
    %1946 = vmatprep.subr.mxu0 0.0
    %1947 = vmatpush1.msra.mxu0 0.0
    %1948 = vmatprep.subr.mxu0 0.0
    %1949 = vmatpush1.msra.mxu0 0.0
    %1950 = vmatprep.subr.mxu0 0.0
    %1951 = vmatpush1.msra.mxu0 0.0
    %1952 = vmatprep.subr.mxu0 0.0
    %1953 = vmatpush1.msra.mxu0 0.0
    %1954 = vmatprep.subr.mxu0 0.0
    %1955 = vmatpush1.msra.mxu0 0.0
    %1956 = vmatprep.subr.mxu0 0.0
    %1957 = vmatpush1.msra.mxu0 0.0
    %1958 = vmatprep.subr.mxu0 0.0
    %1959 = vmatpush1.msra.mxu0 0.0
    %1960 = vmatprep.subr.mxu0 0.0
    %1961 = vmatpush1.msra.mxu0 0.0
    %1962 = vmatprep.subr.mxu0 0.0
    %1963 = vmatpush1.msra.mxu0 0.0
    %1964 = vmatprep.subr.mxu0 0.0
    %1965 = vmatpush1.msra.mxu0 0.0
    %1966 = vmatprep.subr.mxu0 0.0
    %1967 = vmatpush1.msra.mxu0 0.0
    %1968 = vmatprep.subr.mxu0 0.0
    %1969 = vmatpush1.msra.mxu0 0.0
    %1970 = vmatprep.subr.mxu0 0.0
    %1971 = vmatpush1.msra.mxu0 0.0
    %1972 = vmatprep.subr.mxu0 0.0
    %1973 = vmatpush1.msra.mxu0 0.0
    %1974 = vmatprep.subr.mxu0 0.0
    %1975 = vmatpush1.msra.mxu0 0.0
    %1976 = vmatprep.subr.mxu0 0.0
    %1977 = vmatpush1.msra.mxu0 0.0
    %1978 = vmatprep.subr.mxu0 0.0
    %1979 = vmatpush1.msra.mxu0 0.0
    %1980 = vmatprep.subr.mxu0 0.0
    %1981 = vmatpush1.msra.mxu0 0.0
    %1982 = vmatprep.subr.mxu0 0.0
    %1983 = vmatpush1.msra.mxu0 0.0
    %1984 = vmatprep.subr.mxu0 0.0
    %1985 = vmatpush1.msra.mxu0 0.0
    %1986 = vmatprep.subr.mxu0 0.0
    %1987 = vmatpush1.msra.mxu0 0.0
    %1988 = vmatprep.subr.mxu0 0.0
    %1989 = vmatpush1.msra.mxu0 0.0
    %1990 = vmatprep.subr.mxu0 0.0
    %1991 = vmatpush1.msra.mxu0 0.0
    %1992 = vmatprep.subr.mxu0 0.0
    %1993 = vmatpush1.msra.mxu0 0.0
    %1994 = vmatprep.subr.mxu0 0.0
    %1995 = vmatpush1.msra.mxu0 0.0
    %1996 = vmatprep.subr.mxu0 0.0
    %1997 = vmatpush1.msra.mxu0 0.0
    %1998 = vmatprep.subr.mxu0 0.0
    %1999 = vmatpush1.msra.mxu0 0.0
    %2000 = vmatprep.subr.mxu0 0.0
    %2001 = vmatpush1.msra.mxu0 0.0
    %2002 = vmatprep.mubr.f32.mxu0 0.0
    %2003 = vmatmul.mubr.f32.gmra.mrb[0].mxu0 %v1936
    %v2004 = vpop.f32.mrb[0].mxu0
    %v2005 = vadd.f32 0.0, %v2004
    %v2006 = vpop.f32.mrb[0].mxu0
    %2007 = vdwg.mxu0
    %2008 = vxpose.xlu0.b32.start [1/16] %v1048, 128
    %2009 = vxpose.xlu0.b32.cont [2/16] %v1049, 128
    %2010 = vxpose.xlu0.b32.cont [3/16] 0.0, 128
    %2011 = vxpose.xlu0.b32.cont [4/16] 0.0, 128
    %2012 = vxpose.xlu0.b32.cont [5/16] 0.0, 128
    %2013 = vxpose.xlu0.b32.cont [6/16] 0.0, 128
    %2014 = vxpose.xlu0.b32.cont [7/16] 0.0, 128
    %2015 = vxpose.xlu0.b32.cont [8/16] 0.0, 128
    %2016 = vxpose.xlu0.b32.cont [9/16] 0.0, 128
    %2017 = vxpose.xlu0.b32.cont [10/16] 0.0, 128
    %2018 = vxpose.xlu0.b32.cont [11/16] 0.0, 128
    %2019 = vxpose.xlu0.b32.cont [12/16] 0.0, 128
    %2020 = vxpose.xlu0.b32.cont [13/16] 0.0, 128
    %2021 = vxpose.xlu0.b32.cont [14/16] 0.0, 128
    %2022 = vxpose.xlu0.b32.cont [15/16] 0.0, 128
    %2023 = vxpose.xlu0.b32.end [16/16] 0.0, 128
    %v2024 = vpop.trf.xlu0
    %v2025 = vpop.trf.xlu0
    %v2026 = vpop.trf.xlu0
    %v2027 = vpop.trf.xlu0
    %v2028 = vpop.trf.xlu0
    %v2029 = vpop.trf.xlu0
    %v2030 = vpop.trf.xlu0
    %v2031 = vpop.trf.xlu0
    %v2032 = vpop.trf.xlu0
    %v2033 = vpop.trf.xlu0
    %v2034 = vpop.trf.xlu0
    %v2035 = vpop.trf.xlu0
    %v2036 = vpop.trf.xlu0
    %v2037 = vpop.trf.xlu0
    %v2038 = vpop.trf.xlu0
    %v2039 = vpop.trf.xlu0
    %v2041 = vsel %vm1094, %v2024, 0
    %2043 = vmatprep.subr.mxu0 0.0
    %2044 = vmatpush1.msra.mxu0 %v64
    %2045 = vmatprep.subr.mxu0 0.0
    %2046 = vmatpush1.msra.mxu0 %v65
    %2047 = vmatprep.subr.mxu0 0.0
    %2048 = vmatpush1.msra.mxu0 0.0
    %2049 = vmatprep.subr.mxu0 0.0
    %2050 = vmatpush1.msra.mxu0 0.0
    %2051 = vmatprep.subr.mxu0 0.0
    %2052 = vmatpush1.msra.mxu0 0.0
    %2053 = vmatprep.subr.mxu0 0.0
    %2054 = vmatpush1.msra.mxu0 0.0
    %2055 = vmatprep.subr.mxu0 0.0
    %2056 = vmatpush1.msra.mxu0 0.0
    %2057 = vmatprep.subr.mxu0 0.0
    %2058 = vmatpush1.msra.mxu0 0.0
    %2059 = vmatprep.subr.mxu0 0.0
    %2060 = vmatpush1.msra.mxu0 0.0
    %2061 = vmatprep.subr.mxu0 0.0
    %2062 = vmatpush1.msra.mxu0 0.0
    %2063 = vmatprep.subr.mxu0 0.0
    %2064 = vmatpush1.msra.mxu0 0.0
    %2065 = vmatprep.subr.mxu0 0.0
    %2066 = vmatpush1.msra.mxu0 0.0
    %2067 = vmatprep.subr.mxu0 0.0
    %2068 = vmatpush1.msra.mxu0 0.0
    %2069 = vmatprep.subr.mxu0 0.0
    %2070 = vmatpush1.msra.mxu0 0.0
    %2071 = vmatprep.subr.mxu0 0.0
    %2072 = vmatpush1.msra.mxu0 0.0
    %2073 = vmatprep.subr.mxu0 0.0
    %2074 = vmatpush1.msra.mxu0 0.0
    %2075 = vmatprep.subr.mxu0 0.0
    %2076 = vmatpush1.msra.mxu0 0.0
    %2077 = vmatprep.subr.mxu0 0.0
    %2078 = vmatpush1.msra.mxu0 0.0
    %2079 = vmatprep.subr.mxu0 0.0
    %2080 = vmatpush1.msra.mxu0 0.0
    %2081 = vmatprep.subr.mxu0 0.0
    %2082 = vmatpush1.msra.mxu0 0.0
    %2083 = vmatprep.subr.mxu0 0.0
    %2084 = vmatpush1.msra.mxu0 0.0
    %2085 = vmatprep.subr.mxu0 0.0
    %2086 = vmatpush1.msra.mxu0 0.0
    %2087 = vmatprep.subr.mxu0 0.0
    %2088 = vmatpush1.msra.mxu0 0.0
    %2089 = vmatprep.subr.mxu0 0.0
    %2090 = vmatpush1.msra.mxu0 0.0
    %2091 = vmatprep.subr.mxu0 0.0
    %2092 = vmatpush1.msra.mxu0 0.0
    %2093 = vmatprep.subr.mxu0 0.0
    %2094 = vmatpush1.msra.mxu0 0.0
    %2095 = vmatprep.subr.mxu0 0.0
    %2096 = vmatpush1.msra.mxu0 0.0
    %2097 = vmatprep.subr.mxu0 0.0
    %2098 = vmatpush1.msra.mxu0 0.0
    %2099 = vmatprep.subr.mxu0 0.0
    %2100 = vmatpush1.msra.mxu0 0.0
    %2101 = vmatprep.subr.mxu0 0.0
    %2102 = vmatpush1.msra.mxu0 0.0
    %2103 = vmatprep.subr.mxu0 0.0
    %2104 = vmatpush1.msra.mxu0 0.0
    %2105 = vmatprep.subr.mxu0 0.0
    %2106 = vmatpush1.msra.mxu0 0.0
    %2107 = vmatprep.mubr.f32.mxu0 0.0
    %2108 = vmatmul.mubr.f32.gmra.mrb[0].mxu0 %v2041
    %v2109 = vpop.f32.mrb[0].mxu0
    %v2110 = vadd.f32 0.0, %v2109
    %v2111 = vpop.f32.mrb[0].mxu0
    %2112 = vdwg.mxu0
    %2113 = vxpose.xlu0.b32.start [1/16] %v1050, 128
    %2114 = vxpose.xlu0.b32.cont [2/16] %v1051, 128
    %2115 = vxpose.xlu0.b32.cont [3/16] 0.0, 128
    %2116 = vxpose.xlu0.b32.cont [4/16] 0.0, 128
    %2117 = vxpose.xlu0.b32.cont [5/16] 0.0, 128
    %2118 = vxpose.xlu0.b32.cont [6/16] 0.0, 128
    %2119 = vxpose.xlu0.b32.cont [7/16] 0.0, 128
    %2120 = vxpose.xlu0.b32.cont [8/16] 0.0, 128
    %2121 = vxpose.xlu0.b32.cont [9/16] 0.0, 128
    %2122 = vxpose.xlu0.b32.cont [10/16] 0.0, 128
    %2123 = vxpose.xlu0.b32.cont [11/16] 0.0, 128
    %2124 = vxpose.xlu0.b32.cont [12/16] 0.0, 128
    %2125 = vxpose.xlu0.b32.cont [13/16] 0.0, 128
    %2126 = vxpose.xlu0.b32.cont [14/16] 0.0, 128
    %2127 = vxpose.xlu0.b32.cont [15/16] 0.0, 128
    %2128 = vxpose.xlu0.b32.end [16/16] 0.0, 128
    %v2129 = vpop.trf.xlu0
    %v2130 = vpop.trf.xlu0
    %v2131 = vpop.trf.xlu0
    %v2132 = vpop.trf.xlu0
    %v2133 = vpop.trf.xlu0
    %v2134 = vpop.trf.xlu0
    %v2135 = vpop.trf.xlu0
    %v2136 = vpop.trf.xlu0
    %v2137 = vpop.trf.xlu0
    %v2138 = vpop.trf.xlu0
    %v2139 = vpop.trf.xlu0
    %v2140 = vpop.trf.xlu0
    %v2141 = vpop.trf.xlu0
    %v2142 = vpop.trf.xlu0
    %v2143 = vpop.trf.xlu0
    %v2144 = vpop.trf.xlu0
    %v2146 = vsel %vm1094, %v2129, 0
    %2148 = vmatprep.subr.mxu0 0.0
    %2149 = vmatpush1.msra.mxu0 %v66
    %2150 = vmatprep.subr.mxu0 0.0
    %2151 = vmatpush1.msra.mxu0 %v67
    %2152 = vmatprep.subr.mxu0 0.0
    %2153 = vmatpush1.msra.mxu0 0.0
    %2154 = vmatprep.subr.mxu0 0.0
    %2155 = vmatpush1.msra.mxu0 0.0
    %2156 = vmatprep.subr.mxu0 0.0
    %2157 = vmatpush1.msra.mxu0 0.0
    %2158 = vmatprep.subr.mxu0 0.0
    %2159 = vmatpush1.msra.mxu0 0.0
    %2160 = vmatprep.subr.mxu0 0.0
    %2161 = vmatpush1.msra.mxu0 0.0
    %2162 = vmatprep.subr.mxu0 0.0
    %2163 = vmatpush1.msra.mxu0 0.0
    %2164 = vmatprep.subr.mxu0 0.0
    %2165 = vmatpush1.msra.mxu0 0.0
    %2166 = vmatprep.subr.mxu0 0.0
    %2167 = vmatpush1.msra.mxu0 0.0
    %2168 = vmatprep.subr.mxu0 0.0
    %2169 = vmatpush1.msra.mxu0 0.0
    %2170 = vmatprep.subr.mxu0 0.0
    %2171 = vmatpush1.msra.mxu0 0.0
    %2172 = vmatprep.subr.mxu0 0.0
    %2173 = vmatpush1.msra.mxu0 0.0
    %2174 = vmatprep.subr.mxu0 0.0
    %2175 = vmatpush1.msra.mxu0 0.0
    %2176 = vmatprep.subr.mxu0 0.0
    %2177 = vmatpush1.msra.mxu0 0.0
    %2178 = vmatprep.subr.mxu0 0.0
    %2179 = vmatpush1.msra.mxu0 0.0
    %2180 = vmatprep.subr.mxu0 0.0
    %2181 = vmatpush1.msra.mxu0 0.0
    %2182 = vmatprep.subr.mxu0 0.0
    %2183 = vmatpush1.msra.mxu0 0.0
    %2184 = vmatprep.subr.mxu0 0.0
    %2185 = vmatpush1.msra.mxu0 0.0
    %2186 = vmatprep.subr.mxu0 0.0
    %2187 = vmatpush1.msra.mxu0 0.0
    %2188 = vmatprep.subr.mxu0 0.0
    %2189 = vmatpush1.msra.mxu0 0.0
    %2190 = vmatprep.subr.mxu0 0.0
    %2191 = vmatpush1.msra.mxu0 0.0
    %2192 = vmatprep.subr.mxu0 0.0
    %2193 = vmatpush1.msra.mxu0 0.0
    %2194 = vmatprep.subr.mxu0 0.0
    %2195 = vmatpush1.msra.mxu0 0.0
    %2196 = vmatprep.subr.mxu0 0.0
    %2197 = vmatpush1.msra.mxu0 0.0
    %2198 = vmatprep.subr.mxu0 0.0
    %2199 = vmatpush1.msra.mxu0 0.0
    %2200 = vmatprep.subr.mxu0 0.0
    %2201 = vmatpush1.msra.mxu0 0.0
    %2202 = vmatprep.subr.mxu0 0.0
    %2203 = vmatpush1.msra.mxu0 0.0
    %2204 = vmatprep.subr.mxu0 0.0
    %2205 = vmatpush1.msra.mxu0 0.0
    %2206 = vmatprep.subr.mxu0 0.0
    %2207 = vmatpush1.msra.mxu0 0.0
    %2208 = vmatprep.subr.mxu0 0.0
    %2209 = vmatpush1.msra.mxu0 0.0
    %2210 = vmatprep.subr.mxu0 0.0
    %2211 = vmatpush1.msra.mxu0 0.0
    %2212 = vmatprep.mubr.f32.mxu0 0.0
    %2213 = vmatmul.mubr.f32.gmra.mrb[0].mxu0 %v2146
    %v2214 = vpop.f32.mrb[0].mxu0
    %v2215 = vadd.f32 0.0, %v2214
    %v2216 = vpop.f32.mrb[0].mxu0
    %2217 = vdwg.mxu0
    %2218 = vxpose.xlu0.b32.start [1/16] %v1052, 128
    %2219 = vxpose.xlu0.b32.cont [2/16] %v1053, 128
    %2220 = vxpose.xlu0.b32.cont [3/16] 0.0, 128
    %2221 = vxpose.xlu0.b32.cont [4/16] 0.0, 128
    %2222 = vxpose.xlu0.b32.cont [5/16] 0.0, 128
    %2223 = vxpose.xlu0.b32.cont [6/16] 0.0, 128
    %2224 = vxpose.xlu0.b32.cont [7/16] 0.0, 128
    %2225 = vxpose.xlu0.b32.cont [8/16] 0.0, 128
    %2226 = vxpose.xlu0.b32.cont [9/16] 0.0, 128
    %2227 = vxpose.xlu0.b32.cont [10/16] 0.0, 128
    %2228 = vxpose.xlu0.b32.cont [11/16] 0.0, 128
    %2229 = vxpose.xlu0.b32.cont [12/16] 0.0, 128
    %2230 = vxpose.xlu0.b32.cont [13/16] 0.0, 128
    %2231 = vxpose.xlu0.b32.cont [14/16] 0.0, 128
    %2232 = vxpose.xlu0.b32.cont [15/16] 0.0, 128
    %2233 = vxpose.xlu0.b32.end [16/16] 0.0, 128
    %v2234 = vpop.trf.xlu0
    %v2235 = vpop.trf.xlu0
    %v2236 = vpop.trf.xlu0
    %v2237 = vpop.trf.xlu0
    %v2238 = vpop.trf.xlu0
    %v2239 = vpop.trf.xlu0
    %v2240 = vpop.trf.xlu0
    %v2241 = vpop.trf.xlu0
    %v2242 = vpop.trf.xlu0
    %v2243 = vpop.trf.xlu0
    %v2244 = vpop.trf.xlu0
    %v2245 = vpop.trf.xlu0
    %v2246 = vpop.trf.xlu0
    %v2247 = vpop.trf.xlu0
    %v2248 = vpop.trf.xlu0
    %v2249 = vpop.trf.xlu0
    %v2251 = vsel %vm1094, %v2234, 0
    %2253 = vmatprep.subr.mxu0 0.0
    %2254 = vmatpush1.msra.mxu0 %v68
    %2255 = vmatprep.subr.mxu0 0.0
    %2256 = vmatpush1.msra.mxu0 %v69
    %2257 = vmatprep.subr.mxu0 0.0
    %2258 = vmatpush1.msra.mxu0 0.0
    %2259 = vmatprep.subr.mxu0 0.0
    %2260 = vmatpush1.msra.mxu0 0.0
    %2261 = vmatprep.subr.mxu0 0.0
    %2262 = vmatpush1.msra.mxu0 0.0
    %2263 = vmatprep.subr.mxu0 0.0
    %2264 = vmatpush1.msra.mxu0 0.0
    %2265 = vmatprep.subr.mxu0 0.0
    %2266 = vmatpush1.msra.mxu0 0.0
    %2267 = vmatprep.subr.mxu0 0.0
    %2268 = vmatpush1.msra.mxu0 0.0
    %2269 = vmatprep.subr.mxu0 0.0
    %2270 = vmatpush1.msra.mxu0 0.0
    %2271 = vmatprep.subr.mxu0 0.0
    %2272 = vmatpush1.msra.mxu0 0.0
    %2273 = vmatprep.subr.mxu0 0.0
    %2274 = vmatpush1.msra.mxu0 0.0
    %2275 = vmatprep.subr.mxu0 0.0
    %2276 = vmatpush1.msra.mxu0 0.0
    %2277 = vmatprep.subr.mxu0 0.0
    %2278 = vmatpush1.msra.mxu0 0.0
    %2279 = vmatprep.subr.mxu0 0.0
    %2280 = vmatpush1.msra.mxu0 0.0
    %2281 = vmatprep.subr.mxu0 0.0
    %2282 = vmatpush1.msra.mxu0 0.0
    %2283 = vmatprep.subr.mxu0 0.0
    %2284 = vmatpush1.msra.mxu0 0.0
    %2285 = vmatprep.subr.mxu0 0.0
    %2286 = vmatpush1.msra.mxu0 0.0
    %2287 = vmatprep.subr.mxu0 0.0
    %2288 = vmatpush1.msra.mxu0 0.0
    %2289 = vmatprep.subr.mxu0 0.0
    %2290 = vmatpush1.msra.mxu0 0.0
    %2291 = vmatprep.subr.mxu0 0.0
    %2292 = vmatpush1.msra.mxu0 0.0
    %2293 = vmatprep.subr.mxu0 0.0
    %2294 = vmatpush1.msra.mxu0 0.0
    %2295 = vmatprep.subr.mxu0 0.0
    %2296 = vmatpush1.msra.mxu0 0.0
    %2297 = vmatprep.subr.mxu0 0.0
    %2298 = vmatpush1.msra.mxu0 0.0
    %2299 = vmatprep.subr.mxu0 0.0
    %2300 = vmatpush1.msra.mxu0 0.0
    %2301 = vmatprep.subr.mxu0 0.0
    %2302 = vmatpush1.msra.mxu0 0.0
    %2303 = vmatprep.subr.mxu0 0.0
    %2304 = vmatpush1.msra.mxu0 0.0
    %2305 = vmatprep.subr.mxu0 0.0
    %2306 = vmatpush1.msra.mxu0 0.0
    %2307 = vmatprep.subr.mxu0 0.0
    %2308 = vmatpush1.msra.mxu0 0.0
    %2309 = vmatprep.subr.mxu0 0.0
    %2310 = vmatpush1.msra.mxu0 0.0
    %2311 = vmatprep.subr.mxu0 0.0
    %2312 = vmatpush1.msra.mxu0 0.0
    %2313 = vmatprep.subr.mxu0 0.0
    %2314 = vmatpush1.msra.mxu0 0.0
    %2315 = vmatprep.subr.mxu0 0.0
    %2316 = vmatpush1.msra.mxu0 0.0
    %2317 = vmatprep.mubr.f32.mxu0 0.0
    %2318 = vmatmul.mubr.f32.gmra.mrb[0].mxu0 %v2251
    %v2319 = vpop.f32.mrb[0].mxu0
    %v2320 = vadd.f32 0.0, %v2319
    %v2321 = vpop.f32.mrb[0].mxu0
    %2322 = vdwg.mxu0
    %2323 = vxpose.xlu0.b32.start [1/16] %v1054, 128
    %2324 = vxpose.xlu0.b32.cont [2/16] %v1055, 128
    %2325 = vxpose.xlu0.b32.cont [3/16] 0.0, 128
    %2326 = vxpose.xlu0.b32.cont [4/16] 0.0, 128
    %2327 = vxpose.xlu0.b32.cont [5/16] 0.0, 128
    %2328 = vxpose.xlu0.b32.cont [6/16] 0.0, 128
    %2329 = vxpose.xlu0.b32.cont [7/16] 0.0, 128
    %2330 = vxpose.xlu0.b32.cont [8/16] 0.0, 128
    %2331 = vxpose.xlu0.b32.cont [9/16] 0.0, 128
    %2332 = vxpose.xlu0.b32.cont [10/16] 0.0, 128
    %2333 = vxpose.xlu0.b32.cont [11/16] 0.0, 128
    %2334 = vxpose.xlu0.b32.cont [12/16] 0.0, 128
    %2335 = vxpose.xlu0.b32.cont [13/16] 0.0, 128
    %2336 = vxpose.xlu0.b32.cont [14/16] 0.0, 128
    %2337 = vxpose.xlu0.b32.cont [15/16] 0.0, 128
    %2338 = vxpose.xlu0.b32.end [16/16] 0.0, 128
    %v2339 = vpop.trf.xlu0
    %v2340 = vpop.trf.xlu0
    %v2341 = vpop.trf.xlu0
    %v2342 = vpop.trf.xlu0
    %v2343 = vpop.trf.xlu0
    %v2344 = vpop.trf.xlu0
    %v2345 = vpop.trf.xlu0
    %v2346 = vpop.trf.xlu0
    %v2347 = vpop.trf.xlu0
    %v2348 = vpop.trf.xlu0
    %v2349 = vpop.trf.xlu0
    %v2350 = vpop.trf.xlu0
    %v2351 = vpop.trf.xlu0
    %v2352 = vpop.trf.xlu0
    %v2353 = vpop.trf.xlu0
    %v2354 = vpop.trf.xlu0
    %v2356 = vsel %vm1094, %v2339, 0
    %2358 = vmatprep.subr.mxu0 0.0
    %2359 = vmatpush1.msra.mxu0 %v70
    %2360 = vmatprep.subr.mxu0 0.0
    %2361 = vmatpush1.msra.mxu0 %v71
    %2362 = vmatprep.subr.mxu0 0.0
    %2363 = vmatpush1.msra.mxu0 0.0
    %2364 = vmatprep.subr.mxu0 0.0
    %2365 = vmatpush1.msra.mxu0 0.0
    %2366 = vmatprep.subr.mxu0 0.0
    %2367 = vmatpush1.msra.mxu0 0.0
    %2368 = vmatprep.subr.mxu0 0.0
    %2369 = vmatpush1.msra.mxu0 0.0
    %2370 = vmatprep.subr.mxu0 0.0
    %2371 = vmatpush1.msra.mxu0 0.0
    %2372 = vmatprep.subr.mxu0 0.0
    %2373 = vmatpush1.msra.mxu0 0.0
    %2374 = vmatprep.subr.mxu0 0.0
    %2375 = vmatpush1.msra.mxu0 0.0
    %2376 = vmatprep.subr.mxu0 0.0
    %2377 = vmatpush1.msra.mxu0 0.0
    %2378 = vmatprep.subr.mxu0 0.0
    %2379 = vmatpush1.msra.mxu0 0.0
    %2380 = vmatprep.subr.mxu0 0.0
    %2381 = vmatpush1.msra.mxu0 0.0
    %2382 = vmatprep.subr.mxu0 0.0
    %2383 = vmatpush1.msra.mxu0 0.0
    %2384 = vmatprep.subr.mxu0 0.0
    %2385 = vmatpush1.msra.mxu0 0.0
    %2386 = vmatprep.subr.mxu0 0.0
    %2387 = vmatpush1.msra.mxu0 0.0
    %2388 = vmatprep.subr.mxu0 0.0
    %2389 = vmatpush1.msra.mxu0 0.0
    %2390 = vmatprep.subr.mxu0 0.0
    %2391 = vmatpush1.msra.mxu0 0.0
    %2392 = vmatprep.subr.mxu0 0.0
    %2393 = vmatpush1.msra.mxu0 0.0
    %2394 = vmatprep.subr.mxu0 0.0
    %2395 = vmatpush1.msra.mxu0 0.0
    %2396 = vmatprep.subr.mxu0 0.0
    %2397 = vmatpush1.msra.mxu0 0.0
    %2398 = vmatprep.subr.mxu0 0.0
    %2399 = vmatpush1.msra.mxu0 0.0
    %2400 = vmatprep.subr.mxu0 0.0
    %2401 = vmatpush1.msra.mxu0 0.0
    %2402 = vmatprep.subr.mxu0 0.0
    %2403 = vmatpush1.msra.mxu0 0.0
    %2404 = vmatprep.subr.mxu0 0.0
    %2405 = vmatpush1.msra.mxu0 0.0
    %2406 = vmatprep.subr.mxu0 0.0
    %2407 = vmatpush1.msra.mxu0 0.0
    %2408 = vmatprep.subr.mxu0 0.0
    %2409 = vmatpush1.msra.mxu0 0.0
    %2410 = vmatprep.subr.mxu0 0.0
    %2411 = vmatpush1.msra.mxu0 0.0
    %2412 = vmatprep.subr.mxu0 0.0
    %2413 = vmatpush1.msra.mxu0 0.0
    %2414 = vmatprep.subr.mxu0 0.0
    %2415 = vmatpush1.msra.mxu0 0.0
    %2416 = vmatprep.subr.mxu0 0.0
    %2417 = vmatpush1.msra.mxu0 0.0
    %2418 = vmatprep.subr.mxu0 0.0
    %2419 = vmatpush1.msra.mxu0 0.0
    %2420 = vmatprep.subr.mxu0 0.0
    %2421 = vmatpush1.msra.mxu0 0.0
    %2422 = vmatprep.mubr.f32.mxu0 0.0
    %2423 = vmatmul.mubr.f32.gmra.mrb[0].mxu0 %v2356
    %v2424 = vpop.f32.mrb[0].mxu0
    %v2425 = vadd.f32 0.0, %v2424
    %v2426 = vpop.f32.mrb[0].mxu0
    %2427 = vdwg.mxu0
    %2428 = vxpose.xlu0.b32.start [1/16] %v1056, 128
    %2429 = vxpose.xlu0.b32.cont [2/16] %v1057, 128
    %2430 = vxpose.xlu0.b32.cont [3/16] 0.0, 128
    %2431 = vxpose.xlu0.b32.cont [4/16] 0.0, 128
    %2432 = vxpose.xlu0.b32.cont [5/16] 0.0, 128
    %2433 = vxpose.xlu0.b32.cont [6/16] 0.0, 128
    %2434 = vxpose.xlu0.b32.cont [7/16] 0.0, 128
    %2435 = vxpose.xlu0.b32.cont [8/16] 0.0, 128
    %2436 = vxpose.xlu0.b32.cont [9/16] 0.0, 128
    %2437 = vxpose.xlu0.b32.cont [10/16] 0.0, 128
    %2438 = vxpose.xlu0.b32.cont [11/16] 0.0, 128
    %2439 = vxpose.xlu0.b32.cont [12/16] 0.0, 128
    %2440 = vxpose.xlu0.b32.cont [13/16] 0.0, 128
    %2441 = vxpose.xlu0.b32.cont [14/16] 0.0, 128
    %2442 = vxpose.xlu0.b32.cont [15/16] 0.0, 128
    %2443 = vxpose.xlu0.b32.end [16/16] 0.0, 128
    %v2444 = vpop.trf.xlu0
    %v2445 = vpop.trf.xlu0
    %v2446 = vpop.trf.xlu0
    %v2447 = vpop.trf.xlu0
    %v2448 = vpop.trf.xlu0
    %v2449 = vpop.trf.xlu0
    %v2450 = vpop.trf.xlu0
    %v2451 = vpop.trf.xlu0
    %v2452 = vpop.trf.xlu0
    %v2453 = vpop.trf.xlu0
    %v2454 = vpop.trf.xlu0
    %v2455 = vpop.trf.xlu0
    %v2456 = vpop.trf.xlu0
    %v2457 = vpop.trf.xlu0
    %v2458 = vpop.trf.xlu0
    %v2459 = vpop.trf.xlu0
    %v2461 = vsel %vm1094, %v2444, 0
    %2463 = vmatprep.subr.mxu0 0.0
    %2464 = vmatpush1.msra.mxu0 %v72
    %2465 = vmatprep.subr.mxu0 0.0
    %2466 = vmatpush1.msra.mxu0 %v73
    %2467 = vmatprep.subr.mxu0 0.0
    %2468 = vmatpush1.msra.mxu0 0.0
    %2469 = vmatprep.subr.mxu0 0.0
    %2470 = vmatpush1.msra.mxu0 0.0
    %2471 = vmatprep.subr.mxu0 0.0
    %2472 = vmatpush1.msra.mxu0 0.0
    %2473 = vmatprep.subr.mxu0 0.0
    %2474 = vmatpush1.msra.mxu0 0.0
    %2475 = vmatprep.subr.mxu0 0.0
    %2476 = vmatpush1.msra.mxu0 0.0
    %2477 = vmatprep.subr.mxu0 0.0
    %2478 = vmatpush1.msra.mxu0 0.0
    %2479 = vmatprep.subr.mxu0 0.0
    %2480 = vmatpush1.msra.mxu0 0.0
    %2481 = vmatprep.subr.mxu0 0.0
    %2482 = vmatpush1.msra.mxu0 0.0
    %2483 = vmatprep.subr.mxu0 0.0
    %2484 = vmatpush1.msra.mxu0 0.0
    %2485 = vmatprep.subr.mxu0 0.0
    %2486 = vmatpush1.msra.mxu0 0.0
    %2487 = vmatprep.subr.mxu0 0.0
    %2488 = vmatpush1.msra.mxu0 0.0
    %2489 = vmatprep.subr.mxu0 0.0
    %2490 = vmatpush1.msra.mxu0 0.0
    %2491 = vmatprep.subr.mxu0 0.0
    %2492 = vmatpush1.msra.mxu0 0.0
    %2493 = vmatprep.subr.mxu0 0.0
    %2494 = vmatpush1.msra.mxu0 0.0
    %2495 = vmatprep.subr.mxu0 0.0
    %2496 = vmatpush1.msra.mxu0 0.0
    %2497 = vmatprep.subr.mxu0 0.0
    %2498 = vmatpush1.msra.mxu0 0.0
    %2499 = vmatprep.subr.mxu0 0.0
    %2500 = vmatpush1.msra.mxu0 0.0
    %2501 = vmatprep.subr.mxu0 0.0
    %2502 = vmatpush1.msra.mxu0 0.0
    %2503 = vmatprep.subr.mxu0 0.0
    %2504 = vmatpush1.msra.mxu0 0.0
    %2505 = vmatprep.subr.mxu0 0.0
    %2506 = vmatpush1.msra.mxu0 0.0
    %2507 = vmatprep.subr.mxu0 0.0
    %2508 = vmatpush1.msra.mxu0 0.0
    %2509 = vmatprep.subr.mxu0 0.0
    %2510 = vmatpush1.msra.mxu0 0.0
    %2511 = vmatprep.subr.mxu0 0.0
    %2512 = vmatpush1.msra.mxu0 0.0
    %2513 = vmatprep.subr.mxu0 0.0
    %2514 = vmatpush1.msra.mxu0 0.0
    %2515 = vmatprep.subr.mxu0 0.0
    %2516 = vmatpush1.msra.mxu0 0.0
    %2517 = vmatprep.subr.mxu0 0.0
    %2518 = vmatpush1.msra.mxu0 0.0
    %2519 = vmatprep.subr.mxu0 0.0
    %2520 = vmatpush1.msra.mxu0 0.0
    %2521 = vmatprep.subr.mxu0 0.0
    %2522 = vmatpush1.msra.mxu0 0.0
    %2523 = vmatprep.subr.mxu0 0.0
    %2524 = vmatpush1.msra.mxu0 0.0
    %2525 = vmatprep.subr.mxu0 0.0
    %2526 = vmatpush1.msra.mxu0 0.0
    %2527 = vmatprep.mubr.f32.mxu0 0.0
    %2528 = vmatmul.mubr.f32.gmra.mrb[0].mxu0 %v2461
    %v2529 = vpop.f32.mrb[0].mxu0
    %v2530 = vadd.f32 0.0, %v2529
    %v2531 = vpop.f32.mrb[0].mxu0
    %2532 = vdwg.mxu0
    %2533 = vxpose.xlu0.b32.start [1/16] %v1058, 128
    %2534 = vxpose.xlu0.b32.cont [2/16] %v1059, 128
    %2535 = vxpose.xlu0.b32.cont [3/16] 0.0, 128
    %2536 = vxpose.xlu0.b32.cont [4/16] 0.0, 128
    %2537 = vxpose.xlu0.b32.cont [5/16] 0.0, 128
    %2538 = vxpose.xlu0.b32.cont [6/16] 0.0, 128
    %2539 = vxpose.xlu0.b32.cont [7/16] 0.0, 128
    %2540 = vxpose.xlu0.b32.cont [8/16] 0.0, 128
    %2541 = vxpose.xlu0.b32.cont [9/16] 0.0, 128
    %2542 = vxpose.xlu0.b32.cont [10/16] 0.0, 128
    %2543 = vxpose.xlu0.b32.cont [11/16] 0.0, 128
    %2544 = vxpose.xlu0.b32.cont [12/16] 0.0, 128
    %2545 = vxpose.xlu0.b32.cont [13/16] 0.0, 128
    %2546 = vxpose.xlu0.b32.cont [14/16] 0.0, 128
    %2547 = vxpose.xlu0.b32.cont [15/16] 0.0, 128
    %2548 = vxpose.xlu0.b32.end [16/16] 0.0, 128
    %v2549 = vpop.trf.xlu0
    %v2550 = vpop.trf.xlu0
    %v2551 = vpop.trf.xlu0
    %v2552 = vpop.trf.xlu0
    %v2553 = vpop.trf.xlu0
    %v2554 = vpop.trf.xlu0
    %v2555 = vpop.trf.xlu0
    %v2556 = vpop.trf.xlu0
    %v2557 = vpop.trf.xlu0
    %v2558 = vpop.trf.xlu0
    %v2559 = vpop.trf.xlu0
    %v2560 = vpop.trf.xlu0
    %v2561 = vpop.trf.xlu0
    %v2562 = vpop.trf.xlu0
    %v2563 = vpop.trf.xlu0
    %v2564 = vpop.trf.xlu0
    %v2566 = vsel %vm1094, %v2549, 0
    %2568 = vmatprep.subr.mxu0 0.0
    %2569 = vmatpush1.msra.mxu0 %v74
    %2570 = vmatprep.subr.mxu0 0.0
    %2571 = vmatpush1.msra.mxu0 %v75
    %2572 = vmatprep.subr.mxu0 0.0
    %2573 = vmatpush1.msra.mxu0 0.0
    %2574 = vmatprep.subr.mxu0 0.0
    %2575 = vmatpush1.msra.mxu0 0.0
    %2576 = vmatprep.subr.mxu0 0.0
    %2577 = vmatpush1.msra.mxu0 0.0
    %2578 = vmatprep.subr.mxu0 0.0
    %2579 = vmatpush1.msra.mxu0 0.0
    %2580 = vmatprep.subr.mxu0 0.0
    %2581 = vmatpush1.msra.mxu0 0.0
    %2582 = vmatprep.subr.mxu0 0.0
    %2583 = vmatpush1.msra.mxu0 0.0
    %2584 = vmatprep.subr.mxu0 0.0
    %2585 = vmatpush1.msra.mxu0 0.0
    %2586 = vmatprep.subr.mxu0 0.0
    %2587 = vmatpush1.msra.mxu0 0.0
    %2588 = vmatprep.subr.mxu0 0.0
    %2589 = vmatpush1.msra.mxu0 0.0
    %2590 = vmatprep.subr.mxu0 0.0
    %2591 = vmatpush1.msra.mxu0 0.0
    %2592 = vmatprep.subr.mxu0 0.0
    %2593 = vmatpush1.msra.mxu0 0.0
    %2594 = vmatprep.subr.mxu0 0.0
    %2595 = vmatpush1.msra.mxu0 0.0
    %2596 = vmatprep.subr.mxu0 0.0
    %2597 = vmatpush1.msra.mxu0 0.0
    %2598 = vmatprep.subr.mxu0 0.0
    %2599 = vmatpush1.msra.mxu0 0.0
    %2600 = vmatprep.subr.mxu0 0.0
    %2601 = vmatpush1.msra.mxu0 0.0
    %2602 = vmatprep.subr.mxu0 0.0
    %2603 = vmatpush1.msra.mxu0 0.0
    %2604 = vmatprep.subr.mxu0 0.0
    %2605 = vmatpush1.msra.mxu0 0.0
    %2606 = vmatprep.subr.mxu0 0.0
    %2607 = vmatpush1.msra.mxu0 0.0
    %2608 = vmatprep.subr.mxu0 0.0
    %2609 = vmatpush1.msra.mxu0 0.0
    %2610 = vmatprep.subr.mxu0 0.0
    %2611 = vmatpush1.msra.mxu0 0.0
    %2612 = vmatprep.subr.mxu0 0.0
    %2613 = vmatpush1.msra.mxu0 0.0
    %2614 = vmatprep.subr.mxu0 0.0
    %2615 = vmatpush1.msra.mxu0 0.0
    %2616 = vmatprep.subr.mxu0 0.0
    %2617 = vmatpush1.msra.mxu0 0.0
    %2618 = vmatprep.subr.mxu0 0.0
    %2619 = vmatpush1.msra.mxu0 0.0
    %2620 = vmatprep.subr.mxu0 0.0
    %2621 = vmatpush1.msra.mxu0 0.0
    %2622 = vmatprep.subr.mxu0 0.0
    %2623 = vmatpush1.msra.mxu0 0.0
    %2624 = vmatprep.subr.mxu0 0.0
    %2625 = vmatpush1.msra.mxu0 0.0
    %2626 = vmatprep.subr.mxu0 0.0
    %2627 = vmatpush1.msra.mxu0 0.0
    %2628 = vmatprep.subr.mxu0 0.0
    %2629 = vmatpush1.msra.mxu0 0.0
    %2630 = vmatprep.subr.mxu0 0.0
    %2631 = vmatpush1.msra.mxu0 0.0
    %2632 = vmatprep.mubr.f32.mxu0 0.0
    %2633 = vmatmul.mubr.f32.gmra.mrb[0].mxu0 %v2566
    %v2634 = vpop.f32.mrb[0].mxu0
    %v2635 = vadd.f32 0.0, %v2634
    %v2636 = vpop.f32.mrb[0].mxu0
    %2637 = vdwg.mxu0
    %2638 = vxpose.xlu0.b32.start [1/16] %v1060, 128
    %2639 = vxpose.xlu0.b32.cont [2/16] %v1061, 128
    %2640 = vxpose.xlu0.b32.cont [3/16] 0.0, 128
    %2641 = vxpose.xlu0.b32.cont [4/16] 0.0, 128
    %2642 = vxpose.xlu0.b32.cont [5/16] 0.0, 128
    %2643 = vxpose.xlu0.b32.cont [6/16] 0.0, 128
    %2644 = vxpose.xlu0.b32.cont [7/16] 0.0, 128
    %2645 = vxpose.xlu0.b32.cont [8/16] 0.0, 128
    %2646 = vxpose.xlu0.b32.cont [9/16] 0.0, 128
    %2647 = vxpose.xlu0.b32.cont [10/16] 0.0, 128
    %2648 = vxpose.xlu0.b32.cont [11/16] 0.0, 128
    %2649 = vxpose.xlu0.b32.cont [12/16] 0.0, 128
    %2650 = vxpose.xlu0.b32.cont [13/16] 0.0, 128
    %2651 = vxpose.xlu0.b32.cont [14/16] 0.0, 128
    %2652 = vxpose.xlu0.b32.cont [15/16] 0.0, 128
    %2653 = vxpose.xlu0.b32.end [16/16] 0.0, 128
    %v2654 = vpop.trf.xlu0
    %v2655 = vpop.trf.xlu0
    %v2656 = vpop.trf.xlu0
    %v2657 = vpop.trf.xlu0
    %v2658 = vpop.trf.xlu0
    %v2659 = vpop.trf.xlu0
    %v2660 = vpop.trf.xlu0
    %v2661 = vpop.trf.xlu0
    %v2662 = vpop.trf.xlu0
    %v2663 = vpop.trf.xlu0
    %v2664 = vpop.trf.xlu0
    %v2665 = vpop.trf.xlu0
    %v2666 = vpop.trf.xlu0
    %v2667 = vpop.trf.xlu0
    %v2668 = vpop.trf.xlu0
    %v2669 = vpop.trf.xlu0
    %v2671 = vsel %vm1094, %v2654, 0
    %2673 = vmatprep.subr.mxu0 0.0
    %2674 = vmatpush1.msra.mxu0 %v76
    %2675 = vmatprep.subr.mxu0 0.0
    %2676 = vmatpush1.msra.mxu0 %v77
    %2677 = vmatprep.subr.mxu0 0.0
    %2678 = vmatpush1.msra.mxu0 0.0
    %2679 = vmatprep.subr.mxu0 0.0
    %2680 = vmatpush1.msra.mxu0 0.0
    %2681 = vmatprep.subr.mxu0 0.0
    %2682 = vmatpush1.msra.mxu0 0.0
    %2683 = vmatprep.subr.mxu0 0.0
    %2684 = vmatpush1.msra.mxu0 0.0
    %2685 = vmatprep.subr.mxu0 0.0
    %2686 = vmatpush1.msra.mxu0 0.0
    %2687 = vmatprep.subr.mxu0 0.0
    %2688 = vmatpush1.msra.mxu0 0.0
    %2689 = vmatprep.subr.mxu0 0.0
    %2690 = vmatpush1.msra.mxu0 0.0
    %2691 = vmatprep.subr.mxu0 0.0
    %2692 = vmatpush1.msra.mxu0 0.0
    %2693 = vmatprep.subr.mxu0 0.0
    %2694 = vmatpush1.msra.mxu0 0.0
    %2695 = vmatprep.subr.mxu0 0.0
    %2696 = vmatpush1.msra.mxu0 0.0
    %2697 = vmatprep.subr.mxu0 0.0
    %2698 = vmatpush1.msra.mxu0 0.0
    %2699 = vmatprep.subr.mxu0 0.0
    %2700 = vmatpush1.msra.mxu0 0.0
    %2701 = vmatprep.subr.mxu0 0.0
    %2702 = vmatpush1.msra.mxu0 0.0
    %2703 = vmatprep.subr.mxu0 0.0
    %2704 = vmatpush1.msra.mxu0 0.0
    %2705 = vmatprep.subr.mxu0 0.0
    %2706 = vmatpush1.msra.mxu0 0.0
    %2707 = vmatprep.subr.mxu0 0.0
    %2708 = vmatpush1.msra.mxu0 0.0
    %2709 = vmatprep.subr.mxu0 0.0
    %2710 = vmatpush1.msra.mxu0 0.0
    %2711 = vmatprep.subr.mxu0 0.0
    %2712 = vmatpush1.msra.mxu0 0.0
    %2713 = vmatprep.subr.mxu0 0.0
    %2714 = vmatpush1.msra.mxu0 0.0
    %2715 = vmatprep.subr.mxu0 0.0
    %2716 = vmatpush1.msra.mxu0 0.0
    %2717 = vmatprep.subr.mxu0 0.0
    %2718 = vmatpush1.msra.mxu0 0.0
    %2719 = vmatprep.subr.mxu0 0.0
    %2720 = vmatpush1.msra.mxu0 0.0
    %2721 = vmatprep.subr.mxu0 0.0
    %2722 = vmatpush1.msra.mxu0 0.0
    %2723 = vmatprep.subr.mxu0 0.0
    %2724 = vmatpush1.msra.mxu0 0.0
    %2725 = vmatprep.subr.mxu0 0.0
    %2726 = vmatpush1.msra.mxu0 0.0
    %2727 = vmatprep.subr.mxu0 0.0
    %2728 = vmatpush1.msra.mxu0 0.0
    %2729 = vmatprep.subr.mxu0 0.0
    %2730 = vmatpush1.msra.mxu0 0.0
    %2731 = vmatprep.subr.mxu0 0.0
    %2732 = vmatpush1.msra.mxu0 0.0
    %2733 = vmatprep.subr.mxu0 0.0
    %2734 = vmatpush1.msra.mxu0 0.0
    %2735 = vmatprep.subr.mxu0 0.0
    %2736 = vmatpush1.msra.mxu0 0.0
    %2737 = vmatprep.mubr.f32.mxu0 0.0
    %2738 = vmatmul.mubr.f32.gmra.mrb[0].mxu0 %v2671
    %v2739 = vpop.f32.mrb[0].mxu0
    %v2740 = vadd.f32 0.0, %v2739
    %v2741 = vpop.f32.mrb[0].mxu0
    %2742 = vdwg.mxu0
    %v2744 = vsel %vm96, %v78, 0
    %v2747 = vsel %vm96, %v1165, 0
    %2749 = vmatprep.subr.mxu0 0.0
    %2750 = vmatpush1.xpose.msra.mxu0 %v2747
    %2751 = vmatprep.subr.mxu0 0.0
    %2752 = vmatpush1.xpose.msra.mxu0 0.0
    %2753 = vmatprep.subr.mxu0 0.0
    %2754 = vmatpush1.xpose.msra.mxu0 0.0
    %2755 = vmatprep.subr.mxu0 0.0
    %2756 = vmatpush1.xpose.msra.mxu0 0.0
    %2757 = vmatprep.subr.mxu0 0.0
    %2758 = vmatpush1.xpose.msra.mxu0 0.0
    %2759 = vmatprep.subr.mxu0 0.0
    %2760 = vmatpush1.xpose.msra.mxu0 0.0
    %2761 = vmatprep.subr.mxu0 0.0
    %2762 = vmatpush1.xpose.msra.mxu0 0.0
    %2763 = vmatprep.subr.mxu0 0.0
    %2764 = vmatpush1.xpose.msra.mxu0 0.0
    %2765 = vmatprep.subr.mxu0 0.0
    %2766 = vmatpush1.xpose.msra.mxu0 0.0
    %2767 = vmatprep.subr.mxu0 0.0
    %2768 = vmatpush1.xpose.msra.mxu0 0.0
    %2769 = vmatprep.subr.mxu0 0.0
    %2770 = vmatpush1.xpose.msra.mxu0 0.0
    %2771 = vmatprep.subr.mxu0 0.0
    %2772 = vmatpush1.xpose.msra.mxu0 0.0
    %2773 = vmatprep.subr.mxu0 0.0
    %2774 = vmatpush1.xpose.msra.mxu0 0.0
    %2775 = vmatprep.subr.mxu0 0.0
    %2776 = vmatpush1.xpose.msra.mxu0 0.0
    %2777 = vmatprep.subr.mxu0 0.0
    %2778 = vmatpush1.xpose.msra.mxu0 0.0
    %2779 = vmatprep.subr.mxu0 0.0
    %2780 = vmatpush1.xpose.msra.mxu0 0.0
    %2781 = vmatprep.subr.mxu0 0.0
    %2782 = vmatpush1.xpose.msra.mxu0 0.0
    %2783 = vmatprep.subr.mxu0 0.0
    %2784 = vmatpush1.xpose.msra.mxu0 0.0
    %2785 = vmatprep.subr.mxu0 0.0
    %2786 = vmatpush1.xpose.msra.mxu0 0.0
    %2787 = vmatprep.subr.mxu0 0.0
    %2788 = vmatpush1.xpose.msra.mxu0 0.0
    %2789 = vmatprep.subr.mxu0 0.0
    %2790 = vmatpush1.xpose.msra.mxu0 0.0
    %2791 = vmatprep.subr.mxu0 0.0
    %2792 = vmatpush1.xpose.msra.mxu0 0.0
    %2793 = vmatprep.subr.mxu0 0.0
    %2794 = vmatpush1.xpose.msra.mxu0 0.0
    %2795 = vmatprep.subr.mxu0 0.0
    %2796 = vmatpush1.xpose.msra.mxu0 0.0
    %2797 = vmatprep.subr.mxu0 0.0
    %2798 = vmatpush1.xpose.msra.mxu0 0.0
    %2799 = vmatprep.subr.mxu0 0.0
    %2800 = vmatpush1.xpose.msra.mxu0 0.0
    %2801 = vmatprep.subr.mxu0 0.0
    %2802 = vmatpush1.xpose.msra.mxu0 0.0
    %2803 = vmatprep.subr.mxu0 0.0
    %2804 = vmatpush1.xpose.msra.mxu0 0.0
    %2805 = vmatprep.subr.mxu0 0.0
    %2806 = vmatpush1.xpose.msra.mxu0 0.0
    %2807 = vmatprep.subr.mxu0 0.0
    %2808 = vmatpush1.xpose.msra.mxu0 0.0
    %2809 = vmatprep.subr.mxu0 0.0
    %2810 = vmatpush1.xpose.msra.mxu0 0.0
    %2811 = vmatprep.subr.mxu0 0.0
    %2812 = vmatpush1.xpose.msra.mxu0 0.0
    %2813 = vmatprep.mubr.f32.mxu0 0.0
    %2814 = vmatmul.mubr.f32.gmra.mrb[0].mxu0 %v2744
    %v2815 = vpop.f32.mrb[0].mxu0
    %v2816 = vadd.f32 0.0, %v2815
    %v2817 = vpop.f32.mrb[0].mxu0
    %2818 = vdwg.mxu0
    %v2820 = vsel %vm96, %v79, 0
    %v2823 = vsel %vm96, %v1270, 0
    %2825 = vmatprep.subr.mxu0 0.0
    %2826 = vmatpush1.xpose.msra.mxu0 %v2823
    %2827 = vmatprep.subr.mxu0 0.0
    %2828 = vmatpush1.xpose.msra.mxu0 0.0
    %2829 = vmatprep.subr.mxu0 0.0
    %2830 = vmatpush1.xpose.msra.mxu0 0.0
    %2831 = vmatprep.subr.mxu0 0.0
    %2832 = vmatpush1.xpose.msra.mxu0 0.0
    %2833 = vmatprep.subr.mxu0 0.0
    %2834 = vmatpush1.xpose.msra.mxu0 0.0
    %2835 = vmatprep.subr.mxu0 0.0
    %2836 = vmatpush1.xpose.msra.mxu0 0.0
    %2837 = vmatprep.subr.mxu0 0.0
    %2838 = vmatpush1.xpose.msra.mxu0 0.0
    %2839 = vmatprep.subr.mxu0 0.0
    %2840 = vmatpush1.xpose.msra.mxu0 0.0
    %2841 = vmatprep.subr.mxu0 0.0
    %2842 = vmatpush1.xpose.msra.mxu0 0.0
    %2843 = vmatprep.subr.mxu0 0.0
    %2844 = vmatpush1.xpose.msra.mxu0 0.0
    %2845 = vmatprep.subr.mxu0 0.0
    %2846 = vmatpush1.xpose.msra.mxu0 0.0
    %2847 = vmatprep.subr.mxu0 0.0
    %2848 = vmatpush1.xpose.msra.mxu0 0.0
    %2849 = vmatprep.subr.mxu0 0.0
    %2850 = vmatpush1.xpose.msra.mxu0 0.0
    %2851 = vmatprep.subr.mxu0 0.0
    %2852 = vmatpush1.xpose.msra.mxu0 0.0
    %2853 = vmatprep.subr.mxu0 0.0
    %2854 = vmatpush1.xpose.msra.mxu0 0.0
    %2855 = vmatprep.subr.mxu0 0.0
    %2856 = vmatpush1.xpose.msra.mxu0 0.0
    %2857 = vmatprep.subr.mxu0 0.0
    %2858 = vmatpush1.xpose.msra.mxu0 0.0
    %2859 = vmatprep.subr.mxu0 0.0
    %2860 = vmatpush1.xpose.msra.mxu0 0.0
    %2861 = vmatprep.subr.mxu0 0.0
    %2862 = vmatpush1.xpose.msra.mxu0 0.0
    %2863 = vmatprep.subr.mxu0 0.0
    %2864 = vmatpush1.xpose.msra.mxu0 0.0
    %2865 = vmatprep.subr.mxu0 0.0
    %2866 = vmatpush1.xpose.msra.mxu0 0.0
    %2867 = vmatprep.subr.mxu0 0.0
    %2868 = vmatpush1.xpose.msra.mxu0 0.0
    %2869 = vmatprep.subr.mxu0 0.0
    %2870 = vmatpush1.xpose.msra.mxu0 0.0
    %2871 = vmatprep.subr.mxu0 0.0
    %2872 = vmatpush1.xpose.msra.mxu0 0.0
    %2873 = vmatprep.subr.mxu0 0.0
    %2874 = vmatpush1.xpose.msra.mxu0 0.0
    %2875 = vmatprep.subr.mxu0 0.0
    %2876 = vmatpush1.xpose.msra.mxu0 0.0
    %2877 = vmatprep.subr.mxu0 0.0
    %2878 = vmatpush1.xpose.msra.mxu0 0.0
    %2879 = vmatprep.subr.mxu0 0.0
    %2880 = vmatpush1.xpose.msra.mxu0 0.0
    %2881 = vmatprep.subr.mxu0 0.0
    %2882 = vmatpush1.xpose.msra.mxu0 0.0
    %2883 = vmatprep.subr.mxu0 0.0
    %2884 = vmatpush1.xpose.msra.mxu0 0.0
    %2885 = vmatprep.subr.mxu0 0.0
    %2886 = vmatpush1.xpose.msra.mxu0 0.0
    %2887 = vmatprep.subr.mxu0 0.0
    %2888 = vmatpush1.xpose.msra.mxu0 0.0
    %2889 = vmatprep.mubr.f32.mxu0 0.0
    %2890 = vmatmul.mubr.f32.gmra.mrb[0].mxu0 %v2820
    %v2891 = vpop.f32.mrb[0].mxu0
    %v2892 = vadd.f32 0.0, %v2891
    %v2893 = vpop.f32.mrb[0].mxu0
    %2894 = vdwg.mxu0
    %v2896 = vsel %vm96, %v80, 0
    %v2899 = vsel %vm96, %v1375, 0
    %2901 = vmatprep.subr.mxu0 0.0
    %2902 = vmatpush1.xpose.msra.mxu0 %v2899
    %2903 = vmatprep.subr.mxu0 0.0
    %2904 = vmatpush1.xpose.msra.mxu0 0.0
    %2905 = vmatprep.subr.mxu0 0.0
    %2906 = vmatpush1.xpose.msra.mxu0 0.0
    %2907 = vmatprep.subr.mxu0 0.0
    %2908 = vmatpush1.xpose.msra.mxu0 0.0
    %2909 = vmatprep.subr.mxu0 0.0
    %2910 = vmatpush1.xpose.msra.mxu0 0.0
    %2911 = vmatprep.subr.mxu0 0.0
    %2912 = vmatpush1.xpose.msra.mxu0 0.0
    %2913 = vmatprep.subr.mxu0 0.0
    %2914 = vmatpush1.xpose.msra.mxu0 0.0
    %2915 = vmatprep.subr.mxu0 0.0
    %2916 = vmatpush1.xpose.msra.mxu0 0.0
    %2917 = vmatprep.subr.mxu0 0.0
    %2918 = vmatpush1.xpose.msra.mxu0 0.0
    %2919 = vmatprep.subr.mxu0 0.0
    %2920 = vmatpush1.xpose.msra.mxu0 0.0
    %2921 = vmatprep.subr.mxu0 0.0
    %2922 = vmatpush1.xpose.msra.mxu0 0.0
    %2923 = vmatprep.subr.mxu0 0.0
    %2924 = vmatpush1.xpose.msra.mxu0 0.0
    %2925 = vmatprep.subr.mxu0 0.0
    %2926 = vmatpush1.xpose.msra.mxu0 0.0
    %2927 = vmatprep.subr.mxu0 0.0
    %2928 = vmatpush1.xpose.msra.mxu0 0.0
    %2929 = vmatprep.subr.mxu0 0.0
    %2930 = vmatpush1.xpose.msra.mxu0 0.0
    %2931 = vmatprep.subr.mxu0 0.0
    %2932 = vmatpush1.xpose.msra.mxu0 0.0
    %2933 = vmatprep.subr.mxu0 0.0
    %2934 = vmatpush1.xpose.msra.mxu0 0.0
    %2935 = vmatprep.subr.mxu0 0.0
    %2936 = vmatpush1.xpose.msra.mxu0 0.0
    %2937 = vmatprep.subr.mxu0 0.0
    %2938 = vmatpush1.xpose.msra.mxu0 0.0
    %2939 = vmatprep.subr.mxu0 0.0
    %2940 = vmatpush1.xpose.msra.mxu0 0.0
    %2941 = vmatprep.subr.mxu0 0.0
    %2942 = vmatpush1.xpose.msra.mxu0 0.0
    %2943 = vmatprep.subr.mxu0 0.0
    %2944 = vmatpush1.xpose.msra.mxu0 0.0
    %2945 = vmatprep.subr.mxu0 0.0
    %2946 = vmatpush1.xpose.msra.mxu0 0.0
    %2947 = vmatprep.subr.mxu0 0.0
    %2948 = vmatpush1.xpose.msra.mxu0 0.0
    %2949 = vmatprep.subr.mxu0 0.0
    %2950 = vmatpush1.xpose.msra.mxu0 0.0
    %2951 = vmatprep.subr.mxu0 0.0
    %2952 = vmatpush1.xpose.msra.mxu0 0.0
    %2953 = vmatprep.subr.mxu0 0.0
    %2954 = vmatpush1.xpose.msra.mxu0 0.0
    %2955 = vmatprep.subr.mxu0 0.0
    %2956 = vmatpush1.xpose.msra.mxu0 0.0
    %2957 = vmatprep.subr.mxu0 0.0
    %2958 = vmatpush1.xpose.msra.mxu0 0.0
    %2959 = vmatprep.subr.mxu0 0.0
    %2960 = vmatpush1.xpose.msra.mxu0 0.0
    %2961 = vmatprep.subr.mxu0 0.0
    %2962 = vmatpush1.xpose.msra.mxu0 0.0
    %2963 = vmatprep.subr.mxu0 0.0
    %2964 = vmatpush1.xpose.msra.mxu0 0.0
    %2965 = vmatprep.mubr.f32.mxu0 0.0
    %2966 = vmatmul.mubr.f32.gmra.mrb[0].mxu0 %v2896
    %v2967 = vpop.f32.mrb[0].mxu0
    %v2968 = vadd.f32 0.0, %v2967
    %v2969 = vpop.f32.mrb[0].mxu0
    %2970 = vdwg.mxu0
    %v2972 = vsel %vm96, %v81, 0
    %v2975 = vsel %vm96, %v1480, 0
    %2977 = vmatprep.subr.mxu0 0.0
    %2978 = vmatpush1.xpose.msra.mxu0 %v2975
    %2979 = vmatprep.subr.mxu0 0.0
    %2980 = vmatpush1.xpose.msra.mxu0 0.0
    %2981 = vmatprep.subr.mxu0 0.0
    %2982 = vmatpush1.xpose.msra.mxu0 0.0
    %2983 = vmatprep.subr.mxu0 0.0
    %2984 = vmatpush1.xpose.msra.mxu0 0.0
    %2985 = vmatprep.subr.mxu0 0.0
    %2986 = vmatpush1.xpose.msra.mxu0 0.0
    %2987 = vmatprep.subr.mxu0 0.0
    %2988 = vmatpush1.xpose.msra.mxu0 0.0
    %2989 = vmatprep.subr.mxu0 0.0
    %2990 = vmatpush1.xpose.msra.mxu0 0.0
    %2991 = vmatprep.subr.mxu0 0.0
    %2992 = vmatpush1.xpose.msra.mxu0 0.0
    %2993 = vmatprep.subr.mxu0 0.0
    %2994 = vmatpush1.xpose.msra.mxu0 0.0
    %2995 = vmatprep.subr.mxu0 0.0
    %2996 = vmatpush1.xpose.msra.mxu0 0.0
    %2997 = vmatprep.subr.mxu0 0.0
    %2998 = vmatpush1.xpose.msra.mxu0 0.0
    %2999 = vmatprep.subr.mxu0 0.0
    %3000 = vmatpush1.xpose.msra.mxu0 0.0
    %3001 = vmatprep.subr.mxu0 0.0
    %3002 = vmatpush1.xpose.msra.mxu0 0.0
    %3003 = vmatprep.subr.mxu0 0.0
    %3004 = vmatpush1.xpose.msra.mxu0 0.0
    %3005 = vmatprep.subr.mxu0 0.0
    %3006 = vmatpush1.xpose.msra.mxu0 0.0
    %3007 = vmatprep.subr.mxu0 0.0
    %3008 = vmatpush1.xpose.msra.mxu0 0.0
    %3009 = vmatprep.subr.mxu0 0.0
    %3010 = vmatpush1.xpose.msra.mxu0 0.0
    %3011 = vmatprep.subr.mxu0 0.0
    %3012 = vmatpush1.xpose.msra.mxu0 0.0
    %3013 = vmatprep.subr.mxu0 0.0
    %3014 = vmatpush1.xpose.msra.mxu0 0.0
    %3015 = vmatprep.subr.mxu0 0.0
    %3016 = vmatpush1.xpose.msra.mxu0 0.0
    %3017 = vmatprep.subr.mxu0 0.0
    %3018 = vmatpush1.xpose.msra.mxu0 0.0
    %3019 = vmatprep.subr.mxu0 0.0
    %3020 = vmatpush1.xpose.msra.mxu0 0.0
    %3021 = vmatprep.subr.mxu0 0.0
    %3022 = vmatpush1.xpose.msra.mxu0 0.0
    %3023 = vmatprep.subr.mxu0 0.0
    %3024 = vmatpush1.xpose.msra.mxu0 0.0
    %3025 = vmatprep.subr.mxu0 0.0
    %3026 = vmatpush1.xpose.msra.mxu0 0.0
    %3027 = vmatprep.subr.mxu0 0.0
    %3028 = vmatpush1.xpose.msra.mxu0 0.0
    %3029 = vmatprep.subr.mxu0 0.0
    %3030 = vmatpush1.xpose.msra.mxu0 0.0
    %3031 = vmatprep.subr.mxu0 0.0
    %3032 = vmatpush1.xpose.msra.mxu0 0.0
    %3033 = vmatprep.subr.mxu0 0.0
    %3034 = vmatpush1.xpose.msra.mxu0 0.0
    %3035 = vmatprep.subr.mxu0 0.0
    %3036 = vmatpush1.xpose.msra.mxu0 0.0
    %3037 = vmatprep.subr.mxu0 0.0
    %3038 = vmatpush1.xpose.msra.mxu0 0.0
    %3039 = vmatprep.subr.mxu0 0.0
    %3040 = vmatpush1.xpose.msra.mxu0 0.0
    %3041 = vmatprep.mubr.f32.mxu0 0.0
    %3042 = vmatmul.mubr.f32.gmra.mrb[0].mxu0 %v2972
    %v3043 = vpop.f32.mrb[0].mxu0
    %v3044 = vadd.f32 0.0, %v3043
    %v3045 = vpop.f32.mrb[0].mxu0
    %3046 = vdwg.mxu0
    %v3048 = vsel %vm96, %v82, 0
    %v3051 = vsel %vm96, %v1585, 0
    %3053 = vmatprep.subr.mxu0 0.0
    %3054 = vmatpush1.xpose.msra.mxu0 %v3051
    %3055 = vmatprep.subr.mxu0 0.0
    %3056 = vmatpush1.xpose.msra.mxu0 0.0
    %3057 = vmatprep.subr.mxu0 0.0
    %3058 = vmatpush1.xpose.msra.mxu0 0.0
    %3059 = vmatprep.subr.mxu0 0.0
    %3060 = vmatpush1.xpose.msra.mxu0 0.0
    %3061 = vmatprep.subr.mxu0 0.0
    %3062 = vmatpush1.xpose.msra.mxu0 0.0
    %3063 = vmatprep.subr.mxu0 0.0
    %3064 = vmatpush1.xpose.msra.mxu0 0.0
    %3065 = vmatprep.subr.mxu0 0.0
    %3066 = vmatpush1.xpose.msra.mxu0 0.0
    %3067 = vmatprep.subr.mxu0 0.0
    %3068 = vmatpush1.xpose.msra.mxu0 0.0
    %3069 = vmatprep.subr.mxu0 0.0
    %3070 = vmatpush1.xpose.msra.mxu0 0.0
    %3071 = vmatprep.subr.mxu0 0.0
    %3072 = vmatpush1.xpose.msra.mxu0 0.0
    %3073 = vmatprep.subr.mxu0 0.0
    %3074 = vmatpush1.xpose.msra.mxu0 0.0
    %3075 = vmatprep.subr.mxu0 0.0
    %3076 = vmatpush1.xpose.msra.mxu0 0.0
    %3077 = vmatprep.subr.mxu0 0.0
    %3078 = vmatpush1.xpose.msra.mxu0 0.0
    %3079 = vmatprep.subr.mxu0 0.0
    %3080 = vmatpush1.xpose.msra.mxu0 0.0
    %3081 = vmatprep.subr.mxu0 0.0
    %3082 = vmatpush1.xpose.msra.mxu0 0.0
    %3083 = vmatprep.subr.mxu0 0.0
    %3084 = vmatpush1.xpose.msra.mxu0 0.0
    %3085 = vmatprep.subr.mxu0 0.0
    %3086 = vmatpush1.xpose.msra.mxu0 0.0
    %3087 = vmatprep.subr.mxu0 0.0
    %3088 = vmatpush1.xpose.msra.mxu0 0.0
    %3089 = vmatprep.subr.mxu0 0.0
    %3090 = vmatpush1.xpose.msra.mxu0 0.0
    %3091 = vmatprep.subr.mxu0 0.0
    %3092 = vmatpush1.xpose.msra.mxu0 0.0
    %3093 = vmatprep.subr.mxu0 0.0
    %3094 = vmatpush1.xpose.msra.mxu0 0.0
    %3095 = vmatprep.subr.mxu0 0.0
    %3096 = vmatpush1.xpose.msra.mxu0 0.0
    %3097 = vmatprep.subr.mxu0 0.0
    %3098 = vmatpush1.xpose.msra.mxu0 0.0
    %3099 = vmatprep.subr.mxu0 0.0
    %3100 = vmatpush1.xpose.msra.mxu0 0.0
    %3101 = vmatprep.subr.mxu0 0.0
    %3102 = vmatpush1.xpose.msra.mxu0 0.0
    %3103 = vmatprep.subr.mxu0 0.0
    %3104 = vmatpush1.xpose.msra.mxu0 0.0
    %3105 = vmatprep.subr.mxu0 0.0
    %3106 = vmatpush1.xpose.msra.mxu0 0.0
    %3107 = vmatprep.subr.mxu0 0.0
    %3108 = vmatpush1.xpose.msra.mxu0 0.0
    %3109 = vmatprep.subr.mxu0 0.0
    %3110 = vmatpush1.xpose.msra.mxu0 0.0
    %3111 = vmatprep.subr.mxu0 0.0
    %3112 = vmatpush1.xpose.msra.mxu0 0.0
    %3113 = vmatprep.subr.mxu0 0.0
    %3114 = vmatpush1.xpose.msra.mxu0 0.0
    %3115 = vmatprep.subr.mxu0 0.0
    %3116 = vmatpush1.xpose.msra.mxu0 0.0
    %3117 = vmatprep.mubr.f32.mxu0 0.0
    %3118 = vmatmul.mubr.f32.gmra.mrb[0].mxu0 %v3048
    %v3119 = vpop.f32.mrb[0].mxu0
    %v3120 = vadd.f32 0.0, %v3119
    %v3121 = vpop.f32.mrb[0].mxu0
    %3122 = vdwg.mxu0
    %v3124 = vsel %vm96, %v83, 0
    %v3127 = vsel %vm96, %v1690, 0
    %3129 = vmatprep.subr.mxu0 0.0
    %3130 = vmatpush1.xpose.msra.mxu0 %v3127
    %3131 = vmatprep.subr.mxu0 0.0
    %3132 = vmatpush1.xpose.msra.mxu0 0.0
    %3133 = vmatprep.subr.mxu0 0.0
    %3134 = vmatpush1.xpose.msra.mxu0 0.0
    %3135 = vmatprep.subr.mxu0 0.0
    %3136 = vmatpush1.xpose.msra.mxu0 0.0
    %3137 = vmatprep.subr.mxu0 0.0
    %3138 = vmatpush1.xpose.msra.mxu0 0.0
    %3139 = vmatprep.subr.mxu0 0.0
    %3140 = vmatpush1.xpose.msra.mxu0 0.0
    %3141 = vmatprep.subr.mxu0 0.0
    %3142 = vmatpush1.xpose.msra.mxu0 0.0
    %3143 = vmatprep.subr.mxu0 0.0
    %3144 = vmatpush1.xpose.msra.mxu0 0.0
    %3145 = vmatprep.subr.mxu0 0.0
    %3146 = vmatpush1.xpose.msra.mxu0 0.0
    %3147 = vmatprep.subr.mxu0 0.0
    %3148 = vmatpush1.xpose.msra.mxu0 0.0
    %3149 = vmatprep.subr.mxu0 0.0
    %3150 = vmatpush1.xpose.msra.mxu0 0.0
    %3151 = vmatprep.subr.mxu0 0.0
    %3152 = vmatpush1.xpose.msra.mxu0 0.0
    %3153 = vmatprep.subr.mxu0 0.0
    %3154 = vmatpush1.xpose.msra.mxu0 0.0
    %3155 = vmatprep.subr.mxu0 0.0
    %3156 = vmatpush1.xpose.msra.mxu0 0.0
    %3157 = vmatprep.subr.mxu0 0.0
    %3158 = vmatpush1.xpose.msra.mxu0 0.0
    %3159 = vmatprep.subr.mxu0 0.0
    %3160 = vmatpush1.xpose.msra.mxu0 0.0
    %3161 = vmatprep.subr.mxu0 0.0
    %3162 = vmatpush1.xpose.msra.mxu0 0.0
    %3163 = vmatprep.subr.mxu0 0.0
    %3164 = vmatpush1.xpose.msra.mxu0 0.0
    %3165 = vmatprep.subr.mxu0 0.0
    %3166 = vmatpush1.xpose.msra.mxu0 0.0
    %3167 = vmatprep.subr.mxu0 0.0
    %3168 = vmatpush1.xpose.msra.mxu0 0.0
    %3169 = vmatprep.subr.mxu0 0.0
    %3170 = vmatpush1.xpose.msra.mxu0 0.0
    %3171 = vmatprep.subr.mxu0 0.0
    %3172 = vmatpush1.xpose.msra.mxu0 0.0
    %3173 = vmatprep.subr.mxu0 0.0
    %3174 = vmatpush1.xpose.msra.mxu0 0.0
    %3175 = vmatprep.subr.mxu0 0.0
    %3176 = vmatpush1.xpose.msra.mxu0 0.0
    %3177 = vmatprep.subr.mxu0 0.0
    %3178 = vmatpush1.xpose.msra.mxu0 0.0
    %3179 = vmatprep.subr.mxu0 0.0
    %3180 = vmatpush1.xpose.msra.mxu0 0.0
    %3181 = vmatprep.subr.mxu0 0.0
    %3182 = vmatpush1.xpose.msra.mxu0 0.0
    %3183 = vmatprep.subr.mxu0 0.0
    %3184 = vmatpush1.xpose.msra.mxu0 0.0
    %3185 = vmatprep.subr.mxu0 0.0
    %3186 = vmatpush1.xpose.msra.mxu0 0.0
    %3187 = vmatprep.subr.mxu0 0.0
    %3188 = vmatpush1.xpose.msra.mxu0 0.0
    %3189 = vmatprep.subr.mxu0 0.0
    %3190 = vmatpush1.xpose.msra.mxu0 0.0
    %3191 = vmatprep.subr.mxu0 0.0
    %3192 = vmatpush1.xpose.msra.mxu0 0.0
    %3193 = vmatprep.mubr.f32.mxu0 0.0
    %3194 = vmatmul.mubr.f32.gmra.mrb[0].mxu0 %v3124
    %v3195 = vpop.f32.mrb[0].mxu0
    %v3196 = vadd.f32 0.0, %v3195
    %v3197 = vpop.f32.mrb[0].mxu0
    %3198 = vdwg.mxu0
    %v3200 = vsel %vm96, %v84, 0
    %v3203 = vsel %vm96, %v1795, 0
    %3205 = vmatprep.subr.mxu0 0.0
    %3206 = vmatpush1.xpose.msra.mxu0 %v3203
    %3207 = vmatprep.subr.mxu0 0.0
    %3208 = vmatpush1.xpose.msra.mxu0 0.0
    %3209 = vmatprep.subr.mxu0 0.0
    %3210 = vmatpush1.xpose.msra.mxu0 0.0
    %3211 = vmatprep.subr.mxu0 0.0
    %3212 = vmatpush1.xpose.msra.mxu0 0.0
    %3213 = vmatprep.subr.mxu0 0.0
    %3214 = vmatpush1.xpose.msra.mxu0 0.0
    %3215 = vmatprep.subr.mxu0 0.0
    %3216 = vmatpush1.xpose.msra.mxu0 0.0
    %3217 = vmatprep.subr.mxu0 0.0
    %3218 = vmatpush1.xpose.msra.mxu0 0.0
    %3219 = vmatprep.subr.mxu0 0.0
    %3220 = vmatpush1.xpose.msra.mxu0 0.0
    %3221 = vmatprep.subr.mxu0 0.0
    %3222 = vmatpush1.xpose.msra.mxu0 0.0
    %3223 = vmatprep.subr.mxu0 0.0
    %3224 = vmatpush1.xpose.msra.mxu0 0.0
    %3225 = vmatprep.subr.mxu0 0.0
    %3226 = vmatpush1.xpose.msra.mxu0 0.0
    %3227 = vmatprep.subr.mxu0 0.0
    %3228 = vmatpush1.xpose.msra.mxu0 0.0
    %3229 = vmatprep.subr.mxu0 0.0
    %3230 = vmatpush1.xpose.msra.mxu0 0.0
    %3231 = vmatprep.subr.mxu0 0.0
    %3232 = vmatpush1.xpose.msra.mxu0 0.0
    %3233 = vmatprep.subr.mxu0 0.0
    %3234 = vmatpush1.xpose.msra.mxu0 0.0
    %3235 = vmatprep.subr.mxu0 0.0
    %3236 = vmatpush1.xpose.msra.mxu0 0.0
    %3237 = vmatprep.subr.mxu0 0.0
    %3238 = vmatpush1.xpose.msra.mxu0 0.0
    %3239 = vmatprep.subr.mxu0 0.0
    %3240 = vmatpush1.xpose.msra.mxu0 0.0
    %3241 = vmatprep.subr.mxu0 0.0
    %3242 = vmatpush1.xpose.msra.mxu0 0.0
    %3243 = vmatprep.subr.mxu0 0.0
    %3244 = vmatpush1.xpose.msra.mxu0 0.0
    %3245 = vmatprep.subr.mxu0 0.0
    %3246 = vmatpush1.xpose.msra.mxu0 0.0
    %3247 = vmatprep.subr.mxu0 0.0
    %3248 = vmatpush1.xpose.msra.mxu0 0.0
    %3249 = vmatprep.subr.mxu0 0.0
    %3250 = vmatpush1.xpose.msra.mxu0 0.0
    %3251 = vmatprep.subr.mxu0 0.0
    %3252 = vmatpush1.xpose.msra.mxu0 0.0
    %3253 = vmatprep.subr.mxu0 0.0
    %3254 = vmatpush1.xpose.msra.mxu0 0.0
    %3255 = vmatprep.subr.mxu0 0.0
    %3256 = vmatpush1.xpose.msra.mxu0 0.0
    %3257 = vmatprep.subr.mxu0 0.0
    %3258 = vmatpush1.xpose.msra.mxu0 0.0
    %3259 = vmatprep.subr.mxu0 0.0
    %3260 = vmatpush1.xpose.msra.mxu0 0.0
    %3261 = vmatprep.subr.mxu0 0.0
    %3262 = vmatpush1.xpose.msra.mxu0 0.0
    %3263 = vmatprep.subr.mxu0 0.0
    %3264 = vmatpush1.xpose.msra.mxu0 0.0
    %3265 = vmatprep.subr.mxu0 0.0
    %3266 = vmatpush1.xpose.msra.mxu0 0.0
    %3267 = vmatprep.subr.mxu0 0.0
    %3268 = vmatpush1.xpose.msra.mxu0 0.0
    %3269 = vmatprep.mubr.f32.mxu0 0.0
    %3270 = vmatmul.mubr.f32.gmra.mrb[0].mxu0 %v3200
    %v3271 = vpop.f32.mrb[0].mxu0
    %v3272 = vadd.f32 0.0, %v3271
    %v3273 = vpop.f32.mrb[0].mxu0
    %3274 = vdwg.mxu0
    %v3276 = vsel %vm96, %v85, 0
    %v3279 = vsel %vm96, %v1900, 0
    %3281 = vmatprep.subr.mxu0 0.0
    %3282 = vmatpush1.xpose.msra.mxu0 %v3279
    %3283 = vmatprep.subr.mxu0 0.0
    %3284 = vmatpush1.xpose.msra.mxu0 0.0
    %3285 = vmatprep.subr.mxu0 0.0
    %3286 = vmatpush1.xpose.msra.mxu0 0.0
    %3287 = vmatprep.subr.mxu0 0.0
    %3288 = vmatpush1.xpose.msra.mxu0 0.0
    %3289 = vmatprep.subr.mxu0 0.0
    %3290 = vmatpush1.xpose.msra.mxu0 0.0
    %3291 = vmatprep.subr.mxu0 0.0
    %3292 = vmatpush1.xpose.msra.mxu0 0.0
    %3293 = vmatprep.subr.mxu0 0.0
    %3294 = vmatpush1.xpose.msra.mxu0 0.0
    %3295 = vmatprep.subr.mxu0 0.0
    %3296 = vmatpush1.xpose.msra.mxu0 0.0
    %3297 = vmatprep.subr.mxu0 0.0
    %3298 = vmatpush1.xpose.msra.mxu0 0.0
    %3299 = vmatprep.subr.mxu0 0.0
    %3300 = vmatpush1.xpose.msra.mxu0 0.0
    %3301 = vmatprep.subr.mxu0 0.0
    %3302 = vmatpush1.xpose.msra.mxu0 0.0
    %3303 = vmatprep.subr.mxu0 0.0
    %3304 = vmatpush1.xpose.msra.mxu0 0.0
    %3305 = vmatprep.subr.mxu0 0.0
    %3306 = vmatpush1.xpose.msra.mxu0 0.0
    %3307 = vmatprep.subr.mxu0 0.0
    %3308 = vmatpush1.xpose.msra.mxu0 0.0
    %3309 = vmatprep.subr.mxu0 0.0
    %3310 = vmatpush1.xpose.msra.mxu0 0.0
    %3311 = vmatprep.subr.mxu0 0.0
    %3312 = vmatpush1.xpose.msra.mxu0 0.0
    %3313 = vmatprep.subr.mxu0 0.0
    %3314 = vmatpush1.xpose.msra.mxu0 0.0
    %3315 = vmatprep.subr.mxu0 0.0
    %3316 = vmatpush1.xpose.msra.mxu0 0.0
    %3317 = vmatprep.subr.mxu0 0.0
    %3318 = vmatpush1.xpose.msra.mxu0 0.0
    %3319 = vmatprep.subr.mxu0 0.0
    %3320 = vmatpush1.xpose.msra.mxu0 0.0
    %3321 = vmatprep.subr.mxu0 0.0
    %3322 = vmatpush1.xpose.msra.mxu0 0.0
    %3323 = vmatprep.subr.mxu0 0.0
    %3324 = vmatpush1.xpose.msra.mxu0 0.0
    %3325 = vmatprep.subr.mxu0 0.0
    %3326 = vmatpush1.xpose.msra.mxu0 0.0
    %3327 = vmatprep.subr.mxu0 0.0
    %3328 = vmatpush1.xpose.msra.mxu0 0.0
    %3329 = vmatprep.subr.mxu0 0.0
    %3330 = vmatpush1.xpose.msra.mxu0 0.0
    %3331 = vmatprep.subr.mxu0 0.0
    %3332 = vmatpush1.xpose.msra.mxu0 0.0
    %3333 = vmatprep.subr.mxu0 0.0
    %3334 = vmatpush1.xpose.msra.mxu0 0.0
    %3335 = vmatprep.subr.mxu0 0.0
    %3336 = vmatpush1.xpose.msra.mxu0 0.0
    %3337 = vmatprep.subr.mxu0 0.0
    %3338 = vmatpush1.xpose.msra.mxu0 0.0
    %3339 = vmatprep.subr.mxu0 0.0
    %3340 = vmatpush1.xpose.msra.mxu0 0.0
    %3341 = vmatprep.subr.mxu0 0.0
    %3342 = vmatpush1.xpose.msra.mxu0 0.0
    %3343 = vmatprep.subr.mxu0 0.0
    %3344 = vmatpush1.xpose.msra.mxu0 0.0
    %3345 = vmatprep.mubr.f32.mxu0 0.0
    %3346 = vmatmul.mubr.f32.gmra.mrb[0].mxu0 %v3276
    %v3347 = vpop.f32.mrb[0].mxu0
    %v3348 = vadd.f32 0.0, %v3347
    %v3349 = vpop.f32.mrb[0].mxu0
    %3350 = vdwg.mxu0
    %v3352 = vsel %vm96, %v86, 0
    %v3355 = vsel %vm96, %v2005, 0
    %3357 = vmatprep.subr.mxu0 0.0
    %3358 = vmatpush1.xpose.msra.mxu0 %v3355
    %3359 = vmatprep.subr.mxu0 0.0
    %3360 = vmatpush1.xpose.msra.mxu0 0.0
    %3361 = vmatprep.subr.mxu0 0.0
    %3362 = vmatpush1.xpose.msra.mxu0 0.0
    %3363 = vmatprep.subr.mxu0 0.0
    %3364 = vmatpush1.xpose.msra.mxu0 0.0
    %3365 = vmatprep.subr.mxu0 0.0
    %3366 = vmatpush1.xpose.msra.mxu0 0.0
    %3367 = vmatprep.subr.mxu0 0.0
    %3368 = vmatpush1.xpose.msra.mxu0 0.0
    %3369 = vmatprep.subr.mxu0 0.0
    %3370 = vmatpush1.xpose.msra.mxu0 0.0
    %3371 = vmatprep.subr.mxu0 0.0
    %3372 = vmatpush1.xpose.msra.mxu0 0.0
    %3373 = vmatprep.subr.mxu0 0.0
    %3374 = vmatpush1.xpose.msra.mxu0 0.0
    %3375 = vmatprep.subr.mxu0 0.0
    %3376 = vmatpush1.xpose.msra.mxu0 0.0
    %3377 = vmatprep.subr.mxu0 0.0
    %3378 = vmatpush1.xpose.msra.mxu0 0.0
    %3379 = vmatprep.subr.mxu0 0.0
    %3380 = vmatpush1.xpose.msra.mxu0 0.0
    %3381 = vmatprep.subr.mxu0 0.0
    %3382 = vmatpush1.xpose.msra.mxu0 0.0
    %3383 = vmatprep.subr.mxu0 0.0
    %3384 = vmatpush1.xpose.msra.mxu0 0.0
    %3385 = vmatprep.subr.mxu0 0.0
    %3386 = vmatpush1.xpose.msra.mxu0 0.0
    %3387 = vmatprep.subr.mxu0 0.0
    %3388 = vmatpush1.xpose.msra.mxu0 0.0
    %3389 = vmatprep.subr.mxu0 0.0
    %3390 = vmatpush1.xpose.msra.mxu0 0.0
    %3391 = vmatprep.subr.mxu0 0.0
    %3392 = vmatpush1.xpose.msra.mxu0 0.0
    %3393 = vmatprep.subr.mxu0 0.0
    %3394 = vmatpush1.xpose.msra.mxu0 0.0
    %3395 = vmatprep.subr.mxu0 0.0
    %3396 = vmatpush1.xpose.msra.mxu0 0.0
    %3397 = vmatprep.subr.mxu0 0.0
    %3398 = vmatpush1.xpose.msra.mxu0 0.0
    %3399 = vmatprep.subr.mxu0 0.0
    %3400 = vmatpush1.xpose.msra.mxu0 0.0
    %3401 = vmatprep.subr.mxu0 0.0
    %3402 = vmatpush1.xpose.msra.mxu0 0.0
    %3403 = vmatprep.subr.mxu0 0.0
    %3404 = vmatpush1.xpose.msra.mxu0 0.0
    %3405 = vmatprep.subr.mxu0 0.0
    %3406 = vmatpush1.xpose.msra.mxu0 0.0
    %3407 = vmatprep.subr.mxu0 0.0
    %3408 = vmatpush1.xpose.msra.mxu0 0.0
    %3409 = vmatprep.subr.mxu0 0.0
    %3410 = vmatpush1.xpose.msra.mxu0 0.0
    %3411 = vmatprep.subr.mxu0 0.0
    %3412 = vmatpush1.xpose.msra.mxu0 0.0
    %3413 = vmatprep.subr.mxu0 0.0
    %3414 = vmatpush1.xpose.msra.mxu0 0.0
    %3415 = vmatprep.subr.mxu0 0.0
    %3416 = vmatpush1.xpose.msra.mxu0 0.0
    %3417 = vmatprep.subr.mxu0 0.0
    %3418 = vmatpush1.xpose.msra.mxu0 0.0
    %3419 = vmatprep.subr.mxu0 0.0
    %3420 = vmatpush1.xpose.msra.mxu0 0.0
    %3421 = vmatprep.mubr.f32.mxu0 0.0
    %3422 = vmatmul.mubr.f32.gmra.mrb[0].mxu0 %v3352
    %v3423 = vpop.f32.mrb[0].mxu0
    %v3424 = vadd.f32 0.0, %v3423
    %v3425 = vpop.f32.mrb[0].mxu0
    %3426 = vdwg.mxu0
    %v3428 = vsel %vm96, %v87, 0
    %v3431 = vsel %vm96, %v2110, 0
    %3433 = vmatprep.subr.mxu0 0.0
    %3434 = vmatpush1.xpose.msra.mxu0 %v3431
    %3435 = vmatprep.subr.mxu0 0.0
    %3436 = vmatpush1.xpose.msra.mxu0 0.0
    %3437 = vmatprep.subr.mxu0 0.0
    %3438 = vmatpush1.xpose.msra.mxu0 0.0
    %3439 = vmatprep.subr.mxu0 0.0
    %3440 = vmatpush1.xpose.msra.mxu0 0.0
    %3441 = vmatprep.subr.mxu0 0.0
    %3442 = vmatpush1.xpose.msra.mxu0 0.0
    %3443 = vmatprep.subr.mxu0 0.0
    %3444 = vmatpush1.xpose.msra.mxu0 0.0
    %3445 = vmatprep.subr.mxu0 0.0
    %3446 = vmatpush1.xpose.msra.mxu0 0.0
    %3447 = vmatprep.subr.mxu0 0.0
    %3448 = vmatpush1.xpose.msra.mxu0 0.0
    %3449 = vmatprep.subr.mxu0 0.0
    %3450 = vmatpush1.xpose.msra.mxu0 0.0
    %3451 = vmatprep.subr.mxu0 0.0
    %3452 = vmatpush1.xpose.msra.mxu0 0.0
    %3453 = vmatprep.subr.mxu0 0.0
    %3454 = vmatpush1.xpose.msra.mxu0 0.0
    %3455 = vmatprep.subr.mxu0 0.0
    %3456 = vmatpush1.xpose.msra.mxu0 0.0
    %3457 = vmatprep.subr.mxu0 0.0
    %3458 = vmatpush1.xpose.msra.mxu0 0.0
    %3459 = vmatprep.subr.mxu0 0.0
    %3460 = vmatpush1.xpose.msra.mxu0 0.0
    %3461 = vmatprep.subr.mxu0 0.0
    %3462 = vmatpush1.xpose.msra.mxu0 0.0
    %3463 = vmatprep.subr.mxu0 0.0
    %3464 = vmatpush1.xpose.msra.mxu0 0.0
    %3465 = vmatprep.subr.mxu0 0.0
    %3466 = vmatpush1.xpose.msra.mxu0 0.0
    %3467 = vmatprep.subr.mxu0 0.0
    %3468 = vmatpush1.xpose.msra.mxu0 0.0
    %3469 = vmatprep.subr.mxu0 0.0
    %3470 = vmatpush1.xpose.msra.mxu0 0.0
    %3471 = vmatprep.subr.mxu0 0.0
    %3472 = vmatpush1.xpose.msra.mxu0 0.0
    %3473 = vmatprep.subr.mxu0 0.0
    %3474 = vmatpush1.xpose.msra.mxu0 0.0
    %3475 = vmatprep.subr.mxu0 0.0
    %3476 = vmatpush1.xpose.msra.mxu0 0.0
    %3477 = vmatprep.subr.mxu0 0.0
    %3478 = vmatpush1.xpose.msra.mxu0 0.0
    %3479 = vmatprep.subr.mxu0 0.0
    %3480 = vmatpush1.xpose.msra.mxu0 0.0
    %3481 = vmatprep.subr.mxu0 0.0
    %3482 = vmatpush1.xpose.msra.mxu0 0.0
    %3483 = vmatprep.subr.mxu0 0.0
    %3484 = vmatpush1.xpose.msra.mxu0 0.0
    %3485 = vmatprep.subr.mxu0 0.0
    %3486 = vmatpush1.xpose.msra.mxu0 0.0
    %3487 = vmatprep.subr.mxu0 0.0
    %3488 = vmatpush1.xpose.msra.mxu0 0.0
    %3489 = vmatprep.subr.mxu0 0.0
    %3490 = vmatpush1.xpose.msra.mxu0 0.0
    %3491 = vmatprep.subr.mxu0 0.0
    %3492 = vmatpush1.xpose.msra.mxu0 0.0
    %3493 = vmatprep.subr.mxu0 0.0
    %3494 = vmatpush1.xpose.msra.mxu0 0.0
    %3495 = vmatprep.subr.mxu0 0.0
    %3496 = vmatpush1.xpose.msra.mxu0 0.0
    %3497 = vmatprep.mubr.f32.mxu0 0.0
    %3498 = vmatmul.mubr.f32.gmra.mrb[0].mxu0 %v3428
    %v3499 = vpop.f32.mrb[0].mxu0
    %v3500 = vadd.f32 0.0, %v3499
    %v3501 = vpop.f32.mrb[0].mxu0
    %3502 = vdwg.mxu0
    %v3504 = vsel %vm96, %v88, 0
    %v3507 = vsel %vm96, %v2215, 0
    %3509 = vmatprep.subr.mxu0 0.0
    %3510 = vmatpush1.xpose.msra.mxu0 %v3507
    %3511 = vmatprep.subr.mxu0 0.0
    %3512 = vmatpush1.xpose.msra.mxu0 0.0
    %3513 = vmatprep.subr.mxu0 0.0
    %3514 = vmatpush1.xpose.msra.mxu0 0.0
    %3515 = vmatprep.subr.mxu0 0.0
    %3516 = vmatpush1.xpose.msra.mxu0 0.0
    %3517 = vmatprep.subr.mxu0 0.0
    %3518 = vmatpush1.xpose.msra.mxu0 0.0
    %3519 = vmatprep.subr.mxu0 0.0
    %3520 = vmatpush1.xpose.msra.mxu0 0.0
    %3521 = vmatprep.subr.mxu0 0.0
    %3522 = vmatpush1.xpose.msra.mxu0 0.0
    %3523 = vmatprep.subr.mxu0 0.0
    %3524 = vmatpush1.xpose.msra.mxu0 0.0
    %3525 = vmatprep.subr.mxu0 0.0
    %3526 = vmatpush1.xpose.msra.mxu0 0.0
    %3527 = vmatprep.subr.mxu0 0.0
    %3528 = vmatpush1.xpose.msra.mxu0 0.0
    %3529 = vmatprep.subr.mxu0 0.0
    %3530 = vmatpush1.xpose.msra.mxu0 0.0
    %3531 = vmatprep.subr.mxu0 0.0
    %3532 = vmatpush1.xpose.msra.mxu0 0.0
    %3533 = vmatprep.subr.mxu0 0.0
    %3534 = vmatpush1.xpose.msra.mxu0 0.0
    %3535 = vmatprep.subr.mxu0 0.0
    %3536 = vmatpush1.xpose.msra.mxu0 0.0
    %3537 = vmatprep.subr.mxu0 0.0
    %3538 = vmatpush1.xpose.msra.mxu0 0.0
    %3539 = vmatprep.subr.mxu0 0.0
    %3540 = vmatpush1.xpose.msra.mxu0 0.0
    %3541 = vmatprep.subr.mxu0 0.0
    %3542 = vmatpush1.xpose.msra.mxu0 0.0
    %3543 = vmatprep.subr.mxu0 0.0
    %3544 = vmatpush1.xpose.msra.mxu0 0.0
    %3545 = vmatprep.subr.mxu0 0.0
    %3546 = vmatpush1.xpose.msra.mxu0 0.0
    %3547 = vmatprep.subr.mxu0 0.0
    %3548 = vmatpush1.xpose.msra.mxu0 0.0
    %3549 = vmatprep.subr.mxu0 0.0
    %3550 = vmatpush1.xpose.msra.mxu0 0.0
    %3551 = vmatprep.subr.mxu0 0.0
    %3552 = vmatpush1.xpose.msra.mxu0 0.0
    %3553 = vmatprep.subr.mxu0 0.0
    %3554 = vmatpush1.xpose.msra.mxu0 0.0
    %3555 = vmatprep.subr.mxu0 0.0
    %3556 = vmatpush1.xpose.msra.mxu0 0.0
    %3557 = vmatprep.subr.mxu0 0.0
    %3558 = vmatpush1.xpose.msra.mxu0 0.0
    %3559 = vmatprep.subr.mxu0 0.0
    %3560 = vmatpush1.xpose.msra.mxu0 0.0
    %3561 = vmatprep.subr.mxu0 0.0
    %3562 = vmatpush1.xpose.msra.mxu0 0.0
    %3563 = vmatprep.subr.mxu0 0.0
    %3564 = vmatpush1.xpose.msra.mxu0 0.0
    %3565 = vmatprep.subr.mxu0 0.0
    %3566 = vmatpush1.xpose.msra.mxu0 0.0
    %3567 = vmatprep.subr.mxu0 0.0
    %3568 = vmatpush1.xpose.msra.mxu0 0.0
    %3569 = vmatprep.subr.mxu0 0.0
    %3570 = vmatpush1.xpose.msra.mxu0 0.0
    %3571 = vmatprep.subr.mxu0 0.0
    %3572 = vmatpush1.xpose.msra.mxu0 0.0
    %3573 = vmatprep.mubr.f32.mxu0 0.0
    %3574 = vmatmul.mubr.f32.gmra.mrb[0].mxu0 %v3504
    %v3575 = vpop.f32.mrb[0].mxu0
    %v3576 = vadd.f32 0.0, %v3575
    %v3577 = vpop.f32.mrb[0].mxu0
    %3578 = vdwg.mxu0
    %v3580 = vsel %vm96, %v89, 0
    %v3583 = vsel %vm96, %v2320, 0
    %3585 = vmatprep.subr.mxu0 0.0
    %3586 = vmatpush1.xpose.msra.mxu0 %v3583
    %3587 = vmatprep.subr.mxu0 0.0
    %3588 = vmatpush1.xpose.msra.mxu0 0.0
    %3589 = vmatprep.subr.mxu0 0.0
    %3590 = vmatpush1.xpose.msra.mxu0 0.0
    %3591 = vmatprep.subr.mxu0 0.0
    %3592 = vmatpush1.xpose.msra.mxu0 0.0
    %3593 = vmatprep.subr.mxu0 0.0
    %3594 = vmatpush1.xpose.msra.mxu0 0.0
    %3595 = vmatprep.subr.mxu0 0.0
    %3596 = vmatpush1.xpose.msra.mxu0 0.0
    %3597 = vmatprep.subr.mxu0 0.0
    %3598 = vmatpush1.xpose.msra.mxu0 0.0
    %3599 = vmatprep.subr.mxu0 0.0
    %3600 = vmatpush1.xpose.msra.mxu0 0.0
    %3601 = vmatprep.subr.mxu0 0.0
    %3602 = vmatpush1.xpose.msra.mxu0 0.0
    %3603 = vmatprep.subr.mxu0 0.0
    %3604 = vmatpush1.xpose.msra.mxu0 0.0
    %3605 = vmatprep.subr.mxu0 0.0
    %3606 = vmatpush1.xpose.msra.mxu0 0.0
    %3607 = vmatprep.subr.mxu0 0.0
    %3608 = vmatpush1.xpose.msra.mxu0 0.0
    %3609 = vmatprep.subr.mxu0 0.0
    %3610 = vmatpush1.xpose.msra.mxu0 0.0
    %3611 = vmatprep.subr.mxu0 0.0
    %3612 = vmatpush1.xpose.msra.mxu0 0.0
    %3613 = vmatprep.subr.mxu0 0.0
    %3614 = vmatpush1.xpose.msra.mxu0 0.0
    %3615 = vmatprep.subr.mxu0 0.0
    %3616 = vmatpush1.xpose.msra.mxu0 0.0
    %3617 = vmatprep.subr.mxu0 0.0
    %3618 = vmatpush1.xpose.msra.mxu0 0.0
    %3619 = vmatprep.subr.mxu0 0.0
    %3620 = vmatpush1.xpose.msra.mxu0 0.0
    %3621 = vmatprep.subr.mxu0 0.0
    %3622 = vmatpush1.xpose.msra.mxu0 0.0
    %3623 = vmatprep.subr.mxu0 0.0
    %3624 = vmatpush1.xpose.msra.mxu0 0.0
    %3625 = vmatprep.subr.mxu0 0.0
    %3626 = vmatpush1.xpose.msra.mxu0 0.0
    %3627 = vmatprep.subr.mxu0 0.0
    %3628 = vmatpush1.xpose.msra.mxu0 0.0
    %3629 = vmatprep.subr.mxu0 0.0
    %3630 = vmatpush1.xpose.msra.mxu0 0.0
    %3631 = vmatprep.subr.mxu0 0.0
    %3632 = vmatpush1.xpose.msra.mxu0 0.0
    %3633 = vmatprep.subr.mxu0 0.0
    %3634 = vmatpush1.xpose.msra.mxu0 0.0
    %3635 = vmatprep.subr.mxu0 0.0
    %3636 = vmatpush1.xpose.msra.mxu0 0.0
    %3637 = vmatprep.subr.mxu0 0.0
    %3638 = vmatpush1.xpose.msra.mxu0 0.0
    %3639 = vmatprep.subr.mxu0 0.0
    %3640 = vmatpush1.xpose.msra.mxu0 0.0
    %3641 = vmatprep.subr.mxu0 0.0
    %3642 = vmatpush1.xpose.msra.mxu0 0.0
    %3643 = vmatprep.subr.mxu0 0.0
    %3644 = vmatpush1.xpose.msra.mxu0 0.0
    %3645 = vmatprep.subr.mxu0 0.0
    %3646 = vmatpush1.xpose.msra.mxu0 0.0
    %3647 = vmatprep.subr.mxu0 0.0
    %3648 = vmatpush1.xpose.msra.mxu0 0.0
    %3649 = vmatprep.mubr.f32.mxu0 0.0
    %3650 = vmatmul.mubr.f32.gmra.mrb[0].mxu0 %v3580
    %v3651 = vpop.f32.mrb[0].mxu0
    %v3652 = vadd.f32 0.0, %v3651
    %v3653 = vpop.f32.mrb[0].mxu0
    %3654 = vdwg.mxu0
    %v3656 = vsel %vm96, %v90, 0
    %v3659 = vsel %vm96, %v2425, 0
    %3661 = vmatprep.subr.mxu0 0.0
    %3662 = vmatpush1.xpose.msra.mxu0 %v3659
    %3663 = vmatprep.subr.mxu0 0.0
    %3664 = vmatpush1.xpose.msra.mxu0 0.0
    %3665 = vmatprep.subr.mxu0 0.0
    %3666 = vmatpush1.xpose.msra.mxu0 0.0
    %3667 = vmatprep.subr.mxu0 0.0
    %3668 = vmatpush1.xpose.msra.mxu0 0.0
    %3669 = vmatprep.subr.mxu0 0.0
    %3670 = vmatpush1.xpose.msra.mxu0 0.0
    %3671 = vmatprep.subr.mxu0 0.0
    %3672 = vmatpush1.xpose.msra.mxu0 0.0
    %3673 = vmatprep.subr.mxu0 0.0
    %3674 = vmatpush1.xpose.msra.mxu0 0.0
    %3675 = vmatprep.subr.mxu0 0.0
    %3676 = vmatpush1.xpose.msra.mxu0 0.0
    %3677 = vmatprep.subr.mxu0 0.0
    %3678 = vmatpush1.xpose.msra.mxu0 0.0
    %3679 = vmatprep.subr.mxu0 0.0
    %3680 = vmatpush1.xpose.msra.mxu0 0.0
    %3681 = vmatprep.subr.mxu0 0.0
    %3682 = vmatpush1.xpose.msra.mxu0 0.0
    %3683 = vmatprep.subr.mxu0 0.0
    %3684 = vmatpush1.xpose.msra.mxu0 0.0
    %3685 = vmatprep.subr.mxu0 0.0
    %3686 = vmatpush1.xpose.msra.mxu0 0.0
    %3687 = vmatprep.subr.mxu0 0.0
    %3688 = vmatpush1.xpose.msra.mxu0 0.0
    %3689 = vmatprep.subr.mxu0 0.0
    %3690 = vmatpush1.xpose.msra.mxu0 0.0
    %3691 = vmatprep.subr.mxu0 0.0
    %3692 = vmatpush1.xpose.msra.mxu0 0.0
    %3693 = vmatprep.subr.mxu0 0.0
    %3694 = vmatpush1.xpose.msra.mxu0 0.0
    %3695 = vmatprep.subr.mxu0 0.0
    %3696 = vmatpush1.xpose.msra.mxu0 0.0
    %3697 = vmatprep.subr.mxu0 0.0
    %3698 = vmatpush1.xpose.msra.mxu0 0.0
    %3699 = vmatprep.subr.mxu0 0.0
    %3700 = vmatpush1.xpose.msra.mxu0 0.0
    %3701 = vmatprep.subr.mxu0 0.0
    %3702 = vmatpush1.xpose.msra.mxu0 0.0
    %3703 = vmatprep.subr.mxu0 0.0
    %3704 = vmatpush1.xpose.msra.mxu0 0.0
    %3705 = vmatprep.subr.mxu0 0.0
    %3706 = vmatpush1.xpose.msra.mxu0 0.0
    %3707 = vmatprep.subr.mxu0 0.0
    %3708 = vmatpush1.xpose.msra.mxu0 0.0
    %3709 = vmatprep.subr.mxu0 0.0
    %3710 = vmatpush1.xpose.msra.mxu0 0.0
    %3711 = vmatprep.subr.mxu0 0.0
    %3712 = vmatpush1.xpose.msra.mxu0 0.0
    %3713 = vmatprep.subr.mxu0 0.0
    %3714 = vmatpush1.xpose.msra.mxu0 0.0
    %3715 = vmatprep.subr.mxu0 0.0
    %3716 = vmatpush1.xpose.msra.mxu0 0.0
    %3717 = vmatprep.subr.mxu0 0.0
    %3718 = vmatpush1.xpose.msra.mxu0 0.0
    %3719 = vmatprep.subr.mxu0 0.0
    %3720 = vmatpush1.xpose.msra.mxu0 0.0
    %3721 = vmatprep.subr.mxu0 0.0
    %3722 = vmatpush1.xpose.msra.mxu0 0.0
    %3723 = vmatprep.subr.mxu0 0.0
    %3724 = vmatpush1.xpose.msra.mxu0 0.0
    %3725 = vmatprep.mubr.f32.mxu0 0.0
    %3726 = vmatmul.mubr.f32.gmra.mrb[0].mxu0 %v3656
    %v3727 = vpop.f32.mrb[0].mxu0
    %v3728 = vadd.f32 0.0, %v3727
    %v3729 = vpop.f32.mrb[0].mxu0
    %3730 = vdwg.mxu0
    %v3732 = vsel %vm96, %v91, 0
    %v3735 = vsel %vm96, %v2530, 0
    %3737 = vmatprep.subr.mxu0 0.0
    %3738 = vmatpush1.xpose.msra.mxu0 %v3735
    %3739 = vmatprep.subr.mxu0 0.0
    %3740 = vmatpush1.xpose.msra.mxu0 0.0
    %3741 = vmatprep.subr.mxu0 0.0
    %3742 = vmatpush1.xpose.msra.mxu0 0.0
    %3743 = vmatprep.subr.mxu0 0.0
    %3744 = vmatpush1.xpose.msra.mxu0 0.0
    %3745 = vmatprep.subr.mxu0 0.0
    %3746 = vmatpush1.xpose.msra.mxu0 0.0
    %3747 = vmatprep.subr.mxu0 0.0
    %3748 = vmatpush1.xpose.msra.mxu0 0.0
    %3749 = vmatprep.subr.mxu0 0.0
    %3750 = vmatpush1.xpose.msra.mxu0 0.0
    %3751 = vmatprep.subr.mxu0 0.0
    %3752 = vmatpush1.xpose.msra.mxu0 0.0
    %3753 = vmatprep.subr.mxu0 0.0
    %3754 = vmatpush1.xpose.msra.mxu0 0.0
    %3755 = vmatprep.subr.mxu0 0.0
    %3756 = vmatpush1.xpose.msra.mxu0 0.0
    %3757 = vmatprep.subr.mxu0 0.0
    %3758 = vmatpush1.xpose.msra.mxu0 0.0
    %3759 = vmatprep.subr.mxu0 0.0
    %3760 = vmatpush1.xpose.msra.mxu0 0.0
    %3761 = vmatprep.subr.mxu0 0.0
    %3762 = vmatpush1.xpose.msra.mxu0 0.0
    %3763 = vmatprep.subr.mxu0 0.0
    %3764 = vmatpush1.xpose.msra.mxu0 0.0
    %3765 = vmatprep.subr.mxu0 0.0
    %3766 = vmatpush1.xpose.msra.mxu0 0.0
    %3767 = vmatprep.subr.mxu0 0.0
    %3768 = vmatpush1.xpose.msra.mxu0 0.0
    %3769 = vmatprep.subr.mxu0 0.0
    %3770 = vmatpush1.xpose.msra.mxu0 0.0
    %3771 = vmatprep.subr.mxu0 0.0
    %3772 = vmatpush1.xpose.msra.mxu0 0.0
    %3773 = vmatprep.subr.mxu0 0.0
    %3774 = vmatpush1.xpose.msra.mxu0 0.0
    %3775 = vmatprep.subr.mxu0 0.0
    %3776 = vmatpush1.xpose.msra.mxu0 0.0
    %3777 = vmatprep.subr.mxu0 0.0
    %3778 = vmatpush1.xpose.msra.mxu0 0.0
    %3779 = vmatprep.subr.mxu0 0.0
    %3780 = vmatpush1.xpose.msra.mxu0 0.0
    %3781 = vmatprep.subr.mxu0 0.0
    %3782 = vmatpush1.xpose.msra.mxu0 0.0
    %3783 = vmatprep.subr.mxu0 0.0
    %3784 = vmatpush1.xpose.msra.mxu0 0.0
    %3785 = vmatprep.subr.mxu0 0.0
    %3786 = vmatpush1.xpose.msra.mxu0 0.0
    %3787 = vmatprep.subr.mxu0 0.0
    %3788 = vmatpush1.xpose.msra.mxu0 0.0
    %3789 = vmatprep.subr.mxu0 0.0
    %3790 = vmatpush1.xpose.msra.mxu0 0.0
    %3791 = vmatprep.subr.mxu0 0.0
    %3792 = vmatpush1.xpose.msra.mxu0 0.0
    %3793 = vmatprep.subr.mxu0 0.0
    %3794 = vmatpush1.xpose.msra.mxu0 0.0
    %3795 = vmatprep.subr.mxu0 0.0
    %3796 = vmatpush1.xpose.msra.mxu0 0.0
    %3797 = vmatprep.subr.mxu0 0.0
    %3798 = vmatpush1.xpose.msra.mxu0 0.0
    %3799 = vmatprep.subr.mxu0 0.0
    %3800 = vmatpush1.xpose.msra.mxu0 0.0
    %3801 = vmatprep.mubr.f32.mxu0 0.0
    %3802 = vmatmul.mubr.f32.gmra.mrb[0].mxu0 %v3732
    %v3803 = vpop.f32.mrb[0].mxu0
    %v3804 = vadd.f32 0.0, %v3803
    %v3805 = vpop.f32.mrb[0].mxu0
    %3806 = vdwg.mxu0
    %v3808 = vsel %vm96, %v92, 0
    %v3811 = vsel %vm96, %v2635, 0
    %3813 = vmatprep.subr.mxu0 0.0
    %3814 = vmatpush1.xpose.msra.mxu0 %v3811
    %3815 = vmatprep.subr.mxu0 0.0
    %3816 = vmatpush1.xpose.msra.mxu0 0.0
    %3817 = vmatprep.subr.mxu0 0.0
    %3818 = vmatpush1.xpose.msra.mxu0 0.0
    %3819 = vmatprep.subr.mxu0 0.0
    %3820 = vmatpush1.xpose.msra.mxu0 0.0
    %3821 = vmatprep.subr.mxu0 0.0
    %3822 = vmatpush1.xpose.msra.mxu0 0.0
    %3823 = vmatprep.subr.mxu0 0.0
    %3824 = vmatpush1.xpose.msra.mxu0 0.0
    %3825 = vmatprep.subr.mxu0 0.0
    %3826 = vmatpush1.xpose.msra.mxu0 0.0
    %3827 = vmatprep.subr.mxu0 0.0
    %3828 = vmatpush1.xpose.msra.mxu0 0.0
    %3829 = vmatprep.subr.mxu0 0.0
    %3830 = vmatpush1.xpose.msra.mxu0 0.0
    %3831 = vmatprep.subr.mxu0 0.0
    %3832 = vmatpush1.xpose.msra.mxu0 0.0
    %3833 = vmatprep.subr.mxu0 0.0
    %3834 = vmatpush1.xpose.msra.mxu0 0.0
    %3835 = vmatprep.subr.mxu0 0.0
    %3836 = vmatpush1.xpose.msra.mxu0 0.0
    %3837 = vmatprep.subr.mxu0 0.0
    %3838 = vmatpush1.xpose.msra.mxu0 0.0
    %3839 = vmatprep.subr.mxu0 0.0
    %3840 = vmatpush1.xpose.msra.mxu0 0.0
    %3841 = vmatprep.subr.mxu0 0.0
    %3842 = vmatpush1.xpose.msra.mxu0 0.0
    %3843 = vmatprep.subr.mxu0 0.0
    %3844 = vmatpush1.xpose.msra.mxu0 0.0
    %3845 = vmatprep.subr.mxu0 0.0
    %3846 = vmatpush1.xpose.msra.mxu0 0.0
    %3847 = vmatprep.subr.mxu0 0.0
    %3848 = vmatpush1.xpose.msra.mxu0 0.0
    %3849 = vmatprep.subr.mxu0 0.0
    %3850 = vmatpush1.xpose.msra.mxu0 0.0
    %3851 = vmatprep.subr.mxu0 0.0
    %3852 = vmatpush1.xpose.msra.mxu0 0.0
    %3853 = vmatprep.subr.mxu0 0.0
    %3854 = vmatpush1.xpose.msra.mxu0 0.0
    %3855 = vmatprep.subr.mxu0 0.0
    %3856 = vmatpush1.xpose.msra.mxu0 0.0
    %3857 = vmatprep.subr.mxu0 0.0
    %3858 = vmatpush1.xpose.msra.mxu0 0.0
    %3859 = vmatprep.subr.mxu0 0.0
    %3860 = vmatpush1.xpose.msra.mxu0 0.0
    %3861 = vmatprep.subr.mxu0 0.0
    %3862 = vmatpush1.xpose.msra.mxu0 0.0
    %3863 = vmatprep.subr.mxu0 0.0
    %3864 = vmatpush1.xpose.msra.mxu0 0.0
    %3865 = vmatprep.subr.mxu0 0.0
    %3866 = vmatpush1.xpose.msra.mxu0 0.0
    %3867 = vmatprep.subr.mxu0 0.0
    %3868 = vmatpush1.xpose.msra.mxu0 0.0
    %3869 = vmatprep.subr.mxu0 0.0
    %3870 = vmatpush1.xpose.msra.mxu0 0.0
    %3871 = vmatprep.subr.mxu0 0.0
    %3872 = vmatpush1.xpose.msra.mxu0 0.0
    %3873 = vmatprep.subr.mxu0 0.0
    %3874 = vmatpush1.xpose.msra.mxu0 0.0
    %3875 = vmatprep.subr.mxu0 0.0
    %3876 = vmatpush1.xpose.msra.mxu0 0.0
    %3877 = vmatprep.mubr.f32.mxu0 0.0
    %3878 = vmatmul.mubr.f32.gmra.mrb[0].mxu0 %v3808
    %v3879 = vpop.f32.mrb[0].mxu0
    %v3880 = vadd.f32 0.0, %v3879
    %v3881 = vpop.f32.mrb[0].mxu0
    %3882 = vdwg.mxu0
    %v3884 = vsel %vm96, %v93, 0
    %v3887 = vsel %vm96, %v2740, 0
    %3889 = vmatprep.subr.mxu0 0.0
    %3890 = vmatpush1.xpose.msra.mxu0 %v3887
    %3891 = vmatprep.subr.mxu0 0.0
    %3892 = vmatpush1.xpose.msra.mxu0 0.0
    %3893 = vmatprep.subr.mxu0 0.0
    %3894 = vmatpush1.xpose.msra.mxu0 0.0
    %3895 = vmatprep.subr.mxu0 0.0
    %3896 = vmatpush1.xpose.msra.mxu0 0.0
    %3897 = vmatprep.subr.mxu0 0.0
    %3898 = vmatpush1.xpose.msra.mxu0 0.0
    %3899 = vmatprep.subr.mxu0 0.0
    %3900 = vmatpush1.xpose.msra.mxu0 0.0
    %3901 = vmatprep.subr.mxu0 0.0
    %3902 = vmatpush1.xpose.msra.mxu0 0.0
    %3903 = vmatprep.subr.mxu0 0.0
    %3904 = vmatpush1.xpose.msra.mxu0 0.0
    %3905 = vmatprep.subr.mxu0 0.0
    %3906 = vmatpush1.xpose.msra.mxu0 0.0
    %3907 = vmatprep.subr.mxu0 0.0
    %3908 = vmatpush1.xpose.msra.mxu0 0.0
    %3909 = vmatprep.subr.mxu0 0.0
    %3910 = vmatpush1.xpose.msra.mxu0 0.0
    %3911 = vmatprep.subr.mxu0 0.0
    %3912 = vmatpush1.xpose.msra.mxu0 0.0
    %3913 = vmatprep.subr.mxu0 0.0
    %3914 = vmatpush1.xpose.msra.mxu0 0.0
    %3915 = vmatprep.subr.mxu0 0.0
    %3916 = vmatpush1.xpose.msra.mxu0 0.0
    %3917 = vmatprep.subr.mxu0 0.0
    %3918 = vmatpush1.xpose.msra.mxu0 0.0
    %3919 = vmatprep.subr.mxu0 0.0
    %3920 = vmatpush1.xpose.msra.mxu0 0.0
    %3921 = vmatprep.subr.mxu0 0.0
    %3922 = vmatpush1.xpose.msra.mxu0 0.0
    %3923 = vmatprep.subr.mxu0 0.0
    %3924 = vmatpush1.xpose.msra.mxu0 0.0
    %3925 = vmatprep.subr.mxu0 0.0
    %3926 = vmatpush1.xpose.msra.mxu0 0.0
    %3927 = vmatprep.subr.mxu0 0.0
    %3928 = vmatpush1.xpose.msra.mxu0 0.0
    %3929 = vmatprep.subr.mxu0 0.0
    %3930 = vmatpush1.xpose.msra.mxu0 0.0
    %3931 = vmatprep.subr.mxu0 0.0
    %3932 = vmatpush1.xpose.msra.mxu0 0.0
    %3933 = vmatprep.subr.mxu0 0.0
    %3934 = vmatpush1.xpose.msra.mxu0 0.0
    %3935 = vmatprep.subr.mxu0 0.0
    %3936 = vmatpush1.xpose.msra.mxu0 0.0
    %3937 = vmatprep.subr.mxu0 0.0
    %3938 = vmatpush1.xpose.msra.mxu0 0.0
    %3939 = vmatprep.subr.mxu0 0.0
    %3940 = vmatpush1.xpose.msra.mxu0 0.0
    %3941 = vmatprep.subr.mxu0 0.0
    %3942 = vmatpush1.xpose.msra.mxu0 0.0
    %3943 = vmatprep.subr.mxu0 0.0
    %3944 = vmatpush1.xpose.msra.mxu0 0.0
    %3945 = vmatprep.subr.mxu0 0.0
    %3946 = vmatpush1.xpose.msra.mxu0 0.0
    %3947 = vmatprep.subr.mxu0 0.0
    %3948 = vmatpush1.xpose.msra.mxu0 0.0
    %3949 = vmatprep.subr.mxu0 0.0
    %3950 = vmatpush1.xpose.msra.mxu0 0.0
    %3951 = vmatprep.subr.mxu0 0.0
    %3952 = vmatpush1.xpose.msra.mxu0 0.0
    %3953 = vmatprep.mubr.f32.mxu0 0.0
    %3954 = vmatmul.mubr.f32.gmra.mrb[0].mxu0 %v3884
    %v3955 = vpop.f32.mrb[0].mxu0
    %v3956 = vadd.f32 0.0, %v3955
    %v3957 = vpop.f32.mrb[0].mxu0
    %3958 = vdwg.mxu0
    %v3959 = vsel %vm629, %v2816, -inf
    %3960 = vmax.xlane.f32.xlu0 %v3959
    %v3961 = vpop.xlane.xlu0 %3960
    %v3962 = vsel %vm629, %v2892, -inf
    %3963 = vmax.xlane.f32.xlu0 %v3962
    %v3964 = vpop.xlane.xlu0 %3963
    %v3965 = vsel %vm629, %v2968, -inf
    %3966 = vmax.xlane.f32.xlu0 %v3965
    %v3967 = vpop.xlane.xlu0 %3966
    %v3968 = vsel %vm629, %v3044, -inf
    %3969 = vmax.xlane.f32.xlu0 %v3968
    %v3970 = vpop.xlane.xlu0 %3969
    %v3971 = vsel %vm629, %v3120, -inf
    %3972 = vmax.xlane.f32.xlu0 %v3971
    %v3973 = vpop.xlane.xlu0 %3972
    %v3974 = vsel %vm629, %v3196, -inf
    %3975 = vmax.xlane.f32.xlu0 %v3974
    %v3976 = vpop.xlane.xlu0 %3975
    %v3977 = vsel %vm629, %v3272, -inf
    %3978 = vmax.xlane.f32.xlu0 %v3977
    %v3979 = vpop.xlane.xlu0 %3978
    %v3980 = vsel %vm629, %v3348, -inf
    %3981 = vmax.xlane.f32.xlu0 %v3980
    %v3982 = vpop.xlane.xlu0 %3981
    %v3983 = vsel %vm629, %v3424, -inf
    %3984 = vmax.xlane.f32.xlu0 %v3983
    %v3985 = vpop.xlane.xlu0 %3984
    %v3986 = vsel %vm629, %v3500, -inf
    %3987 = vmax.xlane.f32.xlu0 %v3986
    %v3988 = vpop.xlane.xlu0 %3987
    %v3989 = vsel %vm629, %v3576, -inf
    %3990 = vmax.xlane.f32.xlu0 %v3989
    %v3991 = vpop.xlane.xlu0 %3990
    %v3992 = vsel %vm629, %v3652, -inf
    %3993 = vmax.xlane.f32.xlu0 %v3992
    %v3994 = vpop.xlane.xlu0 %3993
    %v3995 = vsel %vm629, %v3728, -inf
    %3996 = vmax.xlane.f32.xlu0 %v3995
    %v3997 = vpop.xlane.xlu0 %3996
    %v3998 = vsel %vm629, %v3804, -inf
    %3999 = vmax.xlane.f32.xlu0 %v3998
    %v4000 = vpop.xlane.xlu0 %3999
    %v4001 = vsel %vm629, %v3880, -inf
    %4002 = vmax.xlane.f32.xlu0 %v4001
    %v4003 = vpop.xlane.xlu0 %4002
    %v4004 = vsel %vm629, %v3956, -inf
    %4005 = vmax.xlane.f32.xlu0 %v4004
    %v4006 = vpop.xlane.xlu0 %4005
    %v4007 = vsub.f32 %v2816, %v3961
    %v4008 = vsub.f32 %v2892, %v3964
    %v4009 = vsub.f32 %v2968, %v3967
    %v4010 = vsub.f32 %v3044, %v3970
    %v4011 = vsub.f32 %v3120, %v3973
    %v4012 = vsub.f32 %v3196, %v3976
    %v4013 = vsub.f32 %v3272, %v3979
    %v4014 = vsub.f32 %v3348, %v3982
    %v4015 = vsub.f32 %v3424, %v3985
    %v4016 = vsub.f32 %v3500, %v3988
    %v4017 = vsub.f32 %v3576, %v3991
    %v4018 = vsub.f32 %v3652, %v3994
    %v4019 = vsub.f32 %v3728, %v3997
    %v4020 = vsub.f32 %v3804, %v4000
    %v4021 = vsub.f32 %v3880, %v4003
    %v4022 = vsub.f32 %v3956, %v4006
    %v4023 = vmul.f32 %v4007, 1.442695
    %v4024 = vpow.pop %v4023
    %v4025 = vmul.f32 %v4008, 1.442695
    %v4026 = vpow.pop %v4025
    %v4027 = vmul.f32 %v4009, 1.442695
    %v4028 = vpow.pop %v4027
    %v4029 = vmul.f32 %v4010, 1.442695
    %v4030 = vpow.pop %v4029
    %v4031 = vmul.f32 %v4011, 1.442695
    %v4032 = vpow.pop %v4031
    %v4033 = vmul.f32 %v4012, 1.442695
    %v4034 = vpow.pop %v4033
    %v4035 = vmul.f32 %v4013, 1.442695
    %v4036 = vpow.pop %v4035
    %v4037 = vmul.f32 %v4014, 1.442695
    %v4038 = vpow.pop %v4037
    %v4039 = vmul.f32 %v4015, 1.442695
    %v4040 = vpow.pop %v4039
    %v4041 = vmul.f32 %v4016, 1.442695
    %v4042 = vpow.pop %v4041
    %v4043 = vmul.f32 %v4017, 1.442695
    %v4044 = vpow.pop %v4043
    %v4045 = vmul.f32 %v4018, 1.442695
    %v4046 = vpow.pop %v4045
    %v4047 = vmul.f32 %v4019, 1.442695
    %v4048 = vpow.pop %v4047
    %v4049 = vmul.f32 %v4020, 1.442695
    %v4050 = vpow.pop %v4049
    %v4051 = vmul.f32 %v4021, 1.442695
    %v4052 = vpow.pop %v4051
    %v4053 = vmul.f32 %v4022, 1.442695
    %v4054 = vpow.pop %v4053
    %v4055 = vsel %vm629, %v4024, 0.0
    %4056 = vadd.xlane.f32.xlu0 %v4055
    %v4057 = vpop.xlane.xlu0 %4056
    %v4058 = vsel %vm629, %v4026, 0.0
    %4059 = vadd.xlane.f32.xlu0 %v4058
    %v4060 = vpop.xlane.xlu0 %4059
    %v4061 = vsel %vm629, %v4028, 0.0
    %4062 = vadd.xlane.f32.xlu0 %v4061
    %v4063 = vpop.xlane.xlu0 %4062
    %v4064 = vsel %vm629, %v4030, 0.0
    %4065 = vadd.xlane.f32.xlu0 %v4064
    %v4066 = vpop.xlane.xlu0 %4065
    %v4067 = vsel %vm629, %v4032, 0.0
    %4068 = vadd.xlane.f32.xlu0 %v4067
    %v4069 = vpop.xlane.xlu0 %4068
    %v4070 = vsel %vm629, %v4034, 0.0
    %4071 = vadd.xlane.f32.xlu0 %v4070
    %v4072 = vpop.xlane.xlu0 %4071
    %v4073 = vsel %vm629, %v4036, 0.0
    %4074 = vadd.xlane.f32.xlu0 %v4073
    %v4075 = vpop.xlane.xlu0 %4074
    %v4076 = vsel %vm629, %v4038, 0.0
    %4077 = vadd.xlane.f32.xlu0 %v4076
    %v4078 = vpop.xlane.xlu0 %4077
    %v4079 = vsel %vm629, %v4040, 0.0
    %4080 = vadd.xlane.f32.xlu0 %v4079
    %v4081 = vpop.xlane.xlu0 %4080
    %v4082 = vsel %vm629, %v4042, 0.0
    %4083 = vadd.xlane.f32.xlu0 %v4082
    %v4084 = vpop.xlane.xlu0 %4083
    %v4085 = vsel %vm629, %v4044, 0.0
    %4086 = vadd.xlane.f32.xlu0 %v4085
    %v4087 = vpop.xlane.xlu0 %4086
    %v4088 = vsel %vm629, %v4046, 0.0
    %4089 = vadd.xlane.f32.xlu0 %v4088
    %v4090 = vpop.xlane.xlu0 %4089
    %v4091 = vsel %vm629, %v4048, 0.0
    %4092 = vadd.xlane.f32.xlu0 %v4091
    %v4093 = vpop.xlane.xlu0 %4092
    %v4094 = vsel %vm629, %v4050, 0.0
    %4095 = vadd.xlane.f32.xlu0 %v4094
    %v4096 = vpop.xlane.xlu0 %4095
    %v4097 = vsel %vm629, %v4052, 0.0
    %4098 = vadd.xlane.f32.xlu0 %v4097
    %v4099 = vpop.xlane.xlu0 %4098
    %v4100 = vsel %vm629, %v4054, 0.0
    %4101 = vadd.xlane.f32.xlu0 %v4100
    %v4102 = vpop.xlane.xlu0 %4101
    %v4103 = vrcp.pop %v4057
    %v4104 = vrcp.pop %v4060
    %v4105 = vrcp.pop %v4063
    %v4106 = vrcp.pop %v4066
    %v4107 = vrcp.pop %v4069
    %v4108 = vrcp.pop %v4072
    %v4109 = vrcp.pop %v4075
    %v4110 = vrcp.pop %v4078
    %v4111 = vrcp.pop %v4081
    %v4112 = vrcp.pop %v4084
    %v4113 = vrcp.pop %v4087
    %v4114 = vrcp.pop %v4090
    %v4115 = vrcp.pop %v4093
    %v4116 = vrcp.pop %v4096
    %v4117 = vrcp.pop %v4099
    %v4118 = vrcp.pop %v4102
    %v4119 = vmul.f32 %v4024, %v4103
    %v4120 = vmul.f32 %v4026, %v4104
    %v4121 = vmul.f32 %v4028, %v4105
    %v4122 = vmul.f32 %v4030, %v4106
    %v4123 = vmul.f32 %v4032, %v4107
    %v4124 = vmul.f32 %v4034, %v4108
    %v4125 = vmul.f32 %v4036, %v4109
    %v4126 = vmul.f32 %v4038, %v4110
    %v4127 = vmul.f32 %v4040, %v4111
    %v4128 = vmul.f32 %v4042, %v4112
    %v4129 = vmul.f32 %v4044, %v4113
    %v4130 = vmul.f32 %v4046, %v4114
    %v4131 = vmul.f32 %v4048, %v4115
    %v4132 = vmul.f32 %v4050, %v4116
    %v4133 = vmul.f32 %v4052, %v4117
    %v4134 = vmul.f32 %v4054, %v4118
    %v4136 = vsel %vm629, %v4119, 0
    %vm4138 = vcmask 1043456
    %v4139 = vsel %vm4138, %v1165, 0
    %4141 = vmatprep.subr.mxu0 0.0
    %4142 = vmatpush1.msra.mxu0 %v4139
    %4143 = vmatprep.subr.mxu0 0.0
    %4144 = vmatpush1.msra.mxu0 0.0
    %4145 = vmatprep.subr.mxu0 0.0
    %4146 = vmatpush1.msra.mxu0 0.0
    %4147 = vmatprep.subr.mxu0 0.0
    %4148 = vmatpush1.msra.mxu0 0.0
    %4149 = vmatprep.subr.mxu0 0.0
    %4150 = vmatpush1.msra.mxu0 0.0
    %4151 = vmatprep.subr.mxu0 0.0
    %4152 = vmatpush1.msra.mxu0 0.0
    %4153 = vmatprep.subr.mxu0 0.0
    %4154 = vmatpush1.msra.mxu0 0.0
    %4155 = vmatprep.subr.mxu0 0.0
    %4156 = vmatpush1.msra.mxu0 0.0
    %4157 = vmatprep.subr.mxu0 0.0
    %4158 = vmatpush1.msra.mxu0 0.0
    %4159 = vmatprep.subr.mxu0 0.0
    %4160 = vmatpush1.msra.mxu0 0.0
    %4161 = vmatprep.subr.mxu0 0.0
    %4162 = vmatpush1.msra.mxu0 0.0
    %4163 = vmatprep.subr.mxu0 0.0
    %4164 = vmatpush1.msra.mxu0 0.0
    %4165 = vmatprep.subr.mxu0 0.0
    %4166 = vmatpush1.msra.mxu0 0.0
    %4167 = vmatprep.subr.mxu0 0.0
    %4168 = vmatpush1.msra.mxu0 0.0
    %4169 = vmatprep.subr.mxu0 0.0
    %4170 = vmatpush1.msra.mxu0 0.0
    %4171 = vmatprep.subr.mxu0 0.0
    %4172 = vmatpush1.msra.mxu0 0.0
    %4173 = vmatprep.subr.mxu0 0.0
    %4174 = vmatpush1.msra.mxu0 0.0
    %4175 = vmatprep.subr.mxu0 0.0
    %4176 = vmatpush1.msra.mxu0 0.0
    %4177 = vmatprep.subr.mxu0 0.0
    %4178 = vmatpush1.msra.mxu0 0.0
    %4179 = vmatprep.subr.mxu0 0.0
    %4180 = vmatpush1.msra.mxu0 0.0
    %4181 = vmatprep.subr.mxu0 0.0
    %4182 = vmatpush1.msra.mxu0 0.0
    %4183 = vmatprep.subr.mxu0 0.0
    %4184 = vmatpush1.msra.mxu0 0.0
    %4185 = vmatprep.subr.mxu0 0.0
    %4186 = vmatpush1.msra.mxu0 0.0
    %4187 = vmatprep.subr.mxu0 0.0
    %4188 = vmatpush1.msra.mxu0 0.0
    %4189 = vmatprep.subr.mxu0 0.0
    %4190 = vmatpush1.msra.mxu0 0.0
    %4191 = vmatprep.subr.mxu0 0.0
    %4192 = vmatpush1.msra.mxu0 0.0
    %4193 = vmatprep.subr.mxu0 0.0
    %4194 = vmatpush1.msra.mxu0 0.0
    %4195 = vmatprep.subr.mxu0 0.0
    %4196 = vmatpush1.msra.mxu0 0.0
    %4197 = vmatprep.subr.mxu0 0.0
    %4198 = vmatpush1.msra.mxu0 0.0
    %4199 = vmatprep.subr.mxu0 0.0
    %4200 = vmatpush1.msra.mxu0 0.0
    %4201 = vmatprep.subr.mxu0 0.0
    %4202 = vmatpush1.msra.mxu0 0.0
    %4203 = vmatprep.subr.mxu0 0.0
    %4204 = vmatpush1.msra.mxu0 0.0
    %4205 = vmatprep.mubr.f32.mxu0 0.0
    %4206 = vmatmul.mubr.f32.gmra.mrb[0].mxu0 %v4136
    %v4207 = vpop.f32.mrb[0].mxu0
    %v4208 = vadd.f32 0.0, %v4207
    %v4209 = vpop.f32.mrb[0].mxu0
    %4210 = vdwg.mxu0
    %v4212 = vsel %vm629, %v4120, 0
    %v4214 = vsel %vm4138, %v1270, 0
    %4216 = vmatprep.subr.mxu0 0.0
    %4217 = vmatpush1.msra.mxu0 %v4214
    %4218 = vmatprep.subr.mxu0 0.0
    %4219 = vmatpush1.msra.mxu0 0.0
    %4220 = vmatprep.subr.mxu0 0.0
    %4221 = vmatpush1.msra.mxu0 0.0
    %4222 = vmatprep.subr.mxu0 0.0
    %4223 = vmatpush1.msra.mxu0 0.0
    %4224 = vmatprep.subr.mxu0 0.0
    %4225 = vmatpush1.msra.mxu0 0.0
    %4226 = vmatprep.subr.mxu0 0.0
    %4227 = vmatpush1.msra.mxu0 0.0
    %4228 = vmatprep.subr.mxu0 0.0
    %4229 = vmatpush1.msra.mxu0 0.0
    %4230 = vmatprep.subr.mxu0 0.0
    %4231 = vmatpush1.msra.mxu0 0.0
    %4232 = vmatprep.subr.mxu0 0.0
    %4233 = vmatpush1.msra.mxu0 0.0
    %4234 = vmatprep.subr.mxu0 0.0
    %4235 = vmatpush1.msra.mxu0 0.0
    %4236 = vmatprep.subr.mxu0 0.0
    %4237 = vmatpush1.msra.mxu0 0.0
    %4238 = vmatprep.subr.mxu0 0.0
    %4239 = vmatpush1.msra.mxu0 0.0
    %4240 = vmatprep.subr.mxu0 0.0
    %4241 = vmatpush1.msra.mxu0 0.0
    %4242 = vmatprep.subr.mxu0 0.0
    %4243 = vmatpush1.msra.mxu0 0.0
    %4244 = vmatprep.subr.mxu0 0.0
    %4245 = vmatpush1.msra.mxu0 0.0
    %4246 = vmatprep.subr.mxu0 0.0
    %4247 = vmatpush1.msra.mxu0 0.0
    %4248 = vmatprep.subr.mxu0 0.0
    %4249 = vmatpush1.msra.mxu0 0.0
    %4250 = vmatprep.subr.mxu0 0.0
    %4251 = vmatpush1.msra.mxu0 0.0
    %4252 = vmatprep.subr.mxu0 0.0
    %4253 = vmatpush1.msra.mxu0 0.0
    %4254 = vmatprep.subr.mxu0 0.0
    %4255 = vmatpush1.msra.mxu0 0.0
    %4256 = vmatprep.subr.mxu0 0.0
    %4257 = vmatpush1.msra.mxu0 0.0
    %4258 = vmatprep.subr.mxu0 0.0
    %4259 = vmatpush1.msra.mxu0 0.0
    %4260 = vmatprep.subr.mxu0 0.0
    %4261 = vmatpush1.msra.mxu0 0.0
    %4262 = vmatprep.subr.mxu0 0.0
    %4263 = vmatpush1.msra.mxu0 0.0
    %4264 = vmatprep.subr.mxu0 0.0
    %4265 = vmatpush1.msra.mxu0 0.0
    %4266 = vmatprep.subr.mxu0 0.0
    %4267 = vmatpush1.msra.mxu0 0.0
    %4268 = vmatprep.subr.mxu0 0.0
    %4269 = vmatpush1.msra.mxu0 0.0
    %4270 = vmatprep.subr.mxu0 0.0
    %4271 = vmatpush1.msra.mxu0 0.0
    %4272 = vmatprep.subr.mxu0 0.0
    %4273 = vmatpush1.msra.mxu0 0.0
    %4274 = vmatprep.subr.mxu0 0.0
    %4275 = vmatpush1.msra.mxu0 0.0
    %4276 = vmatprep.subr.mxu0 0.0
    %4277 = vmatpush1.msra.mxu0 0.0
    %4278 = vmatprep.subr.mxu0 0.0
    %4279 = vmatpush1.msra.mxu0 0.0
    %4280 = vmatprep.mubr.f32.mxu0 0.0
    %4281 = vmatmul.mubr.f32.gmra.mrb[0].mxu0 %v4212
    %v4282 = vpop.f32.mrb[0].mxu0
    %v4283 = vadd.f32 0.0, %v4282
    %v4284 = vpop.f32.mrb[0].mxu0
    %4285 = vdwg.mxu0
    %v4287 = vsel %vm629, %v4121, 0
    %v4289 = vsel %vm4138, %v1375, 0
    %4291 = vmatprep.subr.mxu0 0.0
    %4292 = vmatpush1.msra.mxu0 %v4289
    %4293 = vmatprep.subr.mxu0 0.0
    %4294 = vmatpush1.msra.mxu0 0.0
    %4295 = vmatprep.subr.mxu0 0.0
    %4296 = vmatpush1.msra.mxu0 0.0
    %4297 = vmatprep.subr.mxu0 0.0
    %4298 = vmatpush1.msra.mxu0 0.0
    %4299 = vmatprep.subr.mxu0 0.0
    %4300 = vmatpush1.msra.mxu0 0.0
    %4301 = vmatprep.subr.mxu0 0.0
    %4302 = vmatpush1.msra.mxu0 0.0
    %4303 = vmatprep.subr.mxu0 0.0
    %4304 = vmatpush1.msra.mxu0 0.0
    %4305 = vmatprep.subr.mxu0 0.0
    %4306 = vmatpush1.msra.mxu0 0.0
    %4307 = vmatprep.subr.mxu0 0.0
    %4308 = vmatpush1.msra.mxu0 0.0
    %4309 = vmatprep.subr.mxu0 0.0
    %4310 = vmatpush1.msra.mxu0 0.0
    %4311 = vmatprep.subr.mxu0 0.0
    %4312 = vmatpush1.msra.mxu0 0.0
    %4313 = vmatprep.subr.mxu0 0.0
    %4314 = vmatpush1.msra.mxu0 0.0
    %4315 = vmatprep.subr.mxu0 0.0
    %4316 = vmatpush1.msra.mxu0 0.0
    %4317 = vmatprep.subr.mxu0 0.0
    %4318 = vmatpush1.msra.mxu0 0.0
    %4319 = vmatprep.subr.mxu0 0.0
    %4320 = vmatpush1.msra.mxu0 0.0
    %4321 = vmatprep.subr.mxu0 0.0
    %4322 = vmatpush1.msra.mxu0 0.0
    %4323 = vmatprep.subr.mxu0 0.0
    %4324 = vmatpush1.msra.mxu0 0.0
    %4325 = vmatprep.subr.mxu0 0.0
    %4326 = vmatpush1.msra.mxu0 0.0
    %4327 = vmatprep.subr.mxu0 0.0
    %4328 = vmatpush1.msra.mxu0 0.0
    %4329 = vmatprep.subr.mxu0 0.0
    %4330 = vmatpush1.msra.mxu0 0.0
    %4331 = vmatprep.subr.mxu0 0.0
    %4332 = vmatpush1.msra.mxu0 0.0
    %4333 = vmatprep.subr.mxu0 0.0
    %4334 = vmatpush1.msra.mxu0 0.0
    %4335 = vmatprep.subr.mxu0 0.0
    %4336 = vmatpush1.msra.mxu0 0.0
    %4337 = vmatprep.subr.mxu0 0.0
    %4338 = vmatpush1.msra.mxu0 0.0
    %4339 = vmatprep.subr.mxu0 0.0
    %4340 = vmatpush1.msra.mxu0 0.0
    %4341 = vmatprep.subr.mxu0 0.0
    %4342 = vmatpush1.msra.mxu0 0.0
    %4343 = vmatprep.subr.mxu0 0.0
    %4344 = vmatpush1.msra.mxu0 0.0
    %4345 = vmatprep.subr.mxu0 0.0
    %4346 = vmatpush1.msra.mxu0 0.0
    %4347 = vmatprep.subr.mxu0 0.0
    %4348 = vmatpush1.msra.mxu0 0.0
    %4349 = vmatprep.subr.mxu0 0.0
    %4350 = vmatpush1.msra.mxu0 0.0
    %4351 = vmatprep.subr.mxu0 0.0
    %4352 = vmatpush1.msra.mxu0 0.0
    %4353 = vmatprep.subr.mxu0 0.0
    %4354 = vmatpush1.msra.mxu0 0.0
    %4355 = vmatprep.mubr.f32.mxu0 0.0
    %4356 = vmatmul.mubr.f32.gmra.mrb[0].mxu0 %v4287
    %v4357 = vpop.f32.mrb[0].mxu0
    %v4358 = vadd.f32 0.0, %v4357
    %v4359 = vpop.f32.mrb[0].mxu0
    %4360 = vdwg.mxu0
    %v4362 = vsel %vm629, %v4122, 0
    %v4364 = vsel %vm4138, %v1480, 0
    %4366 = vmatprep.subr.mxu0 0.0
    %4367 = vmatpush1.msra.mxu0 %v4364
    %4368 = vmatprep.subr.mxu0 0.0
    %4369 = vmatpush1.msra.mxu0 0.0
    %4370 = vmatprep.subr.mxu0 0.0
    %4371 = vmatpush1.msra.mxu0 0.0
    %4372 = vmatprep.subr.mxu0 0.0
    %4373 = vmatpush1.msra.mxu0 0.0
    %4374 = vmatprep.subr.mxu0 0.0
    %4375 = vmatpush1.msra.mxu0 0.0
    %4376 = vmatprep.subr.mxu0 0.0
    %4377 = vmatpush1.msra.mxu0 0.0
    %4378 = vmatprep.subr.mxu0 0.0
    %4379 = vmatpush1.msra.mxu0 0.0
    %4380 = vmatprep.subr.mxu0 0.0
    %4381 = vmatpush1.msra.mxu0 0.0
    %4382 = vmatprep.subr.mxu0 0.0
    %4383 = vmatpush1.msra.mxu0 0.0
    %4384 = vmatprep.subr.mxu0 0.0
    %4385 = vmatpush1.msra.mxu0 0.0
    %4386 = vmatprep.subr.mxu0 0.0
    %4387 = vmatpush1.msra.mxu0 0.0
    %4388 = vmatprep.subr.mxu0 0.0
    %4389 = vmatpush1.msra.mxu0 0.0
    %4390 = vmatprep.subr.mxu0 0.0
    %4391 = vmatpush1.msra.mxu0 0.0
    %4392 = vmatprep.subr.mxu0 0.0
    %4393 = vmatpush1.msra.mxu0 0.0
    %4394 = vmatprep.subr.mxu0 0.0
    %4395 = vmatpush1.msra.mxu0 0.0
    %4396 = vmatprep.subr.mxu0 0.0
    %4397 = vmatpush1.msra.mxu0 0.0
    %4398 = vmatprep.subr.mxu0 0.0
    %4399 = vmatpush1.msra.mxu0 0.0
    %4400 = vmatprep.subr.mxu0 0.0
    %4401 = vmatpush1.msra.mxu0 0.0
    %4402 = vmatprep.subr.mxu0 0.0
    %4403 = vmatpush1.msra.mxu0 0.0
    %4404 = vmatprep.subr.mxu0 0.0
    %4405 = vmatpush1.msra.mxu0 0.0
    %4406 = vmatprep.subr.mxu0 0.0
    %4407 = vmatpush1.msra.mxu0 0.0
    %4408 = vmatprep.subr.mxu0 0.0
    %4409 = vmatpush1.msra.mxu0 0.0
    %4410 = vmatprep.subr.mxu0 0.0
    %4411 = vmatpush1.msra.mxu0 0.0
    %4412 = vmatprep.subr.mxu0 0.0
    %4413 = vmatpush1.msra.mxu0 0.0
    %4414 = vmatprep.subr.mxu0 0.0
    %4415 = vmatpush1.msra.mxu0 0.0
    %4416 = vmatprep.subr.mxu0 0.0
    %4417 = vmatpush1.msra.mxu0 0.0
    %4418 = vmatprep.subr.mxu0 0.0
    %4419 = vmatpush1.msra.mxu0 0.0
    %4420 = vmatprep.subr.mxu0 0.0
    %4421 = vmatpush1.msra.mxu0 0.0
    %4422 = vmatprep.subr.mxu0 0.0
    %4423 = vmatpush1.msra.mxu0 0.0
    %4424 = vmatprep.subr.mxu0 0.0
    %4425 = vmatpush1.msra.mxu0 0.0
    %4426 = vmatprep.subr.mxu0 0.0
    %4427 = vmatpush1.msra.mxu0 0.0
    %4428 = vmatprep.subr.mxu0 0.0
    %4429 = vmatpush1.msra.mxu0 0.0
    %4430 = vmatprep.mubr.f32.mxu0 0.0
    %4431 = vmatmul.mubr.f32.gmra.mrb[0].mxu0 %v4362
    %v4432 = vpop.f32.mrb[0].mxu0
    %v4433 = vadd.f32 0.0, %v4432
    %v4434 = vpop.f32.mrb[0].mxu0
    %4435 = vdwg.mxu0
    %v4437 = vsel %vm629, %v4123, 0
    %v4439 = vsel %vm4138, %v1585, 0
    %4441 = vmatprep.subr.mxu0 0.0
    %4442 = vmatpush1.msra.mxu0 %v4439
    %4443 = vmatprep.subr.mxu0 0.0
    %4444 = vmatpush1.msra.mxu0 0.0
    %4445 = vmatprep.subr.mxu0 0.0
    %4446 = vmatpush1.msra.mxu0 0.0
    %4447 = vmatprep.subr.mxu0 0.0
    %4448 = vmatpush1.msra.mxu0 0.0
    %4449 = vmatprep.subr.mxu0 0.0
    %4450 = vmatpush1.msra.mxu0 0.0
    %4451 = vmatprep.subr.mxu0 0.0
    %4452 = vmatpush1.msra.mxu0 0.0
    %4453 = vmatprep.subr.mxu0 0.0
    %4454 = vmatpush1.msra.mxu0 0.0
    %4455 = vmatprep.subr.mxu0 0.0
    %4456 = vmatpush1.msra.mxu0 0.0
    %4457 = vmatprep.subr.mxu0 0.0
    %4458 = vmatpush1.msra.mxu0 0.0
    %4459 = vmatprep.subr.mxu0 0.0
    %4460 = vmatpush1.msra.mxu0 0.0
    %4461 = vmatprep.subr.mxu0 0.0
    %4462 = vmatpush1.msra.mxu0 0.0
    %4463 = vmatprep.subr.mxu0 0.0
    %4464 = vmatpush1.msra.mxu0 0.0
    %4465 = vmatprep.subr.mxu0 0.0
    %4466 = vmatpush1.msra.mxu0 0.0
    %4467 = vmatprep.subr.mxu0 0.0
    %4468 = vmatpush1.msra.mxu0 0.0
    %4469 = vmatprep.subr.mxu0 0.0
    %4470 = vmatpush1.msra.mxu0 0.0
    %4471 = vmatprep.subr.mxu0 0.0
    %4472 = vmatpush1.msra.mxu0 0.0
    %4473 = vmatprep.subr.mxu0 0.0
    %4474 = vmatpush1.msra.mxu0 0.0
    %4475 = vmatprep.subr.mxu0 0.0
    %4476 = vmatpush1.msra.mxu0 0.0
    %4477 = vmatprep.subr.mxu0 0.0
    %4478 = vmatpush1.msra.mxu0 0.0
    %4479 = vmatprep.subr.mxu0 0.0
    %4480 = vmatpush1.msra.mxu0 0.0
    %4481 = vmatprep.subr.mxu0 0.0
    %4482 = vmatpush1.msra.mxu0 0.0
    %4483 = vmatprep.subr.mxu0 0.0
    %4484 = vmatpush1.msra.mxu0 0.0
    %4485 = vmatprep.subr.mxu0 0.0
    %4486 = vmatpush1.msra.mxu0 0.0
    %4487 = vmatprep.subr.mxu0 0.0
    %4488 = vmatpush1.msra.mxu0 0.0
    %4489 = vmatprep.subr.mxu0 0.0
    %4490 = vmatpush1.msra.mxu0 0.0
    %4491 = vmatprep.subr.mxu0 0.0
    %4492 = vmatpush1.msra.mxu0 0.0
    %4493 = vmatprep.subr.mxu0 0.0
    %4494 = vmatpush1.msra.mxu0 0.0
    %4495 = vmatprep.subr.mxu0 0.0
    %4496 = vmatpush1.msra.mxu0 0.0
    %4497 = vmatprep.subr.mxu0 0.0
    %4498 = vmatpush1.msra.mxu0 0.0
    %4499 = vmatprep.subr.mxu0 0.0
    %4500 = vmatpush1.msra.mxu0 0.0
    %4501 = vmatprep.subr.mxu0 0.0
    %4502 = vmatpush1.msra.mxu0 0.0
    %4503 = vmatprep.subr.mxu0 0.0
    %4504 = vmatpush1.msra.mxu0 0.0
    %4505 = vmatprep.mubr.f32.mxu0 0.0
    %4506 = vmatmul.mubr.f32.gmra.mrb[0].mxu0 %v4437
    %v4507 = vpop.f32.mrb[0].mxu0
    %v4508 = vadd.f32 0.0, %v4507
    %v4509 = vpop.f32.mrb[0].mxu0
    %4510 = vdwg.mxu0
    %v4512 = vsel %vm629, %v4124, 0
    %v4514 = vsel %vm4138, %v1690, 0
    %4516 = vmatprep.subr.mxu0 0.0
    %4517 = vmatpush1.msra.mxu0 %v4514
    %4518 = vmatprep.subr.mxu0 0.0
    %4519 = vmatpush1.msra.mxu0 0.0
    %4520 = vmatprep.subr.mxu0 0.0
    %4521 = vmatpush1.msra.mxu0 0.0
    %4522 = vmatprep.subr.mxu0 0.0
    %4523 = vmatpush1.msra.mxu0 0.0
    %4524 = vmatprep.subr.mxu0 0.0
    %4525 = vmatpush1.msra.mxu0 0.0
    %4526 = vmatprep.subr.mxu0 0.0
    %4527 = vmatpush1.msra.mxu0 0.0
    %4528 = vmatprep.subr.mxu0 0.0
    %4529 = vmatpush1.msra.mxu0 0.0
    %4530 = vmatprep.subr.mxu0 0.0
    %4531 = vmatpush1.msra.mxu0 0.0
    %4532 = vmatprep.subr.mxu0 0.0
    %4533 = vmatpush1.msra.mxu0 0.0
    %4534 = vmatprep.subr.mxu0 0.0
    %4535 = vmatpush1.msra.mxu0 0.0
    %4536 = vmatprep.subr.mxu0 0.0
    %4537 = vmatpush1.msra.mxu0 0.0
    %4538 = vmatprep.subr.mxu0 0.0
    %4539 = vmatpush1.msra.mxu0 0.0
    %4540 = vmatprep.subr.mxu0 0.0
    %4541 = vmatpush1.msra.mxu0 0.0
    %4542 = vmatprep.subr.mxu0 0.0
    %4543 = vmatpush1.msra.mxu0 0.0
    %4544 = vmatprep.subr.mxu0 0.0
    %4545 = vmatpush1.msra.mxu0 0.0
    %4546 = vmatprep.subr.mxu0 0.0
    %4547 = vmatpush1.msra.mxu0 0.0
    %4548 = vmatprep.subr.mxu0 0.0
    %4549 = vmatpush1.msra.mxu0 0.0
    %4550 = vmatprep.subr.mxu0 0.0
    %4551 = vmatpush1.msra.mxu0 0.0
    %4552 = vmatprep.subr.mxu0 0.0
    %4553 = vmatpush1.msra.mxu0 0.0
    %4554 = vmatprep.subr.mxu0 0.0
    %4555 = vmatpush1.msra.mxu0 0.0
    %4556 = vmatprep.subr.mxu0 0.0
    %4557 = vmatpush1.msra.mxu0 0.0
    %4558 = vmatprep.subr.mxu0 0.0
    %4559 = vmatpush1.msra.mxu0 0.0
    %4560 = vmatprep.subr.mxu0 0.0
    %4561 = vmatpush1.msra.mxu0 0.0
    %4562 = vmatprep.subr.mxu0 0.0
    %4563 = vmatpush1.msra.mxu0 0.0
    %4564 = vmatprep.subr.mxu0 0.0
    %4565 = vmatpush1.msra.mxu0 0.0
    %4566 = vmatprep.subr.mxu0 0.0
    %4567 = vmatpush1.msra.mxu0 0.0
    %4568 = vmatprep.subr.mxu0 0.0
    %4569 = vmatpush1.msra.mxu0 0.0
    %4570 = vmatprep.subr.mxu0 0.0
    %4571 = vmatpush1.msra.mxu0 0.0
    %4572 = vmatprep.subr.mxu0 0.0
    %4573 = vmatpush1.msra.mxu0 0.0
    %4574 = vmatprep.subr.mxu0 0.0
    %4575 = vmatpush1.msra.mxu0 0.0
    %4576 = vmatprep.subr.mxu0 0.0
    %4577 = vmatpush1.msra.mxu0 0.0
    %4578 = vmatprep.subr.mxu0 0.0
    %4579 = vmatpush1.msra.mxu0 0.0
    %4580 = vmatprep.mubr.f32.mxu0 0.0
    %4581 = vmatmul.mubr.f32.gmra.mrb[0].mxu0 %v4512
    %v4582 = vpop.f32.mrb[0].mxu0
    %v4583 = vadd.f32 0.0, %v4582
    %v4584 = vpop.f32.mrb[0].mxu0
    %4585 = vdwg.mxu0
    %v4587 = vsel %vm629, %v4125, 0
    %v4589 = vsel %vm4138, %v1795, 0
    %4591 = vmatprep.subr.mxu0 0.0
    %4592 = vmatpush1.msra.mxu0 %v4589
    %4593 = vmatprep.subr.mxu0 0.0
    %4594 = vmatpush1.msra.mxu0 0.0
    %4595 = vmatprep.subr.mxu0 0.0
    %4596 = vmatpush1.msra.mxu0 0.0
    %4597 = vmatprep.subr.mxu0 0.0
    %4598 = vmatpush1.msra.mxu0 0.0
    %4599 = vmatprep.subr.mxu0 0.0
    %4600 = vmatpush1.msra.mxu0 0.0
    %4601 = vmatprep.subr.mxu0 0.0
    %4602 = vmatpush1.msra.mxu0 0.0
    %4603 = vmatprep.subr.mxu0 0.0
    %4604 = vmatpush1.msra.mxu0 0.0
    %4605 = vmatprep.subr.mxu0 0.0
    %4606 = vmatpush1.msra.mxu0 0.0
    %4607 = vmatprep.subr.mxu0 0.0
    %4608 = vmatpush1.msra.mxu0 0.0
    %4609 = vmatprep.subr.mxu0 0.0
    %4610 = vmatpush1.msra.mxu0 0.0
    %4611 = vmatprep.subr.mxu0 0.0
    %4612 = vmatpush1.msra.mxu0 0.0
    %4613 = vmatprep.subr.mxu0 0.0
    %4614 = vmatpush1.msra.mxu0 0.0
    %4615 = vmatprep.subr.mxu0 0.0
    %4616 = vmatpush1.msra.mxu0 0.0
    %4617 = vmatprep.subr.mxu0 0.0
    %4618 = vmatpush1.msra.mxu0 0.0
    %4619 = vmatprep.subr.mxu0 0.0
    %4620 = vmatpush1.msra.mxu0 0.0
    %4621 = vmatprep.subr.mxu0 0.0
    %4622 = vmatpush1.msra.mxu0 0.0
    %4623 = vmatprep.subr.mxu0 0.0
    %4624 = vmatpush1.msra.mxu0 0.0
    %4625 = vmatprep.subr.mxu0 0.0
    %4626 = vmatpush1.msra.mxu0 0.0
    %4627 = vmatprep.subr.mxu0 0.0
    %4628 = vmatpush1.msra.mxu0 0.0
    %4629 = vmatprep.subr.mxu0 0.0
    %4630 = vmatpush1.msra.mxu0 0.0
    %4631 = vmatprep.subr.mxu0 0.0
    %4632 = vmatpush1.msra.mxu0 0.0
    %4633 = vmatprep.subr.mxu0 0.0
    %4634 = vmatpush1.msra.mxu0 0.0
    %4635 = vmatprep.subr.mxu0 0.0
    %4636 = vmatpush1.msra.mxu0 0.0
    %4637 = vmatprep.subr.mxu0 0.0
    %4638 = vmatpush1.msra.mxu0 0.0
    %4639 = vmatprep.subr.mxu0 0.0
    %4640 = vmatpush1.msra.mxu0 0.0
    %4641 = vmatprep.subr.mxu0 0.0
    %4642 = vmatpush1.msra.mxu0 0.0
    %4643 = vmatprep.subr.mxu0 0.0
    %4644 = vmatpush1.msra.mxu0 0.0
    %4645 = vmatprep.subr.mxu0 0.0
    %4646 = vmatpush1.msra.mxu0 0.0
    %4647 = vmatprep.subr.mxu0 0.0
    %4648 = vmatpush1.msra.mxu0 0.0
    %4649 = vmatprep.subr.mxu0 0.0
    %4650 = vmatpush1.msra.mxu0 0.0
    %4651 = vmatprep.subr.mxu0 0.0
    %4652 = vmatpush1.msra.mxu0 0.0
    %4653 = vmatprep.subr.mxu0 0.0
    %4654 = vmatpush1.msra.mxu0 0.0
    %4655 = vmatprep.mubr.f32.mxu0 0.0
    %4656 = vmatmul.mubr.f32.gmra.mrb[0].mxu0 %v4587
    %v4657 = vpop.f32.mrb[0].mxu0
    %v4658 = vadd.f32 0.0, %v4657
    %v4659 = vpop.f32.mrb[0].mxu0
    %4660 = vdwg.mxu0
    %v4662 = vsel %vm629, %v4126, 0
    %v4664 = vsel %vm4138, %v1900, 0
    %4666 = vmatprep.subr.mxu0 0.0
    %4667 = vmatpush1.msra.mxu0 %v4664
    %4668 = vmatprep.subr.mxu0 0.0
    %4669 = vmatpush1.msra.mxu0 0.0
    %4670 = vmatprep.subr.mxu0 0.0
    %4671 = vmatpush1.msra.mxu0 0.0
    %4672 = vmatprep.subr.mxu0 0.0
    %4673 = vmatpush1.msra.mxu0 0.0
    %4674 = vmatprep.subr.mxu0 0.0
    %4675 = vmatpush1.msra.mxu0 0.0
    %4676 = vmatprep.subr.mxu0 0.0
    %4677 = vmatpush1.msra.mxu0 0.0
    %4678 = vmatprep.subr.mxu0 0.0
    %4679 = vmatpush1.msra.mxu0 0.0
    %4680 = vmatprep.subr.mxu0 0.0
    %4681 = vmatpush1.msra.mxu0 0.0
    %4682 = vmatprep.subr.mxu0 0.0
    %4683 = vmatpush1.msra.mxu0 0.0
    %4684 = vmatprep.subr.mxu0 0.0
    %4685 = vmatpush1.msra.mxu0 0.0
    %4686 = vmatprep.subr.mxu0 0.0
    %4687 = vmatpush1.msra.mxu0 0.0
    %4688 = vmatprep.subr.mxu0 0.0
    %4689 = vmatpush1.msra.mxu0 0.0
    %4690 = vmatprep.subr.mxu0 0.0
    %4691 = vmatpush1.msra.mxu0 0.0
    %4692 = vmatprep.subr.mxu0 0.0
    %4693 = vmatpush1.msra.mxu0 0.0
    %4694 = vmatprep.subr.mxu0 0.0
    %4695 = vmatpush1.msra.mxu0 0.0
    %4696 = vmatprep.subr.mxu0 0.0
    %4697 = vmatpush1.msra.mxu0 0.0
    %4698 = vmatprep.subr.mxu0 0.0
    %4699 = vmatpush1.msra.mxu0 0.0
    %4700 = vmatprep.subr.mxu0 0.0
    %4701 = vmatpush1.msra.mxu0 0.0
    %4702 = vmatprep.subr.mxu0 0.0
    %4703 = vmatpush1.msra.mxu0 0.0
    %4704 = vmatprep.subr.mxu0 0.0
    %4705 = vmatpush1.msra.mxu0 0.0
    %4706 = vmatprep.subr.mxu0 0.0
    %4707 = vmatpush1.msra.mxu0 0.0
    %4708 = vmatprep.subr.mxu0 0.0
    %4709 = vmatpush1.msra.mxu0 0.0
    %4710 = vmatprep.subr.mxu0 0.0
    %4711 = vmatpush1.msra.mxu0 0.0
    %4712 = vmatprep.subr.mxu0 0.0
    %4713 = vmatpush1.msra.mxu0 0.0
    %4714 = vmatprep.subr.mxu0 0.0
    %4715 = vmatpush1.msra.mxu0 0.0
    %4716 = vmatprep.subr.mxu0 0.0
    %4717 = vmatpush1.msra.mxu0 0.0
    %4718 = vmatprep.subr.mxu0 0.0
    %4719 = vmatpush1.msra.mxu0 0.0
    %4720 = vmatprep.subr.mxu0 0.0
    %4721 = vmatpush1.msra.mxu0 0.0
    %4722 = vmatprep.subr.mxu0 0.0
    %4723 = vmatpush1.msra.mxu0 0.0
    %4724 = vmatprep.subr.mxu0 0.0
    %4725 = vmatpush1.msra.mxu0 0.0
    %4726 = vmatprep.subr.mxu0 0.0
    %4727 = vmatpush1.msra.mxu0 0.0
    %4728 = vmatprep.subr.mxu0 0.0
    %4729 = vmatpush1.msra.mxu0 0.0
    %4730 = vmatprep.mubr.f32.mxu0 0.0
    %4731 = vmatmul.mubr.f32.gmra.mrb[0].mxu0 %v4662
    %v4732 = vpop.f32.mrb[0].mxu0
    %v4733 = vadd.f32 0.0, %v4732
    %v4734 = vpop.f32.mrb[0].mxu0
    %4735 = vdwg.mxu0
    %v4737 = vsel %vm629, %v4127, 0
    %v4739 = vsel %vm4138, %v2005, 0
    %4741 = vmatprep.subr.mxu0 0.0
    %4742 = vmatpush1.msra.mxu0 %v4739
    %4743 = vmatprep.subr.mxu0 0.0
    %4744 = vmatpush1.msra.mxu0 0.0
    %4745 = vmatprep.subr.mxu0 0.0
    %4746 = vmatpush1.msra.mxu0 0.0
    %4747 = vmatprep.subr.mxu0 0.0
    %4748 = vmatpush1.msra.mxu0 0.0
    %4749 = vmatprep.subr.mxu0 0.0
    %4750 = vmatpush1.msra.mxu0 0.0
    %4751 = vmatprep.subr.mxu0 0.0
    %4752 = vmatpush1.msra.mxu0 0.0
    %4753 = vmatprep.subr.mxu0 0.0
    %4754 = vmatpush1.msra.mxu0 0.0
    %4755 = vmatprep.subr.mxu0 0.0
    %4756 = vmatpush1.msra.mxu0 0.0
    %4757 = vmatprep.subr.mxu0 0.0
    %4758 = vmatpush1.msra.mxu0 0.0
    %4759 = vmatprep.subr.mxu0 0.0
    %4760 = vmatpush1.msra.mxu0 0.0
    %4761 = vmatprep.subr.mxu0 0.0
    %4762 = vmatpush1.msra.mxu0 0.0
    %4763 = vmatprep.subr.mxu0 0.0
    %4764 = vmatpush1.msra.mxu0 0.0
    %4765 = vmatprep.subr.mxu0 0.0
    %4766 = vmatpush1.msra.mxu0 0.0
    %4767 = vmatprep.subr.mxu0 0.0
    %4768 = vmatpush1.msra.mxu0 0.0
    %4769 = vmatprep.subr.mxu0 0.0
    %4770 = vmatpush1.msra.mxu0 0.0
    %4771 = vmatprep.subr.mxu0 0.0
    %4772 = vmatpush1.msra.mxu0 0.0
    %4773 = vmatprep.subr.mxu0 0.0
    %4774 = vmatpush1.msra.mxu0 0.0
    %4775 = vmatprep.subr.mxu0 0.0
    %4776 = vmatpush1.msra.mxu0 0.0
    %4777 = vmatprep.subr.mxu0 0.0
    %4778 = vmatpush1.msra.mxu0 0.0
    %4779 = vmatprep.subr.mxu0 0.0
    %4780 = vmatpush1.msra.mxu0 0.0
    %4781 = vmatprep.subr.mxu0 0.0
    %4782 = vmatpush1.msra.mxu0 0.0
    %4783 = vmatprep.subr.mxu0 0.0
    %4784 = vmatpush1.msra.mxu0 0.0
    %4785 = vmatprep.subr.mxu0 0.0
    %4786 = vmatpush1.msra.mxu0 0.0
    %4787 = vmatprep.subr.mxu0 0.0
    %4788 = vmatpush1.msra.mxu0 0.0
    %4789 = vmatprep.subr.mxu0 0.0
    %4790 = vmatpush1.msra.mxu0 0.0
    %4791 = vmatprep.subr.mxu0 0.0
    %4792 = vmatpush1.msra.mxu0 0.0
    %4793 = vmatprep.subr.mxu0 0.0
    %4794 = vmatpush1.msra.mxu0 0.0
    %4795 = vmatprep.subr.mxu0 0.0
    %4796 = vmatpush1.msra.mxu0 0.0
    %4797 = vmatprep.subr.mxu0 0.0
    %4798 = vmatpush1.msra.mxu0 0.0
    %4799 = vmatprep.subr.mxu0 0.0
    %4800 = vmatpush1.msra.mxu0 0.0
    %4801 = vmatprep.subr.mxu0 0.0
    %4802 = vmatpush1.msra.mxu0 0.0
    %4803 = vmatprep.subr.mxu0 0.0
    %4804 = vmatpush1.msra.mxu0 0.0
    %4805 = vmatprep.mubr.f32.mxu0 0.0
    %4806 = vmatmul.mubr.f32.gmra.mrb[0].mxu0 %v4737
    %v4807 = vpop.f32.mrb[0].mxu0
    %v4808 = vadd.f32 0.0, %v4807
    %v4809 = vpop.f32.mrb[0].mxu0
    %4810 = vdwg.mxu0
    %v4812 = vsel %vm629, %v4128, 0
    %v4814 = vsel %vm4138, %v2110, 0
    %4816 = vmatprep.subr.mxu0 0.0
    %4817 = vmatpush1.msra.mxu0 %v4814
    %4818 = vmatprep.subr.mxu0 0.0
    %4819 = vmatpush1.msra.mxu0 0.0
    %4820 = vmatprep.subr.mxu0 0.0
    %4821 = vmatpush1.msra.mxu0 0.0
    %4822 = vmatprep.subr.mxu0 0.0
    %4823 = vmatpush1.msra.mxu0 0.0
    %4824 = vmatprep.subr.mxu0 0.0
    %4825 = vmatpush1.msra.mxu0 0.0
    %4826 = vmatprep.subr.mxu0 0.0
    %4827 = vmatpush1.msra.mxu0 0.0
    %4828 = vmatprep.subr.mxu0 0.0
    %4829 = vmatpush1.msra.mxu0 0.0
    %4830 = vmatprep.subr.mxu0 0.0
    %4831 = vmatpush1.msra.mxu0 0.0
    %4832 = vmatprep.subr.mxu0 0.0
    %4833 = vmatpush1.msra.mxu0 0.0
    %4834 = vmatprep.subr.mxu0 0.0
    %4835 = vmatpush1.msra.mxu0 0.0
    %4836 = vmatprep.subr.mxu0 0.0
    %4837 = vmatpush1.msra.mxu0 0.0
    %4838 = vmatprep.subr.mxu0 0.0
    %4839 = vmatpush1.msra.mxu0 0.0
    %4840 = vmatprep.subr.mxu0 0.0
    %4841 = vmatpush1.msra.mxu0 0.0
    %4842 = vmatprep.subr.mxu0 0.0
    %4843 = vmatpush1.msra.mxu0 0.0
    %4844 = vmatprep.subr.mxu0 0.0
    %4845 = vmatpush1.msra.mxu0 0.0
    %4846 = vmatprep.subr.mxu0 0.0
    %4847 = vmatpush1.msra.mxu0 0.0
    %4848 = vmatprep.subr.mxu0 0.0
    %4849 = vmatpush1.msra.mxu0 0.0
    %4850 = vmatprep.subr.mxu0 0.0
    %4851 = vmatpush1.msra.mxu0 0.0
    %4852 = vmatprep.subr.mxu0 0.0
    %4853 = vmatpush1.msra.mxu0 0.0
    %4854 = vmatprep.subr.mxu0 0.0
    %4855 = vmatpush1.msra.mxu0 0.0
    %4856 = vmatprep.subr.mxu0 0.0
    %4857 = vmatpush1.msra.mxu0 0.0
    %4858 = vmatprep.subr.mxu0 0.0
    %4859 = vmatpush1.msra.mxu0 0.0
    %4860 = vmatprep.subr.mxu0 0.0
    %4861 = vmatpush1.msra.mxu0 0.0
    %4862 = vmatprep.subr.mxu0 0.0
    %4863 = vmatpush1.msra.mxu0 0.0
    %4864 = vmatprep.subr.mxu0 0.0
    %4865 = vmatpush1.msra.mxu0 0.0
    %4866 = vmatprep.subr.mxu0 0.0
    %4867 = vmatpush1.msra.mxu0 0.0
    %4868 = vmatprep.subr.mxu0 0.0
    %4869 = vmatpush1.msra.mxu0 0.0
    %4870 = vmatprep.subr.mxu0 0.0
    %4871 = vmatpush1.msra.mxu0 0.0
    %4872 = vmatprep.subr.mxu0 0.0
    %4873 = vmatpush1.msra.mxu0 0.0
    %4874 = vmatprep.subr.mxu0 0.0
    %4875 = vmatpush1.msra.mxu0 0.0
    %4876 = vmatprep.subr.mxu0 0.0
    %4877 = vmatpush1.msra.mxu0 0.0
    %4878 = vmatprep.subr.mxu0 0.0
    %4879 = vmatpush1.msra.mxu0 0.0
    %4880 = vmatprep.mubr.f32.mxu0 0.0
    %4881 = vmatmul.mubr.f32.gmra.mrb[0].mxu0 %v4812
    %v4882 = vpop.f32.mrb[0].mxu0
    %v4883 = vadd.f32 0.0, %v4882
    %v4884 = vpop.f32.mrb[0].mxu0
    %4885 = vdwg.mxu0
    %v4887 = vsel %vm629, %v4129, 0
    %v4889 = vsel %vm4138, %v2215, 0
    %4891 = vmatprep.subr.mxu0 0.0
    %4892 = vmatpush1.msra.mxu0 %v4889
    %4893 = vmatprep.subr.mxu0 0.0
    %4894 = vmatpush1.msra.mxu0 0.0
    %4895 = vmatprep.subr.mxu0 0.0
    %4896 = vmatpush1.msra.mxu0 0.0
    %4897 = vmatprep.subr.mxu0 0.0
    %4898 = vmatpush1.msra.mxu0 0.0
    %4899 = vmatprep.subr.mxu0 0.0
    %4900 = vmatpush1.msra.mxu0 0.0
    %4901 = vmatprep.subr.mxu0 0.0
    %4902 = vmatpush1.msra.mxu0 0.0
    %4903 = vmatprep.subr.mxu0 0.0
    %4904 = vmatpush1.msra.mxu0 0.0
    %4905 = vmatprep.subr.mxu0 0.0
    %4906 = vmatpush1.msra.mxu0 0.0
    %4907 = vmatprep.subr.mxu0 0.0
    %4908 = vmatpush1.msra.mxu0 0.0
    %4909 = vmatprep.subr.mxu0 0.0
    %4910 = vmatpush1.msra.mxu0 0.0
    %4911 = vmatprep.subr.mxu0 0.0
    %4912 = vmatpush1.msra.mxu0 0.0
    %4913 = vmatprep.subr.mxu0 0.0
    %4914 = vmatpush1.msra.mxu0 0.0
    %4915 = vmatprep.subr.mxu0 0.0
    %4916 = vmatpush1.msra.mxu0 0.0
    %4917 = vmatprep.subr.mxu0 0.0
    %4918 = vmatpush1.msra.mxu0 0.0
    %4919 = vmatprep.subr.mxu0 0.0
    %4920 = vmatpush1.msra.mxu0 0.0
    %4921 = vmatprep.subr.mxu0 0.0
    %4922 = vmatpush1.msra.mxu0 0.0
    %4923 = vmatprep.subr.mxu0 0.0
    %4924 = vmatpush1.msra.mxu0 0.0
    %4925 = vmatprep.subr.mxu0 0.0
    %4926 = vmatpush1.msra.mxu0 0.0
    %4927 = vmatprep.subr.mxu0 0.0
    %4928 = vmatpush1.msra.mxu0 0.0
    %4929 = vmatprep.subr.mxu0 0.0
    %4930 = vmatpush1.msra.mxu0 0.0
    %4931 = vmatprep.subr.mxu0 0.0
    %4932 = vmatpush1.msra.mxu0 0.0
    %4933 = vmatprep.subr.mxu0 0.0
    %4934 = vmatpush1.msra.mxu0 0.0
    %4935 = vmatprep.subr.mxu0 0.0
    %4936 = vmatpush1.msra.mxu0 0.0
    %4937 = vmatprep.subr.mxu0 0.0
    %4938 = vmatpush1.msra.mxu0 0.0
    %4939 = vmatprep.subr.mxu0 0.0
    %4940 = vmatpush1.msra.mxu0 0.0
    %4941 = vmatprep.subr.mxu0 0.0
    %4942 = vmatpush1.msra.mxu0 0.0
    %4943 = vmatprep.subr.mxu0 0.0
    %4944 = vmatpush1.msra.mxu0 0.0
    %4945 = vmatprep.subr.mxu0 0.0
    %4946 = vmatpush1.msra.mxu0 0.0
    %4947 = vmatprep.subr.mxu0 0.0
    %4948 = vmatpush1.msra.mxu0 0.0
    %4949 = vmatprep.subr.mxu0 0.0
    %4950 = vmatpush1.msra.mxu0 0.0
    %4951 = vmatprep.subr.mxu0 0.0
    %4952 = vmatpush1.msra.mxu0 0.0
    %4953 = vmatprep.subr.mxu0 0.0
    %4954 = vmatpush1.msra.mxu0 0.0
    %4955 = vmatprep.mubr.f32.mxu0 0.0
    %4956 = vmatmul.mubr.f32.gmra.mrb[0].mxu0 %v4887
    %v4957 = vpop.f32.mrb[0].mxu0
    %v4958 = vadd.f32 0.0, %v4957
    %v4959 = vpop.f32.mrb[0].mxu0
    %4960 = vdwg.mxu0
    %v4962 = vsel %vm629, %v4130, 0
    %v4964 = vsel %vm4138, %v2320, 0
    %4966 = vmatprep.subr.mxu0 0.0
    %4967 = vmatpush1.msra.mxu0 %v4964
    %4968 = vmatprep.subr.mxu0 0.0
    %4969 = vmatpush1.msra.mxu0 0.0
    %4970 = vmatprep.subr.mxu0 0.0
    %4971 = vmatpush1.msra.mxu0 0.0
    %4972 = vmatprep.subr.mxu0 0.0
    %4973 = vmatpush1.msra.mxu0 0.0
    %4974 = vmatprep.subr.mxu0 0.0
    %4975 = vmatpush1.msra.mxu0 0.0
    %4976 = vmatprep.subr.mxu0 0.0
    %4977 = vmatpush1.msra.mxu0 0.0
    %4978 = vmatprep.subr.mxu0 0.0
    %4979 = vmatpush1.msra.mxu0 0.0
    %4980 = vmatprep.subr.mxu0 0.0
    %4981 = vmatpush1.msra.mxu0 0.0
    %4982 = vmatprep.subr.mxu0 0.0
    %4983 = vmatpush1.msra.mxu0 0.0
    %4984 = vmatprep.subr.mxu0 0.0
    %4985 = vmatpush1.msra.mxu0 0.0
    %4986 = vmatprep.subr.mxu0 0.0
    %4987 = vmatpush1.msra.mxu0 0.0
    %4988 = vmatprep.subr.mxu0 0.0
    %4989 = vmatpush1.msra.mxu0 0.0
    %4990 = vmatprep.subr.mxu0 0.0
    %4991 = vmatpush1.msra.mxu0 0.0
    %4992 = vmatprep.subr.mxu0 0.0
    %4993 = vmatpush1.msra.mxu0 0.0
    %4994 = vmatprep.subr.mxu0 0.0
    %4995 = vmatpush1.msra.mxu0 0.0
    %4996 = vmatprep.subr.mxu0 0.0
    %4997 = vmatpush1.msra.mxu0 0.0
    %4998 = vmatprep.subr.mxu0 0.0
    %4999 = vmatpush1.msra.mxu0 0.0
    %5000 = vmatprep.subr.mxu0 0.0
    %5001 = vmatpush1.msra.mxu0 0.0
    %5002 = vmatprep.subr.mxu0 0.0
    %5003 = vmatpush1.msra.mxu0 0.0
    %5004 = vmatprep.subr.mxu0 0.0
    %5005 = vmatpush1.msra.mxu0 0.0
    %5006 = vmatprep.subr.mxu0 0.0
    %5007 = vmatpush1.msra.mxu0 0.0
    %5008 = vmatprep.subr.mxu0 0.0
    %5009 = vmatpush1.msra.mxu0 0.0
    %5010 = vmatprep.subr.mxu0 0.0
    %5011 = vmatpush1.msra.mxu0 0.0
    %5012 = vmatprep.subr.mxu0 0.0
    %5013 = vmatpush1.msra.mxu0 0.0
    %5014 = vmatprep.subr.mxu0 0.0
    %5015 = vmatpush1.msra.mxu0 0.0
    %5016 = vmatprep.subr.mxu0 0.0
    %5017 = vmatpush1.msra.mxu0 0.0
    %5018 = vmatprep.subr.mxu0 0.0
    %5019 = vmatpush1.msra.mxu0 0.0
    %5020 = vmatprep.subr.mxu0 0.0
    %5021 = vmatpush1.msra.mxu0 0.0
    %5022 = vmatprep.subr.mxu0 0.0
    %5023 = vmatpush1.msra.mxu0 0.0
    %5024 = vmatprep.subr.mxu0 0.0
    %5025 = vmatpush1.msra.mxu0 0.0
    %5026 = vmatprep.subr.mxu0 0.0
    %5027 = vmatpush1.msra.mxu0 0.0
    %5028 = vmatprep.subr.mxu0 0.0
    %5029 = vmatpush1.msra.mxu0 0.0
    %5030 = vmatprep.mubr.f32.mxu0 0.0
    %5031 = vmatmul.mubr.f32.gmra.mrb[0].mxu0 %v4962
    %v5032 = vpop.f32.mrb[0].mxu0
    %v5033 = vadd.f32 0.0, %v5032
    %v5034 = vpop.f32.mrb[0].mxu0
    %5035 = vdwg.mxu0
    %v5037 = vsel %vm629, %v4131, 0
    %v5039 = vsel %vm4138, %v2425, 0
    %5041 = vmatprep.subr.mxu0 0.0
    %5042 = vmatpush1.msra.mxu0 %v5039
    %5043 = vmatprep.subr.mxu0 0.0
    %5044 = vmatpush1.msra.mxu0 0.0
    %5045 = vmatprep.subr.mxu0 0.0
    %5046 = vmatpush1.msra.mxu0 0.0
    %5047 = vmatprep.subr.mxu0 0.0
    %5048 = vmatpush1.msra.mxu0 0.0
    %5049 = vmatprep.subr.mxu0 0.0
    %5050 = vmatpush1.msra.mxu0 0.0
    %5051 = vmatprep.subr.mxu0 0.0
    %5052 = vmatpush1.msra.mxu0 0.0
    %5053 = vmatprep.subr.mxu0 0.0
    %5054 = vmatpush1.msra.mxu0 0.0
    %5055 = vmatprep.subr.mxu0 0.0
    %5056 = vmatpush1.msra.mxu0 0.0
    %5057 = vmatprep.subr.mxu0 0.0
    %5058 = vmatpush1.msra.mxu0 0.0
    %5059 = vmatprep.subr.mxu0 0.0
    %5060 = vmatpush1.msra.mxu0 0.0
    %5061 = vmatprep.subr.mxu0 0.0
    %5062 = vmatpush1.msra.mxu0 0.0
    %5063 = vmatprep.subr.mxu0 0.0
    %5064 = vmatpush1.msra.mxu0 0.0
    %5065 = vmatprep.subr.mxu0 0.0
    %5066 = vmatpush1.msra.mxu0 0.0
    %5067 = vmatprep.subr.mxu0 0.0
    %5068 = vmatpush1.msra.mxu0 0.0
    %5069 = vmatprep.subr.mxu0 0.0
    %5070 = vmatpush1.msra.mxu0 0.0
    %5071 = vmatprep.subr.mxu0 0.0
    %5072 = vmatpush1.msra.mxu0 0.0
    %5073 = vmatprep.subr.mxu0 0.0
    %5074 = vmatpush1.msra.mxu0 0.0
    %5075 = vmatprep.subr.mxu0 0.0
    %5076 = vmatpush1.msra.mxu0 0.0
    %5077 = vmatprep.subr.mxu0 0.0
    %5078 = vmatpush1.msra.mxu0 0.0
    %5079 = vmatprep.subr.mxu0 0.0
    %5080 = vmatpush1.msra.mxu0 0.0
    %5081 = vmatprep.subr.mxu0 0.0
    %5082 = vmatpush1.msra.mxu0 0.0
    %5083 = vmatprep.subr.mxu0 0.0
    %5084 = vmatpush1.msra.mxu0 0.0
    %5085 = vmatprep.subr.mxu0 0.0
    %5086 = vmatpush1.msra.mxu0 0.0
    %5087 = vmatprep.subr.mxu0 0.0
    %5088 = vmatpush1.msra.mxu0 0.0
    %5089 = vmatprep.subr.mxu0 0.0
    %5090 = vmatpush1.msra.mxu0 0.0
    %5091 = vmatprep.subr.mxu0 0.0
    %5092 = vmatpush1.msra.mxu0 0.0
    %5093 = vmatprep.subr.mxu0 0.0
    %5094 = vmatpush1.msra.mxu0 0.0
    %5095 = vmatprep.subr.mxu0 0.0
    %5096 = vmatpush1.msra.mxu0 0.0
    %5097 = vmatprep.subr.mxu0 0.0
    %5098 = vmatpush1.msra.mxu0 0.0
    %5099 = vmatprep.subr.mxu0 0.0
    %5100 = vmatpush1.msra.mxu0 0.0
    %5101 = vmatprep.subr.mxu0 0.0
    %5102 = vmatpush1.msra.mxu0 0.0
    %5103 = vmatprep.subr.mxu0 0.0
    %5104 = vmatpush1.msra.mxu0 0.0
    %5105 = vmatprep.mubr.f32.mxu0 0.0
    %5106 = vmatmul.mubr.f32.gmra.mrb[0].mxu0 %v5037
    %v5107 = vpop.f32.mrb[0].mxu0
    %v5108 = vadd.f32 0.0, %v5107
    %v5109 = vpop.f32.mrb[0].mxu0
    %5110 = vdwg.mxu0
    %v5112 = vsel %vm629, %v4132, 0
    %v5114 = vsel %vm4138, %v2530, 0
    %5116 = vmatprep.subr.mxu0 0.0
    %5117 = vmatpush1.msra.mxu0 %v5114
    %5118 = vmatprep.subr.mxu0 0.0
    %5119 = vmatpush1.msra.mxu0 0.0
    %5120 = vmatprep.subr.mxu0 0.0
    %5121 = vmatpush1.msra.mxu0 0.0
    %5122 = vmatprep.subr.mxu0 0.0
    %5123 = vmatpush1.msra.mxu0 0.0
    %5124 = vmatprep.subr.mxu0 0.0
    %5125 = vmatpush1.msra.mxu0 0.0
    %5126 = vmatprep.subr.mxu0 0.0
    %5127 = vmatpush1.msra.mxu0 0.0
    %5128 = vmatprep.subr.mxu0 0.0
    %5129 = vmatpush1.msra.mxu0 0.0
    %5130 = vmatprep.subr.mxu0 0.0
    %5131 = vmatpush1.msra.mxu0 0.0
    %5132 = vmatprep.subr.mxu0 0.0
    %5133 = vmatpush1.msra.mxu0 0.0
    %5134 = vmatprep.subr.mxu0 0.0
    %5135 = vmatpush1.msra.mxu0 0.0
    %5136 = vmatprep.subr.mxu0 0.0
    %5137 = vmatpush1.msra.mxu0 0.0
    %5138 = vmatprep.subr.mxu0 0.0
    %5139 = vmatpush1.msra.mxu0 0.0
    %5140 = vmatprep.subr.mxu0 0.0
    %5141 = vmatpush1.msra.mxu0 0.0
    %5142 = vmatprep.subr.mxu0 0.0
    %5143 = vmatpush1.msra.mxu0 0.0
    %5144 = vmatprep.subr.mxu0 0.0
    %5145 = vmatpush1.msra.mxu0 0.0
    %5146 = vmatprep.subr.mxu0 0.0
    %5147 = vmatpush1.msra.mxu0 0.0
    %5148 = vmatprep.subr.mxu0 0.0
    %5149 = vmatpush1.msra.mxu0 0.0
    %5150 = vmatprep.subr.mxu0 0.0
    %5151 = vmatpush1.msra.mxu0 0.0
    %5152 = vmatprep.subr.mxu0 0.0
    %5153 = vmatpush1.msra.mxu0 0.0
    %5154 = vmatprep.subr.mxu0 0.0
    %5155 = vmatpush1.msra.mxu0 0.0
    %5156 = vmatprep.subr.mxu0 0.0
    %5157 = vmatpush1.msra.mxu0 0.0
    %5158 = vmatprep.subr.mxu0 0.0
    %5159 = vmatpush1.msra.mxu0 0.0
    %5160 = vmatprep.subr.mxu0 0.0
    %5161 = vmatpush1.msra.mxu0 0.0
    %5162 = vmatprep.subr.mxu0 0.0
    %5163 = vmatpush1.msra.mxu0 0.0
    %5164 = vmatprep.subr.mxu0 0.0
    %5165 = vmatpush1.msra.mxu0 0.0
    %5166 = vmatprep.subr.mxu0 0.0
    %5167 = vmatpush1.msra.mxu0 0.0
    %5168 = vmatprep.subr.mxu0 0.0
    %5169 = vmatpush1.msra.mxu0 0.0
    %5170 = vmatprep.subr.mxu0 0.0
    %5171 = vmatpush1.msra.mxu0 0.0
    %5172 = vmatprep.subr.mxu0 0.0
    %5173 = vmatpush1.msra.mxu0 0.0
    %5174 = vmatprep.subr.mxu0 0.0
    %5175 = vmatpush1.msra.mxu0 0.0
    %5176 = vmatprep.subr.mxu0 0.0
    %5177 = vmatpush1.msra.mxu0 0.0
    %5178 = vmatprep.subr.mxu0 0.0
    %5179 = vmatpush1.msra.mxu0 0.0
    %5180 = vmatprep.mubr.f32.mxu0 0.0
    %5181 = vmatmul.mubr.f32.gmra.mrb[0].mxu0 %v5112
    %v5182 = vpop.f32.mrb[0].mxu0
    %v5183 = vadd.f32 0.0, %v5182
    %v5184 = vpop.f32.mrb[0].mxu0
    %5185 = vdwg.mxu0
    %v5187 = vsel %vm629, %v4133, 0
    %v5189 = vsel %vm4138, %v2635, 0
    %5191 = vmatprep.subr.mxu0 0.0
    %5192 = vmatpush1.msra.mxu0 %v5189
    %5193 = vmatprep.subr.mxu0 0.0
    %5194 = vmatpush1.msra.mxu0 0.0
    %5195 = vmatprep.subr.mxu0 0.0
    %5196 = vmatpush1.msra.mxu0 0.0
    %5197 = vmatprep.subr.mxu0 0.0
    %5198 = vmatpush1.msra.mxu0 0.0
    %5199 = vmatprep.subr.mxu0 0.0
    %5200 = vmatpush1.msra.mxu0 0.0
    %5201 = vmatprep.subr.mxu0 0.0
    %5202 = vmatpush1.msra.mxu0 0.0
    %5203 = vmatprep.subr.mxu0 0.0
    %5204 = vmatpush1.msra.mxu0 0.0
    %5205 = vmatprep.subr.mxu0 0.0
    %5206 = vmatpush1.msra.mxu0 0.0
    %5207 = vmatprep.subr.mxu0 0.0
    %5208 = vmatpush1.msra.mxu0 0.0
    %5209 = vmatprep.subr.mxu0 0.0
    %5210 = vmatpush1.msra.mxu0 0.0
    %5211 = vmatprep.subr.mxu0 0.0
    %5212 = vmatpush1.msra.mxu0 0.0
    %5213 = vmatprep.subr.mxu0 0.0
    %5214 = vmatpush1.msra.mxu0 0.0
    %5215 = vmatprep.subr.mxu0 0.0
    %5216 = vmatpush1.msra.mxu0 0.0
    %5217 = vmatprep.subr.mxu0 0.0
    %5218 = vmatpush1.msra.mxu0 0.0
    %5219 = vmatprep.subr.mxu0 0.0
    %5220 = vmatpush1.msra.mxu0 0.0
    %5221 = vmatprep.subr.mxu0 0.0
    %5222 = vmatpush1.msra.mxu0 0.0
    %5223 = vmatprep.subr.mxu0 0.0
    %5224 = vmatpush1.msra.mxu0 0.0
    %5225 = vmatprep.subr.mxu0 0.0
    %5226 = vmatpush1.msra.mxu0 0.0
    %5227 = vmatprep.subr.mxu0 0.0
    %5228 = vmatpush1.msra.mxu0 0.0
    %5229 = vmatprep.subr.mxu0 0.0
    %5230 = vmatpush1.msra.mxu0 0.0
    %5231 = vmatprep.subr.mxu0 0.0
    %5232 = vmatpush1.msra.mxu0 0.0
    %5233 = vmatprep.subr.mxu0 0.0
    %5234 = vmatpush1.msra.mxu0 0.0
    %5235 = vmatprep.subr.mxu0 0.0
    %5236 = vmatpush1.msra.mxu0 0.0
    %5237 = vmatprep.subr.mxu0 0.0
    %5238 = vmatpush1.msra.mxu0 0.0
    %5239 = vmatprep.subr.mxu0 0.0
    %5240 = vmatpush1.msra.mxu0 0.0
    %5241 = vmatprep.subr.mxu0 0.0
    %5242 = vmatpush1.msra.mxu0 0.0
    %5243 = vmatprep.subr.mxu0 0.0
    %5244 = vmatpush1.msra.mxu0 0.0
    %5245 = vmatprep.subr.mxu0 0.0
    %5246 = vmatpush1.msra.mxu0 0.0
    %5247 = vmatprep.subr.mxu0 0.0
    %5248 = vmatpush1.msra.mxu0 0.0
    %5249 = vmatprep.subr.mxu0 0.0
    %5250 = vmatpush1.msra.mxu0 0.0
    %5251 = vmatprep.subr.mxu0 0.0
    %5252 = vmatpush1.msra.mxu0 0.0
    %5253 = vmatprep.subr.mxu0 0.0
    %5254 = vmatpush1.msra.mxu0 0.0
    %5255 = vmatprep.mubr.f32.mxu0 0.0
    %5256 = vmatmul.mubr.f32.gmra.mrb[0].mxu0 %v5187
    %v5257 = vpop.f32.mrb[0].mxu0
    %v5258 = vadd.f32 0.0, %v5257
    %v5259 = vpop.f32.mrb[0].mxu0
    %5260 = vdwg.mxu0
    %v5262 = vsel %vm629, %v4134, 0
    %v5264 = vsel %vm4138, %v2740, 0
    %5266 = vmatprep.subr.mxu0 0.0
    %5267 = vmatpush1.msra.mxu0 %v5264
    %5268 = vmatprep.subr.mxu0 0.0
    %5269 = vmatpush1.msra.mxu0 0.0
    %5270 = vmatprep.subr.mxu0 0.0
    %5271 = vmatpush1.msra.mxu0 0.0
    %5272 = vmatprep.subr.mxu0 0.0
    %5273 = vmatpush1.msra.mxu0 0.0
    %5274 = vmatprep.subr.mxu0 0.0
    %5275 = vmatpush1.msra.mxu0 0.0
    %5276 = vmatprep.subr.mxu0 0.0
    %5277 = vmatpush1.msra.mxu0 0.0
    %5278 = vmatprep.subr.mxu0 0.0
    %5279 = vmatpush1.msra.mxu0 0.0
    %5280 = vmatprep.subr.mxu0 0.0
    %5281 = vmatpush1.msra.mxu0 0.0
    %5282 = vmatprep.subr.mxu0 0.0
    %5283 = vmatpush1.msra.mxu0 0.0
    %5284 = vmatprep.subr.mxu0 0.0
    %5285 = vmatpush1.msra.mxu0 0.0
    %5286 = vmatprep.subr.mxu0 0.0
    %5287 = vmatpush1.msra.mxu0 0.0
    %5288 = vmatprep.subr.mxu0 0.0
    %5289 = vmatpush1.msra.mxu0 0.0
    %5290 = vmatprep.subr.mxu0 0.0
    %5291 = vmatpush1.msra.mxu0 0.0
    %5292 = vmatprep.subr.mxu0 0.0
    %5293 = vmatpush1.msra.mxu0 0.0
    %5294 = vmatprep.subr.mxu0 0.0
    %5295 = vmatpush1.msra.mxu0 0.0
    %5296 = vmatprep.subr.mxu0 0.0
    %5297 = vmatpush1.msra.mxu0 0.0
    %5298 = vmatprep.subr.mxu0 0.0
    %5299 = vmatpush1.msra.mxu0 0.0
    %5300 = vmatprep.subr.mxu0 0.0
    %5301 = vmatpush1.msra.mxu0 0.0
    %5302 = vmatprep.subr.mxu0 0.0
    %5303 = vmatpush1.msra.mxu0 0.0
    %5304 = vmatprep.subr.mxu0 0.0
    %5305 = vmatpush1.msra.mxu0 0.0
    %5306 = vmatprep.subr.mxu0 0.0
    %5307 = vmatpush1.msra.mxu0 0.0
    %5308 = vmatprep.subr.mxu0 0.0
    %5309 = vmatpush1.msra.mxu0 0.0
    %5310 = vmatprep.subr.mxu0 0.0
    %5311 = vmatpush1.msra.mxu0 0.0
    %5312 = vmatprep.subr.mxu0 0.0
    %5313 = vmatpush1.msra.mxu0 0.0
    %5314 = vmatprep.subr.mxu0 0.0
    %5315 = vmatpush1.msra.mxu0 0.0
    %5316 = vmatprep.subr.mxu0 0.0
    %5317 = vmatpush1.msra.mxu0 0.0
    %5318 = vmatprep.subr.mxu0 0.0
    %5319 = vmatpush1.msra.mxu0 0.0
    %5320 = vmatprep.subr.mxu0 0.0
    %5321 = vmatpush1.msra.mxu0 0.0
    %5322 = vmatprep.subr.mxu0 0.0
    %5323 = vmatpush1.msra.mxu0 0.0
    %5324 = vmatprep.subr.mxu0 0.0
    %5325 = vmatpush1.msra.mxu0 0.0
    %5326 = vmatprep.subr.mxu0 0.0
    %5327 = vmatpush1.msra.mxu0 0.0
    %5328 = vmatprep.subr.mxu0 0.0
    %5329 = vmatpush1.msra.mxu0 0.0
    %5330 = vmatprep.mubr.f32.mxu0 0.0
    %5331 = vmatmul.mubr.f32.gmra.mrb[0].mxu0 %v5262
    %v5332 = vpop.f32.mrb[0].mxu0
    %v5333 = vadd.f32 0.0, %v5332
    %v5334 = vpop.f32.mrb[0].mxu0
    %5335 = vdwg.mxu0
    %v5336 = vcombine.low %v4208, %v4358
    %v5337 = vcombine.high %v4208, %v4358
    %v5339 = vunpack.c.l.s4 1983009808
    %v5340 = vunpack.c.0.s8 %v5339
    %v5341 = vlaneseq
    %v5342 = vshrl.u32 %v5341, 7
    %v5343 = vsub.s32 %v5340, %v5342
    %v5344 = vrot.slane %v5336, %v5343
    %v5346 = vunpack.c.l.s4 1983009808
    %v5347 = vunpack.c.0.s8 %v5346
    %v5348 = vlaneseq
    %v5349 = vshrl.u32 %v5348, 7
    %v5350 = vsub.s32 %v5347, %v5349
    %v5351 = vrot.slane %v5337, %v5350
    %v5352 = vcombine.low %v4283, %v4433
    %v5353 = vcombine.high %v4283, %v4433
    %v5355 = vunpack.c.l.s4 1983009808
    %v5356 = vunpack.c.0.s8 %v5355
    %v5357 = vlaneseq
    %v5358 = vshrl.u32 %v5357, 7
    %v5359 = vsub.s32 %v5356, %v5358
    %v5360 = vrot.slane %v5352, %v5359
    %v5362 = vunpack.c.l.s4 1983009808
    %v5363 = vunpack.c.0.s8 %v5362
    %v5364 = vlaneseq
    %v5365 = vshrl.u32 %v5364, 7
    %v5366 = vsub.s32 %v5363, %v5365
    %v5367 = vrot.slane %v5353, %v5366
    %v5368 = vcombine.low %v4508, %v4658
    %v5369 = vcombine.high %v4508, %v4658
    %v5371 = vunpack.c.l.s4 1983009808
    %v5372 = vunpack.c.0.s8 %v5371
    %v5373 = vlaneseq
    %v5374 = vshrl.u32 %v5373, 7
    %v5375 = vsub.s32 %v5372, %v5374
    %v5376 = vrot.slane %v5368, %v5375
    %v5378 = vunpack.c.l.s4 1983009808
    %v5379 = vunpack.c.0.s8 %v5378
    %v5380 = vlaneseq
    %v5381 = vshrl.u32 %v5380, 7
    %v5382 = vsub.s32 %v5379, %v5381
    %v5383 = vrot.slane %v5369, %v5382
    %v5384 = vcombine.low %v4583, %v4733
    %v5385 = vcombine.high %v4583, %v4733
    %v5387 = vunpack.c.l.s4 1983009808
    %v5388 = vunpack.c.0.s8 %v5387
    %v5389 = vlaneseq
    %v5390 = vshrl.u32 %v5389, 7
    %v5391 = vsub.s32 %v5388, %v5390
    %v5392 = vrot.slane %v5384, %v5391
    %v5394 = vunpack.c.l.s4 1983009808
    %v5395 = vunpack.c.0.s8 %v5394
    %v5396 = vlaneseq
    %v5397 = vshrl.u32 %v5396, 7
    %v5398 = vsub.s32 %v5395, %v5397
    %v5399 = vrot.slane %v5385, %v5398
    %v5400 = vcombine.low %v5344, %v5360
    %v5401 = vcombine.high %v5344, %v5360
    %v5403 = vunpack.c.l.s4 1934713408
    %v5404 = vunpack.c.0.s8 %v5403
    %v5405 = vlaneseq
    %v5406 = vshrl.u32 %v5405, 7
    %v5407 = vsub.s32 %v5404, %v5406
    %v5408 = vrot.slane %v5400, %v5407
    %v5410 = vunpack.c.l.s4 1934713408
    %v5411 = vunpack.c.0.s8 %v5410
    %v5412 = vlaneseq
    %v5413 = vshrl.u32 %v5412, 7
    %v5414 = vsub.s32 %v5411, %v5413
    %v5415 = vrot.slane %v5401, %v5414
    %v5416 = vcombine.low %v5351, %v5367
    %v5417 = vcombine.high %v5351, %v5367
    %v5419 = vunpack.c.l.s4 1934713408
    %v5420 = vunpack.c.0.s8 %v5419
    %v5421 = vlaneseq
    %v5422 = vshrl.u32 %v5421, 7
    %v5423 = vsub.s32 %v5420, %v5422
    %v5424 = vrot.slane %v5416, %v5423
    %v5426 = vunpack.c.l.s4 1934713408
    %v5427 = vunpack.c.0.s8 %v5426
    %v5428 = vlaneseq
    %v5429 = vshrl.u32 %v5428, 7
    %v5430 = vsub.s32 %v5427, %v5429
    %v5431 = vrot.slane %v5417, %v5430
    %v5432 = vcombine.low %v5376, %v5392
    %v5433 = vcombine.high %v5376, %v5392
    %v5435 = vunpack.c.l.s4 1934713408
    %v5436 = vunpack.c.0.s8 %v5435
    %v5437 = vlaneseq
    %v5438 = vshrl.u32 %v5437, 7
    %v5439 = vsub.s32 %v5436, %v5438
    %v5440 = vrot.slane %v5432, %v5439
    %v5442 = vunpack.c.l.s4 1934713408
    %v5443 = vunpack.c.0.s8 %v5442
    %v5444 = vlaneseq
    %v5445 = vshrl.u32 %v5444, 7
    %v5446 = vsub.s32 %v5443, %v5445
    %v5447 = vrot.slane %v5433, %v5446
    %v5448 = vcombine.low %v5383, %v5399
    %v5449 = vcombine.high %v5383, %v5399
    %v5451 = vunpack.c.l.s4 1934713408
    %v5452 = vunpack.c.0.s8 %v5451
    %v5453 = vlaneseq
    %v5454 = vshrl.u32 %v5453, 7
    %v5455 = vsub.s32 %v5452, %v5454
    %v5456 = vrot.slane %v5448, %v5455
    %v5458 = vunpack.c.l.s4 1934713408
    %v5459 = vunpack.c.0.s8 %v5458
    %v5460 = vlaneseq
    %v5461 = vshrl.u32 %v5460, 7
    %v5462 = vsub.s32 %v5459, %v5461
    %v5463 = vrot.slane %v5449, %v5462
    %v5464 = vcombine.low %v5408, %v5440
    %v5465 = vcombine.high %v5408, %v5440
    %v5466 = vcombine.low %v5415, %v5447
    %v5467 = vcombine.high %v5415, %v5447
    %v5468 = vcombine.low %v5424, %v5456
    %v5469 = vcombine.high %v5424, %v5456
    %v5470 = vcombine.low %v5431, %v5463
    %v5471 = vcombine.high %v5431, %v5463
    %v5472 = vcombine.low %v4808, %v4958
    %v5473 = vcombine.high %v4808, %v4958
    %v5475 = vunpack.c.l.s4 1983009808
    %v5476 = vunpack.c.0.s8 %v5475
    %v5477 = vlaneseq
    %v5478 = vshrl.u32 %v5477, 7
    %v5479 = vsub.s32 %v5476, %v5478
    %v5480 = vrot.slane %v5472, %v5479
    %v5482 = vunpack.c.l.s4 1983009808
    %v5483 = vunpack.c.0.s8 %v5482
    %v5484 = vlaneseq
    %v5485 = vshrl.u32 %v5484, 7
    %v5486 = vsub.s32 %v5483, %v5485
    %v5487 = vrot.slane %v5473, %v5486
    %v5488 = vcombine.low %v4883, %v5033
    %v5489 = vcombine.high %v4883, %v5033
    %v5491 = vunpack.c.l.s4 1983009808
    %v5492 = vunpack.c.0.s8 %v5491
    %v5493 = vlaneseq
    %v5494 = vshrl.u32 %v5493, 7
    %v5495 = vsub.s32 %v5492, %v5494
    %v5496 = vrot.slane %v5488, %v5495
    %v5498 = vunpack.c.l.s4 1983009808
    %v5499 = vunpack.c.0.s8 %v5498
    %v5500 = vlaneseq
    %v5501 = vshrl.u32 %v5500, 7
    %v5502 = vsub.s32 %v5499, %v5501
    %v5503 = vrot.slane %v5489, %v5502
    %v5504 = vcombine.low %v5108, %v5258
    %v5505 = vcombine.high %v5108, %v5258
    %v5507 = vunpack.c.l.s4 1983009808
    %v5508 = vunpack.c.0.s8 %v5507
    %v5509 = vlaneseq
    %v5510 = vshrl.u32 %v5509, 7
    %v5511 = vsub.s32 %v5508, %v5510
    %v5512 = vrot.slane %v5504, %v5511
    %v5514 = vunpack.c.l.s4 1983009808
    %v5515 = vunpack.c.0.s8 %v5514
    %v5516 = vlaneseq
    %v5517 = vshrl.u32 %v5516, 7
    %v5518 = vsub.s32 %v5515, %v5517
    %v5519 = vrot.slane %v5505, %v5518
    %v5520 = vcombine.low %v5183, %v5333
    %v5521 = vcombine.high %v5183, %v5333
    %v5523 = vunpack.c.l.s4 1983009808
    %v5524 = vunpack.c.0.s8 %v5523
    %v5525 = vlaneseq
    %v5526 = vshrl.u32 %v5525, 7
    %v5527 = vsub.s32 %v5524, %v5526
    %v5528 = vrot.slane %v5520, %v5527
    %v5530 = vunpack.c.l.s4 1983009808
    %v5531 = vunpack.c.0.s8 %v5530
    %v5532 = vlaneseq
    %v5533 = vshrl.u32 %v5532, 7
    %v5534 = vsub.s32 %v5531, %v5533
    %v5535 = vrot.slane %v5521, %v5534
    %v5536 = vcombine.low %v5480, %v5496
    %v5537 = vcombine.high %v5480, %v5496
    %v5539 = vunpack.c.l.s4 1934713408
    %v5540 = vunpack.c.0.s8 %v5539
    %v5541 = vlaneseq
    %v5542 = vshrl.u32 %v5541, 7
    %v5543 = vsub.s32 %v5540, %v5542
    %v5544 = vrot.slane %v5536, %v5543
    %v5546 = vunpack.c.l.s4 1934713408
    %v5547 = vunpack.c.0.s8 %v5546
    %v5548 = vlaneseq
    %v5549 = vshrl.u32 %v5548, 7
    %v5550 = vsub.s32 %v5547, %v5549
    %v5551 = vrot.slane %v5537, %v5550
    %v5552 = vcombine.low %v5487, %v5503
    %v5553 = vcombine.high %v5487, %v5503
    %v5555 = vunpack.c.l.s4 1934713408
    %v5556 = vunpack.c.0.s8 %v5555
    %v5557 = vlaneseq
    %v5558 = vshrl.u32 %v5557, 7
    %v5559 = vsub.s32 %v5556, %v5558
    %v5560 = vrot.slane %v5552, %v5559
    %v5562 = vunpack.c.l.s4 1934713408
    %v5563 = vunpack.c.0.s8 %v5562
    %v5564 = vlaneseq
    %v5565 = vshrl.u32 %v5564, 7
    %v5566 = vsub.s32 %v5563, %v5565
    %v5567 = vrot.slane %v5553, %v5566
    %v5568 = vcombine.low %v5512, %v5528
    %v5569 = vcombine.high %v5512, %v5528
    %v5571 = vunpack.c.l.s4 1934713408
    %v5572 = vunpack.c.0.s8 %v5571
    %v5573 = vlaneseq
    %v5574 = vshrl.u32 %v5573, 7
    %v5575 = vsub.s32 %v5572, %v5574
    %v5576 = vrot.slane %v5568, %v5575
    %v5578 = vunpack.c.l.s4 1934713408
    %v5579 = vunpack.c.0.s8 %v5578
    %v5580 = vlaneseq
    %v5581 = vshrl.u32 %v5580, 7
    %v5582 = vsub.s32 %v5579, %v5581
    %v5583 = vrot.slane %v5569, %v5582
    %v5584 = vcombine.low %v5519, %v5535
    %v5585 = vcombine.high %v5519, %v5535
    %v5587 = vunpack.c.l.s4 1934713408
    %v5588 = vunpack.c.0.s8 %v5587
    %v5589 = vlaneseq
    %v5590 = vshrl.u32 %v5589, 7
    %v5591 = vsub.s32 %v5588, %v5590
    %v5592 = vrot.slane %v5584, %v5591
    %v5594 = vunpack.c.l.s4 1934713408
    %v5595 = vunpack.c.0.s8 %v5594
    %v5596 = vlaneseq
    %v5597 = vshrl.u32 %v5596, 7
    %v5598 = vsub.s32 %v5595, %v5597
    %v5599 = vrot.slane %v5585, %v5598
    %v5600 = vcombine.low %v5544, %v5576
    %v5601 = vcombine.high %v5544, %v5576
    %v5602 = vcombine.low %v5551, %v5583
    %v5603 = vcombine.high %v5551, %v5583
    %v5604 = vcombine.low %v5560, %v5592
    %v5605 = vcombine.high %v5560, %v5592
    %v5606 = vcombine.low %v5567, %v5599
    %v5607 = vcombine.high %v5567, %v5599
    %5610 = vrot.lane.b32.xlu0 %v5465, 64
    %v5611 = vpop.permute.xlu0 %5610
    %5612 = vrot.lane.b32.xlu0 %v5601, 64
    %v5613 = vpop.permute.xlu0 %5612
    %5618 = vrot.lane.b32.xlu0 %v5467, 64
    %v5619 = vpop.permute.xlu0 %5618
    %5620 = vrot.lane.b32.xlu0 %v5603, 64
    %v5621 = vpop.permute.xlu0 %5620
    %5626 = vrot.lane.b32.xlu0 %v5469, 64
    %v5627 = vpop.permute.xlu0 %5626
    %5628 = vrot.lane.b32.xlu0 %v5605, 64
    %v5629 = vpop.permute.xlu0 %5628
    %5634 = vrot.lane.b32.xlu0 %v5471, 64
    %v5635 = vpop.permute.xlu0 %5634
    %5636 = vrot.lane.b32.xlu0 %v5607, 64
    %v5637 = vpop.permute.xlu0 %5636
    %v5640 = vsel %vm96, %v5464, %v5611
    %v5641 = vsel %vm96, %v5600, %v5613
    %v5642 = vsel %vm96, %v5466, %v5619
    %v5643 = vsel %vm96, %v5602, %v5621
    %v5644 = vsel %vm96, %v5468, %v5627
    %v5645 = vsel %vm96, %v5604, %v5629
    %v5646 = vsel %vm96, %v5470, %v5635
    %v5647 = vsel %vm96, %v5606, %v5637
    %5648 = vst [vmem:[%s4] sm:$0xff] %v5640
    %5649 = vst [vmem:[%s4 + $0x8] sm:$0xff] %v5642
    %5650 = vst [vmem:[%s4 + $0x10] sm:$0xff] %v5644
    %5651 = vst [vmem:[%s4 + $0x18] sm:$0xff] %v5646
    %5652 = vst [vmem:[%s4 + $0x20] sm:$0xff] %v5641
    %5653 = vst [vmem:[%s4 + $0x28] sm:$0xff] %v5643
    %5654 = vst [vmem:[%s4 + $0x30] sm:$0xff] %v5645
    %5655 = vst [vmem:[%s4 + $0x38] sm:$0xff] %v5647
    // Predicated region
    $region26: #{poly_encoder_compute_score.1} parent=1 // pred_check
      _
    $region27: #{poly_encoder_compute_score.1} parent=1 // pred_check_branch
      %5657 = sbr.rel (0) target = $region29
    $region28: #{poly_encoder_compute_score.1} parent=1 // pred_region
      _
    $region29: #{poly_encoder_compute_score.1} parent=1 // pred_fallthru
      _
    // Predicated region
    $region30: #{poly_encoder_compute_score.1} parent=1 // pred_check
      _
    $region31: #{poly_encoder_compute_score.1} parent=1 // pred_check_branch
      %5659 = sbr.rel (0) target = $region33
    $region32: #{poly_encoder_compute_score.1} parent=1 // pred_region
      _
    $region33: #{poly_encoder_compute_score.1} parent=1 // pred_fallthru
      _
    %5660 = vsyncpa [#allocation3], 1
    %5661 = vsyncpa [#allocation5], 1

</llo_original>
